<compile_context>
chip_gen: v5e
topology: v5e:2x2
jax: 0.10.0
libtpu: 0.0.40
codegen_flags: <defaults>
</compile_context>

<pallas_src>
import jax
import jax.numpy as jnp
from jax import lax
from jax.experimental import pallas as pl
from jax.experimental.pallas import tpu as pltpu

K = 7              # depthwise kernel size
PAD = 3            # conv padding (rows; logical column padding)
LPAD = 8           # left column pad in the scratch (sublane-aligned interior)
RPAD = 3           # right column pad in the scratch
EPS = 1e-6         # LayerNorm eps
INV_SQRT2 = 0.7071067811865476


def convnext_block_kernel(x_ref, dww_ref, dwb_ref, ln_g_ref, ln_b_ref,
                          w1_ref, b1_ref, w2_ref, b2_ref,
                          out_ref, pad_ref):
    # x_ref   : (1, H, W, C)        full un-padded NHWC image (revisited per band)
    # dww_ref : (K, K, C)           depthwise weights (HWC)
    # dwb_ref : (1, C)              depthwise bias
    # ln_g/ln_b : (1, C)            LayerNorm weight / bias
    # w1/b1   : (C, 4C) / (1, 4C)   pwconv1
    # w2/b2   : (4C, C) / (1, C)    pwconv2
    # out_ref : (1, TH, W, C)       output band
    # pad_ref : (TH+2*PAD, LPAD+W+RPAD, C) f32 scratch -- zero-padded conv band
    W = x_ref.shape[2]
    C = x_ref.shape[3]
    TH = out_ref.shape[1]
    PH = TH + 2 * PAD

    hb = pl.program_id(1)
    nb = pl.num_programs(1)
    h0 = hb * TH

    # ---- refresh the pad scratch (history-free: no cross-step state) ----------
    # Left/right halo column strips are never overwritten by the data writes.
    pad_ref[:, 0:LPAD, :] = jnp.zeros((PH, LPAD, C), jnp.float32)
    pad_ref[:, LPAD + W:LPAD + W + RPAD, :] = jnp.zeros((PH, RPAD, C), jnp.float32)

    # Interior rows of the band (aligned column offset LPAD=8 -> unmasked stores).
    pad_ref[PAD:PAD + TH, LPAD:LPAD + W, :] = \
        x_ref[0, pl.ds(h0, TH), :, :].astype(jnp.float32)

    # Top halo rows: real rows above the band, or zeros at the image boundary.
    @pl.when(hb > 0)
    def _():
        pad_ref[0:PAD, LPAD:LPAD + W, :] = \
            x_ref[0, pl.ds(h0 - PAD, PAD), :, :].astype(jnp.float32)

    @pl.when(hb == 0)
    def _():
        pad_ref[0:PAD, LPAD:LPAD + W, :] = jnp.zeros((PAD, W, C), jnp.float32)

    # Bottom halo rows.
    @pl.when(hb < nb - 1)
    def _():
        pad_ref[PAD + TH:PAD + TH + PAD, LPAD:LPAD + W, :] = \
            x_ref[0, pl.ds(h0 + TH, PAD), :, :].astype(jnp.float32)

    @pl.when(hb == nb - 1)
    def _():
        pad_ref[PAD + TH:PAD + TH + PAD, LPAD:LPAD + W, :] = \
            jnp.zeros((PAD, W, C), jnp.float32)

    # ---- depthwise 7x7 conv: fully fused accumulation (no scratch RMW) --------
    # One shifted-column extraction per kw (7 unaligned sublane slices total,
    # down from 42); every kh tap reuses it via a free major-dim slice.
    dww = dww_ref[...]                                            # (K, K, C)
    acc = jnp.broadcast_to(dwb_ref[0, :].astype(jnp.float32), (TH, W, C))
    for kw in range(K):
        off = LPAD - PAD + kw
        col = pad_ref[:, off:off + W, :]                          # (PH, W, C)
        for kh in range(K):
            acc = acc + col[kh:kh + TH, :, :] * dww[kh, kw, :]

    # ---- LayerNorm over channels (two-pass: mean, then centered variance) -----
    inv_c = 1.0 / C
    mean = jnp.sum(acc, axis=-1, keepdims=True) * inv_c
    cen = acc - mean
    var = jnp.sum(cen * cen, axis=-1, keepdims=True) * inv_c
    xn = cen * lax.rsqrt(var + EPS)
    xn = xn * ln_g_ref[0, :] + ln_b_ref[0, :]

    # ---- pointwise MLP: Linear(C->4C) -> exact-erf GELU -> Linear(4C->C) ------
    cdt = w1_ref.dtype                     # bf16 weights => bf16 MXU, f32 acc
    xf = xn.reshape(TH * W, C).astype(cdt)
    h = jnp.dot(xf, w1_ref[...], preferred_element_type=jnp.float32) + b1_ref[0, :]
    # nn.GELU default is exact erf; keep it (EUP slot is not the max slot here).
    h = 0.5 * h * (1.0 + lax.erf(h * INV_SQRT2))
    y = jnp.dot(h.astype(cdt), w2_ref[...],
                preferred_element_type=jnp.float32) + b2_ref[0, :]
    y = y.reshape(TH, W, C)

    # gamma (layer scale) disabled, drop_path identity -> plain residual add.
    xres = pad_ref[PAD:PAD + TH, LPAD:LPAD + W, :]   # aligned re-read of the band
    out_ref[...] = (xres + y)[None].astype(out_ref.dtype)
    # TODO(synk): for C < 128 present a lane-dense (1, TH, W*C) output block once
    # the in-kernel (TH, W, C)->(TH, W*C) minor-dim reshape is verified.


def _vmem_capacity_bytes():
    try:
        return int(pltpu.get_tpu_info().vmem_capacity_bytes)
    except Exception:
        return 128 << 20


def _vmem_bytes_estimate(H, W, C, th, w_bytes=4):
    f32 = 4
    img_block = H * W * C * f32                        # full-image input block
    out_block = th * W * C * f32                       # output band
    weights = (K * K * C + 8 * C * C + 10 * C) * w_bytes
    pad_scr = (th + 2 * PAD) * (W + LPAD + RPAD) * C * f32
    shifted = (th + 2 * PAD) * W * C * f32             # one shifted-column copy
    hidden = th * W * 4 * C * f32                      # MLP hidden intermediate
    live = 3 * th * W * C * f32                        # acc / xn / residual slack
    return 2 * (img_block + out_block + weights) + pad_scr + shifted + hidden + live


def _pick_band_rows(H, W, C, budget_bytes):
    cands = [d for d in range(1, H + 1) if H % d == 0 and (d == H or d >= PAD)]
    fitting = [d for d in cands if _vmem_bytes_estimate(H, W, C, d) <= budget_bytes]
    if not fitting:
        # Nothing fits the soft budget; pick the smallest legal band and let the
        # wrapper raise vmem_limit_bytes to cover the estimate (no silent OOM gap).
        return min(cands)
    best = max(fitting)
    # Prefer an MXU-friendly M = TH*W (multiple of 256, >= 512) if it does not
    # shrink the band by more than 2x.
    mxu = [d for d in fitting if (d * W) % 256 == 0 and d * W >= 512]
    if mxu and max(mxu) * 2 >= best:
        return max(mxu)
    return best


def convnext_block_nhwc(x_nhwc, params, band_rows=None):
    """Fused ConvNeXt block on an NHWC activation (no wrapper transposes)."""
    dww, dwb, lng, lnb, w1, b1, w2, b2 = params
    N, H, W, C = x_nhwc.shape

    cap = _vmem_capacity_bytes()
    if cap <= (64 << 20):                   # v7x-class: 64 MiB per TensorCore
        budget, vmem_limit = 18 << 20, 40 << 20
    else:                                   # v5e / v6e: 128 MiB
        budget, vmem_limit = 56 << 20, 96 << 20

    if band_rows is None:
        band_rows = _pick_band_rows(H, W, C, budget)
    TH = int(band_rows)
    assert H % TH == 0, "band_rows must divide H"
    nb = H // TH
    assert nb == 1 or TH >= PAD, "band_rows must be >= 3 when using multiple bands"

    est = _vmem_bytes_estimate(H, W, C, TH)
    vmem_limit = max(vmem_limit, est + (8 << 20))
    vmem_limit = min(vmem_limit, max(int(cap * 0.92), 16 << 20))

    # Advisory cost estimate for XLA scheduling around the custom call.
    hw = N * H * W
    flops = int(2 * K * K * C * hw + 16 * C * C * hw + 12 * C * hw)
    transcendentals = int(4 * C * hw + hw)
    bytes_accessed = int(2 * hw * C * 4 + (8 * C * C + K * K * C + 10 * C) * 4)
    cost = pl.CostEstimate(flops=flops, transcendentals=transcendentals,
                           bytes_accessed=bytes_accessed)

    # TODO(synk): pipeline_mode=pl.Buffered(1) on the constant-index weight blocks
    # (dww/w1/w2) to reclaim their second buffer on v7x, once single-buffering is
    # verified with PrefetchScalarGridSpec on all targets.
    out_nhwc = pl.pallas_call(
        convnext_block_kernel,
        out_shape=jax.ShapeDtypeStruct((N, H, W, C), x_nhwc.dtype),
        grid_spec=pltpu.PrefetchScalarGridSpec(
            num_scalar_prefetch=0,
            grid=(N, nb),
            in_specs=[
                pl.BlockSpec((1, H, W, C), lambda n, hb: (n, 0, 0, 0)),   # image
                pl.BlockSpec((K, K, C), lambda n, hb: (0, 0, 0)),         # dw weight
                pl.BlockSpec((1, C), lambda n, hb: (0, 0)),               # dw bias
                pl.BlockSpec((1, C), lambda n, hb: (0, 0)),               # LN gamma
                pl.BlockSpec((1, C), lambda n, hb: (0, 0)),               # LN beta
                pl.BlockSpec((C, 4 * C), lambda n, hb: (0, 0)),           # w1
                pl.BlockSpec((1, 4 * C), lambda n, hb: (0, 0)),           # b1
                pl.BlockSpec((4 * C, C), lambda n, hb: (0, 0)),           # w2
                pl.BlockSpec((1, C), lambda n, hb: (0, 0)),               # b2
            ],
            out_specs=pl.BlockSpec((1, TH, W, C), lambda n, hb: (n, hb, 0, 0)),
            scratch_shapes=[
                pltpu.VMEM((TH + 2 * PAD, LPAD + W + RPAD, C), jnp.float32),
            ],
        ),
        compiler_params=pltpu.CompilerParams(
            # Band iterations are history-free -> both axes parallel (v7x 2 TCs).
            dimension_semantics=("parallel", "parallel"),
            vmem_limit_bytes=int(vmem_limit),
        ),
        cost_estimate=cost,
    )(x_nhwc, dww, dwb, lng, lnb, w1, b1, w2, b2)
    return out_nhwc


def convnext_block(x_nchw, params, band_rows=None):
    """PyTorch-layout (NCHW) entry point matching ConvNeXtBlock.forward."""
    x_nhwc = jnp.transpose(x_nchw, (0, 2, 3, 1))
    out_nhwc = convnext_block_nhwc(x_nhwc, params, band_rows=band_rows)
    return jnp.transpose(out_nhwc, (0, 3, 1, 2))


def make_params(key, dim):
    # Deterministic synthetic parameters (shapes match the PyTorch module).
    ks = jax.random.split(key, 6)
    dww = jax.random.normal(ks[0], (K, K, dim), jnp.float32) * 0.1   # Conv2d (dim,1,7,7) -> HWC
    dwb = jax.random.normal(ks[1], (1, dim), jnp.float32) * 0.1      # Conv2d bias
    lng = jnp.ones((1, dim), jnp.float32)                            # LayerNorm weight
    lnb = jnp.zeros((1, dim), jnp.float32)                           # LayerNorm bias
    w1 = jax.random.normal(ks[2], (dim, 4 * dim), jnp.float32) * 0.1 # pwconv1
    b1 = jax.random.normal(ks[3], (1, 4 * dim), jnp.float32) * 0.1
    w2 = jax.random.normal(ks[4], (4 * dim, dim), jnp.float32) * 0.1 # pwconv2
    b2 = jax.random.normal(ks[5], (1, dim), jnp.float32) * 0.1
    return (dww, dwb, lng, lnb, w1, b1, w2, b2)


def reference_block(x_nchw, params):
    # Pure-JAX reference matching the PyTorch forward (for validation only).
    dww, dwb, lng, lnb, w1, b1, w2, b2 = params
    N, C, H, W = x_nchw.shape
    x = jnp.transpose(x_nchw, (0, 2, 3, 1))                          # NHWC
    y = lax.conv_general_dilated(
        x, dww.reshape(K, K, 1, C),
        window_strides=(1, 1), padding=((PAD, PAD), (PAD, PAD)),
        dimension_numbers=("NHWC", "HWIO", "NHWC"),
        feature_group_count=C) + dwb[0]
    mean = jnp.mean(y, axis=-1, keepdims=True)
    var = jnp.mean((y - mean) ** 2, axis=-1, keepdims=True)
    y = (y - mean) / jnp.sqrt(var + EPS) * lng[0] + lnb[0]
    y = y @ w1 + b1[0]
    y = 0.5 * y * (1.0 + lax.erf(y * INV_SQRT2))
    y = y @ w2 + b2[0]
    out = x + y
    return jnp.transpose(out, (0, 3, 1, 2))


if __name__ == "__main__":
    key = jax.random.PRNGKey(0)
    k_x, k_p = jax.random.split(key)

    N, C, H, W = 2, 16, 16, 16
    x = jax.random.normal(k_x, (N, C, H, W), jnp.float32)
    params = make_params(k_p, C)

    ref = reference_block(x, params)

    # f32 path, 2 bands/image (exercises boundary-zero + real-halo paths).
    out = jax.block_until_ready(convnext_block(x, params, band_rows=8))
    assert out.shape == (N, C, H, W)
    assert jnp.allclose(out, ref, atol=1e-4, rtol=1e-4), "f32 2-band kernel mismatch"

    # f32 path, 4 bands/image (exercises interior bands with both halos real).
    out4 = jax.block_until_ready(convnext_block(x, params, band_rows=4))
    assert jnp.allclose(out4, ref, atol=1e-4, rtol=1e-4), "f32 4-band kernel mismatch"

    # Auto band selection (single band at this size).
    out_auto = jax.block_until_ready(convnext_block(x, params))
    assert jnp.allclose(out_auto, ref, atol=1e-4, rtol=1e-4), "auto-band kernel mismatch"

    # bf16 MXU operands (pwconv weights in bf16, f32 accumulation) -- xn and the
    # GELU output are rounded to bf16 before the MXU, hence the looser tolerance.
    p_bf16 = list(params)
    p_bf16[4] = params[4].astype(jnp.bfloat16)   # w1
    p_bf16[6] = params[6].astype(jnp.bfloat16)   # w2
    out_bf16 = jax.block_until_ready(convnext_block(x, tuple(p_bf16), band_rows=8))
    assert jnp.allclose(out_bf16, ref, atol=5e-2, rtol=5e-2), "bf16-matmul kernel mismatch"

    print("KERNEL_OK")
</pallas_src>

<mosaic_0001>
module attributes {stable_mosaic.version = 11 : i64} {
  func.func @convnext_block_kernel(%arg0: i32, %arg1: i32, %arg2: memref<1x16x16x16xf32, #tpu.memory_space<vmem>>, %arg3: memref<7x7x16xf32, #tpu.memory_space<vmem>>, %arg4: memref<1x16xf32, #tpu.memory_space<vmem>>, %arg5: memref<1x16xf32, #tpu.memory_space<vmem>>, %arg6: memref<1x16xf32, #tpu.memory_space<vmem>>, %arg7: memref<16x64xf32, #tpu.memory_space<vmem>>, %arg8: memref<1x64xf32, #tpu.memory_space<vmem>>, %arg9: memref<64x16xf32, #tpu.memory_space<vmem>>, %arg10: memref<1x16xf32, #tpu.memory_space<vmem>>, %arg11: memref<1x8x16x16xf32, #tpu.memory_space<vmem>>, %arg12: memref<14x27x16xf32, #tpu.memory_space<vmem>>) attributes {dimension_semantics = [#tpu.dimension_semantics<parallel>, #tpu.dimension_semantics<parallel>], iteration_bounds = array<i64: 2, 2>, scalar_prefetch = 0 : i64, scratch_operands = 1 : i64, tpu.core_type = #tpu.core_type<tc>, window_params = [{transform_indices = @transform_0, window_bounds = array<i64: 1, 16, 16, 16>}, {pipeline_mode = #tpu.pipeline_mode<synchronous>, transform_indices = @transform_1, window_bounds = array<i64: 7, 7, 16>}, {pipeline_mode = #tpu.pipeline_mode<synchronous>, transform_indices = @transform_2, window_bounds = array<i64: 1, 16>}, {pipeline_mode = #tpu.pipeline_mode<synchronous>, transform_indices = @transform_3, window_bounds = array<i64: 1, 16>}, {pipeline_mode = #tpu.pipeline_mode<synchronous>, transform_indices = @transform_4, window_bounds = array<i64: 1, 16>}, {pipeline_mode = #tpu.pipeline_mode<synchronous>, transform_indices = @transform_5, window_bounds = array<i64: 16, 64>}, {pipeline_mode = #tpu.pipeline_mode<synchronous>, transform_indices = @transform_6, window_bounds = array<i64: 1, 64>}, {pipeline_mode = #tpu.pipeline_mode<synchronous>, transform_indices = @transform_7, window_bounds = array<i64: 64, 16>}, {pipeline_mode = #tpu.pipeline_mode<synchronous>, transform_indices = @transform_8, window_bounds = array<i64: 1, 16>}, {transform_indices = @transform_9, window_bounds = array<i64: 1, 8, 16, 16>}]} {
    %c8_i32 = arith.constant 8 : i32
    %0 = arith.muli %arg1, %c8_i32 : i32
    %cst = arith.constant 0.000000e+00 : f32
    %1 = vector.broadcast %cst : f32 to vector<14x8x16xf32>
    %c0 = arith.constant 0 : index
    %c0_0 = arith.constant 0 : index
    %c0_1 = arith.constant 0 : index
    %2 = vector.load %arg12[%c0, %c0_0, %c0_1] : memref<14x27x16xf32, #tpu.memory_space<vmem>>, vector<14x8x16xf32>
    tpu.vector_store %arg12[%c0, %c0_0, %c0_1], %1 {strides = array<i32>} : memref<14x27x16xf32, #tpu.memory_space<vmem>>, vector<14x8x16xf32>,
    %cst_2 = arith.constant 0.000000e+00 : f32
    %3 = vector.broadcast %cst_2 : f32 to vector<14x3x16xf32>
    %c0_3 = arith.constant 0 : index
    %c24 = arith.constant 24 : index
    %c0_4 = arith.constant 0 : index
    %4 = vector.load %arg12[%c0_3, %c24, %c0_4] : memref<14x27x16xf32, #tpu.memory_space<vmem>>, vector<14x3x16xf32>
    tpu.vector_store %arg12[%c0_3, %c24, %c0_4], %3 {strides = array<i32>} : memref<14x27x16xf32, #tpu.memory_space<vmem>>, vector<14x3x16xf32>,
    %c0_5 = arith.constant 0 : index
    %5 = arith.index_cast %0 : i32 to index
    %c0_6 = arith.constant 0 : index
    %c0_7 = arith.constant 0 : index
    %6 = vector.load %arg2[%c0_5, %5, %c0_6, %c0_7] : memref<1x16x16x16xf32, #tpu.memory_space<vmem>>, vector<1x8x16x16xf32>
    %7 = vector.shape_cast %6 : vector<1x8x16x16xf32> to vector<8x16x16xf32>
    %c3 = arith.constant 3 : index
    %c8 = arith.constant 8 : index
    %c0_8 = arith.constant 0 : index
    %8 = vector.load %arg12[%c3, %c8, %c0_8] : memref<14x27x16xf32, #tpu.memory_space<vmem>>, vector<8x16x16xf32>
    tpu.vector_store %arg12[%c3, %c8, %c0_8], %7 {strides = array<i32>} : memref<14x27x16xf32, #tpu.memory_space<vmem>>, vector<8x16x16xf32>,
    %c0_i32 = arith.constant 0 : i32
    %9 = arith.cmpi sgt, %arg1, %c0_i32 : i32
    %10 = arith.extui %9 : i1 to i32
    %c0_i32_9 = arith.constant 0 : i32
    %11 = arith.cmpi ne, %10, %c0_i32_9 : i32
    scf.if %11 {
      %c3_i32 = arith.constant 3 : i32
      %430 = arith.subi %0, %c3_i32 : i32
      %c0_64 = arith.constant 0 : index
      %431 = arith.index_cast %430 : i32 to index
      %c0_65 = arith.constant 0 : index
      %c0_66 = arith.constant 0 : index
      %432 = vector.load %arg2[%c0_64, %431, %c0_65, %c0_66] : memref<1x16x16x16xf32, #tpu.memory_space<vmem>>, vector<1x3x16x16xf32>
      %433 = vector.shape_cast %432 : vector<1x3x16x16xf32> to vector<3x16x16xf32>
      %c0_67 = arith.constant 0 : index
      %c8_68 = arith.constant 8 : index
      %c0_69 = arith.constant 0 : index
      %434 = vector.load %arg12[%c0_67, %c8_68, %c0_69] : memref<14x27x16xf32, #tpu.memory_space<vmem>>, vector<3x16x16xf32>
      tpu.vector_store %arg12[%c0_67, %c8_68, %c0_69], %433 {strides = array<i32>} : memref<14x27x16xf32, #tpu.memory_space<vmem>>, vector<3x16x16xf32>,
    } else {
    }
    %c0_i32_10 = arith.constant 0 : i32
    %12 = arith.cmpi eq, %arg1, %c0_i32_10 : i32
    %13 = arith.extui %12 : i1 to i32
    %c0_i32_11 = arith.constant 0 : i32
    %14 = arith.cmpi ne, %13, %c0_i32_11 : i32
    scf.if %14 {
      %cst_64 = arith.constant 0.000000e+00 : f32
      %430 = vector.broadcast %cst_64 : f32 to vector<3x16x16xf32>
      %c0_65 = arith.constant 0 : index
      %c8_66 = arith.constant 8 : index
      %c0_67 = arith.constant 0 : index
      %431 = vector.load %arg12[%c0_65, %c8_66, %c0_67] : memref<14x27x16xf32, #tpu.memory_space<vmem>>, vector<3x16x16xf32>
      tpu.vector_store %arg12[%c0_65, %c8_66, %c0_67], %430 {strides = array<i32>} : memref<14x27x16xf32, #tpu.memory_space<vmem>>, vector<3x16x16xf32>,
    } else {
    }
    %c1_i32 = arith.constant 1 : i32
    %15 = arith.cmpi slt, %arg1, %c1_i32 : i32
    %16 = arith.extui %15 : i1 to i32
    %c0_i32_12 = arith.constant 0 : i32
    %17 = arith.cmpi ne, %16, %c0_i32_12 : i32
    scf.if %17 {
      %c8_i32_64 = arith.constant 8 : i32
      %430 = arith.addi %0, %c8_i32_64 : i32
      %c0_65 = arith.constant 0 : index
      %431 = arith.index_cast %430 : i32 to index
      %c0_66 = arith.constant 0 : index
      %c0_67 = arith.constant 0 : index
      %432 = vector.load %arg2[%c0_65, %431, %c0_66, %c0_67] : memref<1x16x16x16xf32, #tpu.memory_space<vmem>>, vector<1x3x16x16xf32>
      %433 = vector.shape_cast %432 : vector<1x3x16x16xf32> to vector<3x16x16xf32>
      %c11_68 = arith.constant 11 : index
      %c8_69 = arith.constant 8 : index
      %c0_70 = arith.constant 0 : index
      %434 = vector.load %arg12[%c11_68, %c8_69, %c0_70] : memref<14x27x16xf32, #tpu.memory_space<vmem>>, vector<3x16x16xf32>
      tpu.vector_store %arg12[%c11_68, %c8_69, %c0_70], %433 {strides = array<i32>} : memref<14x27x16xf32, #tpu.memory_space<vmem>>, vector<3x16x16xf32>,
    } else {
    }
    %c1_i32_13 = arith.constant 1 : i32
    %18 = arith.cmpi eq, %arg1, %c1_i32_13 : i32
    %19 = arith.extui %18 : i1 to i32
    %c0_i32_14 = arith.constant 0 : i32
    %20 = arith.cmpi ne, %19, %c0_i32_14 : i32
    scf.if %20 {
      %cst_64 = arith.constant 0.000000e+00 : f32
      %430 = vector.broadcast %cst_64 : f32 to vector<3x16x16xf32>
      %c11_65 = arith.constant 11 : index
      %c8_66 = arith.constant 8 : index
      %c0_67 = arith.constant 0 : index
      %431 = vector.load %arg12[%c11_65, %c8_66, %c0_67] : memref<14x27x16xf32, #tpu.memory_space<vmem>>, vector<3x16x16xf32>
      tpu.vector_store %arg12[%c11_65, %c8_66, %c0_67], %430 {strides = array<i32>} : memref<14x27x16xf32, #tpu.memory_space<vmem>>, vector<3x16x16xf32>,
    } else {
    }
    %c0_15 = arith.constant 0 : index
    %c0_16 = arith.constant 0 : index
    %c0_17 = arith.constant 0 : index
    %21 = vector.load %arg3[%c0_15, %c0_16, %c0_17] : memref<7x7x16xf32, #tpu.memory_space<vmem>>, vector<7x7x16xf32>
    %c0_18 = arith.constant 0 : index
    %c0_19 = arith.constant 0 : index
    %22 = vector.load %arg4[%c0_18, %c0_19] : memref<1x16xf32, #tpu.memory_space<vmem>>, vector<1x16xf32>
    %23 = vector.shape_cast %22 : vector<1x16xf32> to vector<16xf32>
    %24 = vector.shape_cast %23 : vector<16xf32> to vector<1x1x16xf32>
    %25 = vector.broadcast %24 : vector<1x1x16xf32> to vector<8x16x16xf32>
    %c0_20 = arith.constant 0 : index
    %c5 = arith.constant 5 : index
    %c0_21 = arith.constant 0 : index
    %26 = vector.load %arg12[%c0_20, %c5, %c0_21] : memref<14x27x16xf32, #tpu.memory_space<vmem>>, vector<14x16x16xf32>
    %27 = vector.extract_strided_slice %26 {offsets = [0, 0, 0], sizes = [8, 16, 16], strides = [1, 1, 1]} : vector<14x16x16xf32> to vector<8x16x16xf32>
    %28 = vector.extract_strided_slice %21 {offsets = [0, 0, 0], sizes = [1, 1, 16], strides = [1, 1, 1]} : vector<7x7x16xf32> to vector<1x1x16xf32>
    %29 = vector.shape_cast %28 : vector<1x1x16xf32> to vector<16xf32>
    %30 = vector.shape_cast %29 : vector<16xf32> to vector<1x1x16xf32>
    %31 = vector.broadcast %30 : vector<1x1x16xf32> to vector<8x16x16xf32>
    %32 = arith.mulf %27, %31 : vector<8x16x16xf32>
    %33 = arith.addf %25, %32 : vector<8x16x16xf32>
    %34 = vector.extract_strided_slice %26 {offsets = [1, 0, 0], sizes = [8, 16, 16], strides = [1, 1, 1]} : vector<14x16x16xf32> to vector<8x16x16xf32>
    %35 = vector.extract_strided_slice %21 {offsets = [1, 0, 0], sizes = [1, 1, 16], strides = [1, 1, 1]} : vector<7x7x16xf32> to vector<1x1x16xf32>
    %36 = vector.shape_cast %35 : vector<1x1x16xf32> to vector<16xf32>
    %37 = vector.shape_cast %36 : vector<16xf32> to vector<1x1x16xf32>
    %38 = vector.broadcast %37 : vector<1x1x16xf32> to vector<8x16x16xf32>
    %39 = arith.mulf %34, %38 : vector<8x16x16xf32>
    %40 = arith.addf %33, %39 : vector<8x16x16xf32>
    %41 = vector.extract_strided_slice %26 {offsets = [2, 0, 0], sizes = [8, 16, 16], strides = [1, 1, 1]} : vector<14x16x16xf32> to vector<8x16x16xf32>
    %42 = vector.extract_strided_slice %21 {offsets = [2, 0, 0], sizes = [1, 1, 16], strides = [1, 1, 1]} : vector<7x7x16xf32> to vector<1x1x16xf32>
    %43 = vector.shape_cast %42 : vector<1x1x16xf32> to vector<16xf32>
    %44 = vector.shape_cast %43 : vector<16xf32> to vector<1x1x16xf32>
    %45 = vector.broadcast %44 : vector<1x1x16xf32> to vector<8x16x16xf32>
    %46 = arith.mulf %41, %45 : vector<8x16x16xf32>
    %47 = arith.addf %40, %46 : vector<8x16x16xf32>
    %48 = vector.extract_strided_slice %26 {offsets = [3, 0, 0], sizes = [8, 16, 16], strides = [1, 1, 1]} : vector<14x16x16xf32> to vector<8x16x16xf32>
    %49 = vector.extract_strided_slice %21 {offsets = [3, 0, 0], sizes = [1, 1, 16], strides = [1, 1, 1]} : vector<7x7x16xf32> to vector<1x1x16xf32>
    %50 = vector.shape_cast %49 : vector<1x1x16xf32> to vector<16xf32>
    %51 = vector.shape_cast %50 : vector<16xf32> to vector<1x1x16xf32>
    %52 = vector.broadcast %51 : vector<1x1x16xf32> to vector<8x16x16xf32>
    %53 = arith.mulf %48, %52 : vector<8x16x16xf32>
    %54 = arith.addf %47, %53 : vector<8x16x16xf32>
    %55 = vector.extract_strided_slice %26 {offsets = [4, 0, 0], sizes = [8, 16, 16], strides = [1, 1, 1]} : vector<14x16x16xf32> to vector<8x16x16xf32>
    %56 = vector.extract_strided_slice %21 {offsets = [4, 0, 0], sizes = [1, 1, 16], strides = [1, 1, 1]} : vector<7x7x16xf32> to vector<1x1x16xf32>
    %57 = vector.shape_cast %56 : vector<1x1x16xf32> to vector<16xf32>
    %58 = vector.shape_cast %57 : vector<16xf32> to vector<1x1x16xf32>
    %59 = vector.broadcast %58 : vector<1x1x16xf32> to vector<8x16x16xf32>
    %60 = arith.mulf %55, %59 : vector<8x16x16xf32>
    %61 = arith.addf %54, %60 : vector<8x16x16xf32>
    %62 = vector.extract_strided_slice %26 {offsets = [5, 0, 0], sizes = [8, 16, 16], strides = [1, 1, 1]} : vector<14x16x16xf32> to vector<8x16x16xf32>
    %63 = vector.extract_strided_slice %21 {offsets = [5, 0, 0], sizes = [1, 1, 16], strides = [1, 1, 1]} : vector<7x7x16xf32> to vector<1x1x16xf32>
    %64 = vector.shape_cast %63 : vector<1x1x16xf32> to vector<16xf32>
    %65 = vector.shape_cast %64 : vector<16xf32> to vector<1x1x16xf32>
    %66 = vector.broadcast %65 : vector<1x1x16xf32> to vector<8x16x16xf32>
    %67 = arith.mulf %62, %66 : vector<8x16x16xf32>
    %68 = arith.addf %61, %67 : vector<8x16x16xf32>
    %69 = vector.extract_strided_slice %26 {offsets = [6, 0, 0], sizes = [8, 16, 16], strides = [1, 1, 1]} : vector<14x16x16xf32> to vector<8x16x16xf32>
    %70 = vector.extract_strided_slice %21 {offsets = [6, 0, 0], sizes = [1, 1, 16], strides = [1, 1, 1]} : vector<7x7x16xf32> to vector<1x1x16xf32>
    %71 = vector.shape_cast %70 : vector<1x1x16xf32> to vector<16xf32>
    %72 = vector.shape_cast %71 : vector<16xf32> to vector<1x1x16xf32>
    %73 = vector.broadcast %72 : vector<1x1x16xf32> to vector<8x16x16xf32>
    %74 = arith.mulf %69, %73 : vector<8x16x16xf32>
    %75 = arith.addf %68, %74 : vector<8x16x16xf32>
    %c0_22 = arith.constant 0 : index
    %c6 = arith.constant 6 : index
    %c0_23 = arith.constant 0 : index
    %76 = vector.load %arg12[%c0_22, %c6, %c0_23] : memref<14x27x16xf32, #tpu.memory_space<vmem>>, vector<14x16x16xf32>
    %77 = vector.extract_strided_slice %76 {offsets = [0, 0, 0], sizes = [8, 16, 16], strides = [1, 1, 1]} : vector<14x16x16xf32> to vector<8x16x16xf32>
    %78 = vector.extract_strided_slice %21 {offsets = [0, 1, 0], sizes = [1, 1, 16], strides = [1, 1, 1]} : vector<7x7x16xf32> to vector<1x1x16xf32>
    %79 = vector.shape_cast %78 : vector<1x1x16xf32> to vector<16xf32>
    %80 = vector.shape_cast %79 : vector<16xf32> to vector<1x1x16xf32>
    %81 = vector.broadcast %80 : vector<1x1x16xf32> to vector<8x16x16xf32>
    %82 = arith.mulf %77, %81 : vector<8x16x16xf32>
    %83 = arith.addf %75, %82 : vector<8x16x16xf32>
    %84 = vector.extract_strided_slice %76 {offsets = [1, 0, 0], sizes = [8, 16, 16], strides = [1, 1, 1]} : vector<14x16x16xf32> to vector<8x16x16xf32>
    %85 = vector.extract_strided_slice %21 {offsets = [1, 1, 0], sizes = [1, 1, 16], strides = [1, 1, 1]} : vector<7x7x16xf32> to vector<1x1x16xf32>
    %86 = vector.shape_cast %85 : vector<1x1x16xf32> to vector<16xf32>
    %87 = vector.shape_cast %86 : vector<16xf32> to vector<1x1x16xf32>
    %88 = vector.broadcast %87 : vector<1x1x16xf32> to vector<8x16x16xf32>
    %89 = arith.mulf %84, %88 : vector<8x16x16xf32>
    %90 = arith.addf %83, %89 : vector<8x16x16xf32>
    %91 = vector.extract_strided_slice %76 {offsets = [2, 0, 0], sizes = [8, 16, 16], strides = [1, 1, 1]} : vector<14x16x16xf32> to vector<8x16x16xf32>
    %92 = vector.extract_strided_slice %21 {offsets = [2, 1, 0], sizes = [1, 1, 16], strides = [1, 1, 1]} : vector<7x7x16xf32> to vector<1x1x16xf32>
    %93 = vector.shape_cast %92 : vector<1x1x16xf32> to vector<16xf32>
    %94 = vector.shape_cast %93 : vector<16xf32> to vector<1x1x16xf32>
    %95 = vector.broadcast %94 : vector<1x1x16xf32> to vector<8x16x16xf32>
    %96 = arith.mulf %91, %95 : vector<8x16x16xf32>
    %97 = arith.addf %90, %96 : vector<8x16x16xf32>
    %98 = vector.extract_strided_slice %76 {offsets = [3, 0, 0], sizes = [8, 16, 16], strides = [1, 1, 1]} : vector<14x16x16xf32> to vector<8x16x16xf32>
    %99 = vector.extract_strided_slice %21 {offsets = [3, 1, 0], sizes = [1, 1, 16], strides = [1, 1, 1]} : vector<7x7x16xf32> to vector<1x1x16xf32>
    %100 = vector.shape_cast %99 : vector<1x1x16xf32> to vector<16xf32>
    %101 = vector.shape_cast %100 : vector<16xf32> to vector<1x1x16xf32>
    %102 = vector.broadcast %101 : vector<1x1x16xf32> to vector<8x16x16xf32>
    %103 = arith.mulf %98, %102 : vector<8x16x16xf32>
    %104 = arith.addf %97, %103 : vector<8x16x16xf32>
    %105 = vector.extract_strided_slice %76 {offsets = [4, 0, 0], sizes = [8, 16, 16], strides = [1, 1, 1]} : vector<14x16x16xf32> to vector<8x16x16xf32>
    %106 = vector.extract_strided_slice %21 {offsets = [4, 1, 0], sizes = [1, 1, 16], strides = [1, 1, 1]} : vector<7x7x16xf32> to vector<1x1x16xf32>
    %107 = vector.shape_cast %106 : vector<1x1x16xf32> to vector<16xf32>
    %108 = vector.shape_cast %107 : vector<16xf32> to vector<1x1x16xf32>
    %109 = vector.broadcast %108 : vector<1x1x16xf32> to vector<8x16x16xf32>
    %110 = arith.mulf %105, %109 : vector<8x16x16xf32>
    %111 = arith.addf %104, %110 : vector<8x16x16xf32>
    %112 = vector.extract_strided_slice %76 {offsets = [5, 0, 0], sizes = [8, 16, 16], strides = [1, 1, 1]} : vector<14x16x16xf32> to vector<8x16x16xf32>
    %113 = vector.extract_strided_slice %21 {offsets = [5, 1, 0], sizes = [1, 1, 16], strides = [1, 1, 1]} : vector<7x7x16xf32> to vector<1x1x16xf32>
    %114 = vector.shape_cast %113 : vector<1x1x16xf32> to vector<16xf32>
    %115 = vector.shape_cast %114 : vector<16xf32> to vector<1x1x16xf32>
    %116 = vector.broadcast %115 : vector<1x1x16xf32> to vector<8x16x16xf32>
    %117 = arith.mulf %112, %116 : vector<8x16x16xf32>
    %118 = arith.addf %111, %117 : vector<8x16x16xf32>
    %119 = vector.extract_strided_slice %76 {offsets = [6, 0, 0], sizes = [8, 16, 16], strides = [1, 1, 1]} : vector<14x16x16xf32> to vector<8x16x16xf32>
    %120 = vector.extract_strided_slice %21 {offsets = [6, 1, 0], sizes = [1, 1, 16], strides = [1, 1, 1]} : vector<7x7x16xf32> to vector<1x1x16xf32>
    %121 = vector.shape_cast %120 : vector<1x1x16xf32> to vector<16xf32>
    %122 = vector.shape_cast %121 : vector<16xf32> to vector<1x1x16xf32>
    %123 = vector.broadcast %122 : vector<1x1x16xf32> to vector<8x16x16xf32>
    %124 = arith.mulf %119, %123 : vector<8x16x16xf32>
    %125 = arith.addf %118, %124 : vector<8x16x16xf32>
    %c0_24 = arith.constant 0 : index
    %c7 = arith.constant 7 : index
    %c0_25 = arith.constant 0 : index
    %126 = vector.load %arg12[%c0_24, %c7, %c0_25] : memref<14x27x16xf32, #tpu.memory_space<vmem>>, vector<14x16x16xf32>
    %127 = vector.extract_strided_slice %126 {offsets = [0, 0, 0], sizes = [8, 16, 16], strides = [1, 1, 1]} : vector<14x16x16xf32> to vector<8x16x16xf32>
    %128 = vector.extract_strided_slice %21 {offsets = [0, 2, 0], sizes = [1, 1, 16], strides = [1, 1, 1]} : vector<7x7x16xf32> to vector<1x1x16xf32>
    %129 = vector.shape_cast %128 : vector<1x1x16xf32> to vector<16xf32>
    %130 = vector.shape_cast %129 : vector<16xf32> to vector<1x1x16xf32>
    %131 = vector.broadcast %130 : vector<1x1x16xf32> to vector<8x16x16xf32>
    %132 = arith.mulf %127, %131 : vector<8x16x16xf32>
    %133 = arith.addf %125, %132 : vector<8x16x16xf32>
    %134 = vector.extract_strided_slice %126 {offsets = [1, 0, 0], sizes = [8, 16, 16], strides = [1, 1, 1]} : vector<14x16x16xf32> to vector<8x16x16xf32>
    %135 = vector.extract_strided_slice %21 {offsets = [1, 2, 0], sizes = [1, 1, 16], strides = [1, 1, 1]} : vector<7x7x16xf32> to vector<1x1x16xf32>
    %136 = vector.shape_cast %135 : vector<1x1x16xf32> to vector<16xf32>
    %137 = vector.shape_cast %136 : vector<16xf32> to vector<1x1x16xf32>
    %138 = vector.broadcast %137 : vector<1x1x16xf32> to vector<8x16x16xf32>
    %139 = arith.mulf %134, %138 : vector<8x16x16xf32>
    %140 = arith.addf %133, %139 : vector<8x16x16xf32>
    %141 = vector.extract_strided_slice %126 {offsets = [2, 0, 0], sizes = [8, 16, 16], strides = [1, 1, 1]} : vector<14x16x16xf32> to vector<8x16x16xf32>
    %142 = vector.extract_strided_slice %21 {offsets = [2, 2, 0], sizes = [1, 1, 16], strides = [1, 1, 1]} : vector<7x7x16xf32> to vector<1x1x16xf32>
    %143 = vector.shape_cast %142 : vector<1x1x16xf32> to vector<16xf32>
    %144 = vector.shape_cast %143 : vector<16xf32> to vector<1x1x16xf32>
    %145 = vector.broadcast %144 : vector<1x1x16xf32> to vector<8x16x16xf32>
    %146 = arith.mulf %141, %145 : vector<8x16x16xf32>
    %147 = arith.addf %140, %146 : vector<8x16x16xf32>
    %148 = vector.extract_strided_slice %126 {offsets = [3, 0, 0], sizes = [8, 16, 16], strides = [1, 1, 1]} : vector<14x16x16xf32> to vector<8x16x16xf32>
    %149 = vector.extract_strided_slice %21 {offsets = [3, 2, 0], sizes = [1, 1, 16], strides = [1, 1, 1]} : vector<7x7x16xf32> to vector<1x1x16xf32>
    %150 = vector.shape_cast %149 : vector<1x1x16xf32> to vector<16xf32>
    %151 = vector.shape_cast %150 : vector<16xf32> to vector<1x1x16xf32>
    %152 = vector.broadcast %151 : vector<1x1x16xf32> to vector<8x16x16xf32>
    %153 = arith.mulf %148, %152 : vector<8x16x16xf32>
    %154 = arith.addf %147, %153 : vector<8x16x16xf32>
    %155 = vector.extract_strided_slice %126 {offsets = [4, 0, 0], sizes = [8, 16, 16], strides = [1, 1, 1]} : vector<14x16x16xf32> to vector<8x16x16xf32>
    %156 = vector.extract_strided_slice %21 {offsets = [4, 2, 0], sizes = [1, 1, 16], strides = [1, 1, 1]} : vector<7x7x16xf32> to vector<1x1x16xf32>
    %157 = vector.shape_cast %156 : vector<1x1x16xf32> to vector<16xf32>
    %158 = vector.shape_cast %157 : vector<16xf32> to vector<1x1x16xf32>
    %159 = vector.broadcast %158 : vector<1x1x16xf32> to vector<8x16x16xf32>
    %160 = arith.mulf %155, %159 : vector<8x16x16xf32>
    %161 = arith.addf %154, %160 : vector<8x16x16xf32>
    %162 = vector.extract_strided_slice %126 {offsets = [5, 0, 0], sizes = [8, 16, 16], strides = [1, 1, 1]} : vector<14x16x16xf32> to vector<8x16x16xf32>
    %163 = vector.extract_strided_slice %21 {offsets = [5, 2, 0], sizes = [1, 1, 16], strides = [1, 1, 1]} : vector<7x7x16xf32> to vector<1x1x16xf32>
    %164 = vector.shape_cast %163 : vector<1x1x16xf32> to vector<16xf32>
    %165 = vector.shape_cast %164 : vector<16xf32> to vector<1x1x16xf32>
    %166 = vector.broadcast %165 : vector<1x1x16xf32> to vector<8x16x16xf32>
    %167 = arith.mulf %162, %166 : vector<8x16x16xf32>
    %168 = arith.addf %161, %167 : vector<8x16x16xf32>
    %169 = vector.extract_strided_slice %126 {offsets = [6, 0, 0], sizes = [8, 16, 16], strides = [1, 1, 1]} : vector<14x16x16xf32> to vector<8x16x16xf32>
    %170 = vector.extract_strided_slice %21 {offsets = [6, 2, 0], sizes = [1, 1, 16], strides = [1, 1, 1]} : vector<7x7x16xf32> to vector<1x1x16xf32>
    %171 = vector.shape_cast %170 : vector<1x1x16xf32> to vector<16xf32>
    %172 = vector.shape_cast %171 : vector<16xf32> to vector<1x1x16xf32>
    %173 = vector.broadcast %172 : vector<1x1x16xf32> to vector<8x16x16xf32>
    %174 = arith.mulf %169, %173 : vector<8x16x16xf32>
    %175 = arith.addf %168, %174 : vector<8x16x16xf32>
    %c0_26 = arith.constant 0 : index
    %c8_27 = arith.constant 8 : index
    %c0_28 = arith.constant 0 : index
    %176 = vector.load %arg12[%c0_26, %c8_27, %c0_28] : memref<14x27x16xf32, #tpu.memory_space<vmem>>, vector<14x16x16xf32>
    %177 = vector.extract_strided_slice %176 {offsets = [0, 0, 0], sizes = [8, 16, 16], strides = [1, 1, 1]} : vector<14x16x16xf32> to vector<8x16x16xf32>
    %178 = vector.extract_strided_slice %21 {offsets = [0, 3, 0], sizes = [1, 1, 16], strides = [1, 1, 1]} : vector<7x7x16xf32> to vector<1x1x16xf32>
    %179 = vector.shape_cast %178 : vector<1x1x16xf32> to vector<16xf32>
    %180 = vector.shape_cast %179 : vector<16xf32> to vector<1x1x16xf32>
    %181 = vector.broadcast %180 : vector<1x1x16xf32> to vector<8x16x16xf32>
    %182 = arith.mulf %177, %181 : vector<8x16x16xf32>
    %183 = arith.addf %175, %182 : vector<8x16x16xf32>
    %184 = vector.extract_strided_slice %176 {offsets = [1, 0, 0], sizes = [8, 16, 16], strides = [1, 1, 1]} : vector<14x16x16xf32> to vector<8x16x16xf32>
    %185 = vector.extract_strided_slice %21 {offsets = [1, 3, 0], sizes = [1, 1, 16], strides = [1, 1, 1]} : vector<7x7x16xf32> to vector<1x1x16xf32>
    %186 = vector.shape_cast %185 : vector<1x1x16xf32> to vector<16xf32>
    %187 = vector.shape_cast %186 : vector<16xf32> to vector<1x1x16xf32>
    %188 = vector.broadcast %187 : vector<1x1x16xf32> to vector<8x16x16xf32>
    %189 = arith.mulf %184, %188 : vector<8x16x16xf32>
    %190 = arith.addf %183, %189 : vector<8x16x16xf32>
    %191 = vector.extract_strided_slice %176 {offsets = [2, 0, 0], sizes = [8, 16, 16], strides = [1, 1, 1]} : vector<14x16x16xf32> to vector<8x16x16xf32>
    %192 = vector.extract_strided_slice %21 {offsets = [2, 3, 0], sizes = [1, 1, 16], strides = [1, 1, 1]} : vector<7x7x16xf32> to vector<1x1x16xf32>
    %193 = vector.shape_cast %192 : vector<1x1x16xf32> to vector<16xf32>
    %194 = vector.shape_cast %193 : vector<16xf32> to vector<1x1x16xf32>
    %195 = vector.broadcast %194 : vector<1x1x16xf32> to vector<8x16x16xf32>
    %196 = arith.mulf %191, %195 : vector<8x16x16xf32>
    %197 = arith.addf %190, %196 : vector<8x16x16xf32>
    %198 = vector.extract_strided_slice %176 {offsets = [3, 0, 0], sizes = [8, 16, 16], strides = [1, 1, 1]} : vector<14x16x16xf32> to vector<8x16x16xf32>
    %199 = vector.extract_strided_slice %21 {offsets = [3, 3, 0], sizes = [1, 1, 16], strides = [1, 1, 1]} : vector<7x7x16xf32> to vector<1x1x16xf32>
    %200 = vector.shape_cast %199 : vector<1x1x16xf32> to vector<16xf32>
    %201 = vector.shape_cast %200 : vector<16xf32> to vector<1x1x16xf32>
    %202 = vector.broadcast %201 : vector<1x1x16xf32> to vector<8x16x16xf32>
    %203 = arith.mulf %198, %202 : vector<8x16x16xf32>
    %204 = arith.addf %197, %203 : vector<8x16x16xf32>
    %205 = vector.extract_strided_slice %176 {offsets = [4, 0, 0], sizes = [8, 16, 16], strides = [1, 1, 1]} : vector<14x16x16xf32> to vector<8x16x16xf32>
    %206 = vector.extract_strided_slice %21 {offsets = [4, 3, 0], sizes = [1, 1, 16], strides = [1, 1, 1]} : vector<7x7x16xf32> to vector<1x1x16xf32>
    %207 = vector.shape_cast %206 : vector<1x1x16xf32> to vector<16xf32>
    %208 = vector.shape_cast %207 : vector<16xf32> to vector<1x1x16xf32>
    %209 = vector.broadcast %208 : vector<1x1x16xf32> to vector<8x16x16xf32>
    %210 = arith.mulf %205, %209 : vector<8x16x16xf32>
    %211 = arith.addf %204, %210 : vector<8x16x16xf32>
    %212 = vector.extract_strided_slice %176 {offsets = [5, 0, 0], sizes = [8, 16, 16], strides = [1, 1, 1]} : vector<14x16x16xf32> to vector<8x16x16xf32>
    %213 = vector.extract_strided_slice %21 {offsets = [5, 3, 0], sizes = [1, 1, 16], strides = [1, 1, 1]} : vector<7x7x16xf32> to vector<1x1x16xf32>
    %214 = vector.shape_cast %213 : vector<1x1x16xf32> to vector<16xf32>
    %215 = vector.shape_cast %214 : vector<16xf32> to vector<1x1x16xf32>
    %216 = vector.broadcast %215 : vector<1x1x16xf32> to vector<8x16x16xf32>
    %217 = arith.mulf %212, %216 : vector<8x16x16xf32>
    %218 = arith.addf %211, %217 : vector<8x16x16xf32>
    %219 = vector.extract_strided_slice %176 {offsets = [6, 0, 0], sizes = [8, 16, 16], strides = [1, 1, 1]} : vector<14x16x16xf32> to vector<8x16x16xf32>
    %220 = vector.extract_strided_slice %21 {offsets = [6, 3, 0], sizes = [1, 1, 16], strides = [1, 1, 1]} : vector<7x7x16xf32> to vector<1x1x16xf32>
    %221 = vector.shape_cast %220 : vector<1x1x16xf32> to vector<16xf32>
    %222 = vector.shape_cast %221 : vector<16xf32> to vector<1x1x16xf32>
    %223 = vector.broadcast %222 : vector<1x1x16xf32> to vector<8x16x16xf32>
    %224 = arith.mulf %219, %223 : vector<8x16x16xf32>
    %225 = arith.addf %218, %224 : vector<8x16x16xf32>
    %c0_29 = arith.constant 0 : index
    %c9 = arith.constant 9 : index
    %c0_30 = arith.constant 0 : index
    %226 = vector.load %arg12[%c0_29, %c9, %c0_30] : memref<14x27x16xf32, #tpu.memory_space<vmem>>, vector<14x16x16xf32>
    %227 = vector.extract_strided_slice %226 {offsets = [0, 0, 0], sizes = [8, 16, 16], strides = [1, 1, 1]} : vector<14x16x16xf32> to vector<8x16x16xf32>
    %228 = vector.extract_strided_slice %21 {offsets = [0, 4, 0], sizes = [1, 1, 16], strides = [1, 1, 1]} : vector<7x7x16xf32> to vector<1x1x16xf32>
    %229 = vector.shape_cast %228 : vector<1x1x16xf32> to vector<16xf32>
    %230 = vector.shape_cast %229 : vector<16xf32> to vector<1x1x16xf32>
    %231 = vector.broadcast %230 : vector<1x1x16xf32> to vector<8x16x16xf32>
    %232 = arith.mulf %227, %231 : vector<8x16x16xf32>
    %233 = arith.addf %225, %232 : vector<8x16x16xf32>
    %234 = vector.extract_strided_slice %226 {offsets = [1, 0, 0], sizes = [8, 16, 16], strides = [1, 1, 1]} : vector<14x16x16xf32> to vector<8x16x16xf32>
    %235 = vector.extract_strided_slice %21 {offsets = [1, 4, 0], sizes = [1, 1, 16], strides = [1, 1, 1]} : vector<7x7x16xf32> to vector<1x1x16xf32>
    %236 = vector.shape_cast %235 : vector<1x1x16xf32> to vector<16xf32>
    %237 = vector.shape_cast %236 : vector<16xf32> to vector<1x1x16xf32>
    %238 = vector.broadcast %237 : vector<1x1x16xf32> to vector<8x16x16xf32>
    %239 = arith.mulf %234, %238 : vector<8x16x16xf32>
    %240 = arith.addf %233, %239 : vector<8x16x16xf32>
    %241 = vector.extract_strided_slice %226 {offsets = [2, 0, 0], sizes = [8, 16, 16], strides = [1, 1, 1]} : vector<14x16x16xf32> to vector<8x16x16xf32>
    %242 = vector.extract_strided_slice %21 {offsets = [2, 4, 0], sizes = [1, 1, 16], strides = [1, 1, 1]} : vector<7x7x16xf32> to vector<1x1x16xf32>
    %243 = vector.shape_cast %242 : vector<1x1x16xf32> to vector<16xf32>
    %244 = vector.shape_cast %243 : vector<16xf32> to vector<1x1x16xf32>
    %245 = vector.broadcast %244 : vector<1x1x16xf32> to vector<8x16x16xf32>
    %246 = arith.mulf %241, %245 : vector<8x16x16xf32>
    %247 = arith.addf %240, %246 : vector<8x16x16xf32>
    %248 = vector.extract_strided_slice %226 {offsets = [3, 0, 0], sizes = [8, 16, 16], strides = [1, 1, 1]} : vector<14x16x16xf32> to vector<8x16x16xf32>
    %249 = vector.extract_strided_slice %21 {offsets = [3, 4, 0], sizes = [1, 1, 16], strides = [1, 1, 1]} : vector<7x7x16xf32> to vector<1x1x16xf32>
    %250 = vector.shape_cast %249 : vector<1x1x16xf32> to vector<16xf32>
    %251 = vector.shape_cast %250 : vector<16xf32> to vector<1x1x16xf32>
    %252 = vector.broadcast %251 : vector<1x1x16xf32> to vector<8x16x16xf32>
    %253 = arith.mulf %248, %252 : vector<8x16x16xf32>
    %254 = arith.addf %247, %253 : vector<8x16x16xf32>
    %255 = vector.extract_strided_slice %226 {offsets = [4, 0, 0], sizes = [8, 16, 16], strides = [1, 1, 1]} : vector<14x16x16xf32> to vector<8x16x16xf32>
    %256 = vector.extract_strided_slice %21 {offsets = [4, 4, 0], sizes = [1, 1, 16], strides = [1, 1, 1]} : vector<7x7x16xf32> to vector<1x1x16xf32>
    %257 = vector.shape_cast %256 : vector<1x1x16xf32> to vector<16xf32>
    %258 = vector.shape_cast %257 : vector<16xf32> to vector<1x1x16xf32>
    %259 = vector.broadcast %258 : vector<1x1x16xf32> to vector<8x16x16xf32>
    %260 = arith.mulf %255, %259 : vector<8x16x16xf32>
    %261 = arith.addf %254, %260 : vector<8x16x16xf32>
    %262 = vector.extract_strided_slice %226 {offsets = [5, 0, 0], sizes = [8, 16, 16], strides = [1, 1, 1]} : vector<14x16x16xf32> to vector<8x16x16xf32>
    %263 = vector.extract_strided_slice %21 {offsets = [5, 4, 0], sizes = [1, 1, 16], strides = [1, 1, 1]} : vector<7x7x16xf32> to vector<1x1x16xf32>
    %264 = vector.shape_cast %263 : vector<1x1x16xf32> to vector<16xf32>
    %265 = vector.shape_cast %264 : vector<16xf32> to vector<1x1x16xf32>
    %266 = vector.broadcast %265 : vector<1x1x16xf32> to vector<8x16x16xf32>
    %267 = arith.mulf %262, %266 : vector<8x16x16xf32>
    %268 = arith.addf %261, %267 : vector<8x16x16xf32>
    %269 = vector.extract_strided_slice %226 {offsets = [6, 0, 0], sizes = [8, 16, 16], strides = [1, 1, 1]} : vector<14x16x16xf32> to vector<8x16x16xf32>
    %270 = vector.extract_strided_slice %21 {offsets = [6, 4, 0], sizes = [1, 1, 16], strides = [1, 1, 1]} : vector<7x7x16xf32> to vector<1x1x16xf32>
    %271 = vector.shape_cast %270 : vector<1x1x16xf32> to vector<16xf32>
    %272 = vector.shape_cast %271 : vector<16xf32> to vector<1x1x16xf32>
    %273 = vector.broadcast %272 : vector<1x1x16xf32> to vector<8x16x16xf32>
    %274 = arith.mulf %269, %273 : vector<8x16x16xf32>
    %275 = arith.addf %268, %274 : vector<8x16x16xf32>
    %c0_31 = arith.constant 0 : index
    %c10 = arith.constant 10 : index
    %c0_32 = arith.constant 0 : index
    %276 = vector.load %arg12[%c0_31, %c10, %c0_32] : memref<14x27x16xf32, #tpu.memory_space<vmem>>, vector<14x16x16xf32>
    %277 = vector.extract_strided_slice %276 {offsets = [0, 0, 0], sizes = [8, 16, 16], strides = [1, 1, 1]} : vector<14x16x16xf32> to vector<8x16x16xf32>
    %278 = vector.extract_strided_slice %21 {offsets = [0, 5, 0], sizes = [1, 1, 16], strides = [1, 1, 1]} : vector<7x7x16xf32> to vector<1x1x16xf32>
    %279 = vector.shape_cast %278 : vector<1x1x16xf32> to vector<16xf32>
    %280 = vector.shape_cast %279 : vector<16xf32> to vector<1x1x16xf32>
    %281 = vector.broadcast %280 : vector<1x1x16xf32> to vector<8x16x16xf32>
    %282 = arith.mulf %277, %281 : vector<8x16x16xf32>
    %283 = arith.addf %275, %282 : vector<8x16x16xf32>
    %284 = vector.extract_strided_slice %276 {offsets = [1, 0, 0], sizes = [8, 16, 16], strides = [1, 1, 1]} : vector<14x16x16xf32> to vector<8x16x16xf32>
    %285 = vector.extract_strided_slice %21 {offsets = [1, 5, 0], sizes = [1, 1, 16], strides = [1, 1, 1]} : vector<7x7x16xf32> to vector<1x1x16xf32>
    %286 = vector.shape_cast %285 : vector<1x1x16xf32> to vector<16xf32>
    %287 = vector.shape_cast %286 : vector<16xf32> to vector<1x1x16xf32>
    %288 = vector.broadcast %287 : vector<1x1x16xf32> to vector<8x16x16xf32>
    %289 = arith.mulf %284, %288 : vector<8x16x16xf32>
    %290 = arith.addf %283, %289 : vector<8x16x16xf32>
    %291 = vector.extract_strided_slice %276 {offsets = [2, 0, 0], sizes = [8, 16, 16], strides = [1, 1, 1]} : vector<14x16x16xf32> to vector<8x16x16xf32>
    %292 = vector.extract_strided_slice %21 {offsets = [2, 5, 0], sizes = [1, 1, 16], strides = [1, 1, 1]} : vector<7x7x16xf32> to vector<1x1x16xf32>
    %293 = vector.shape_cast %292 : vector<1x1x16xf32> to vector<16xf32>
    %294 = vector.shape_cast %293 : vector<16xf32> to vector<1x1x16xf32>
    %295 = vector.broadcast %294 : vector<1x1x16xf32> to vector<8x16x16xf32>
    %296 = arith.mulf %291, %295 : vector<8x16x16xf32>
    %297 = arith.addf %290, %296 : vector<8x16x16xf32>
    %298 = vector.extract_strided_slice %276 {offsets = [3, 0, 0], sizes = [8, 16, 16], strides = [1, 1, 1]} : vector<14x16x16xf32> to vector<8x16x16xf32>
    %299 = vector.extract_strided_slice %21 {offsets = [3, 5, 0], sizes = [1, 1, 16], strides = [1, 1, 1]} : vector<7x7x16xf32> to vector<1x1x16xf32>
    %300 = vector.shape_cast %299 : vector<1x1x16xf32> to vector<16xf32>
    %301 = vector.shape_cast %300 : vector<16xf32> to vector<1x1x16xf32>
    %302 = vector.broadcast %301 : vector<1x1x16xf32> to vector<8x16x16xf32>
    %303 = arith.mulf %298, %302 : vector<8x16x16xf32>
    %304 = arith.addf %297, %303 : vector<8x16x16xf32>
    %305 = vector.extract_strided_slice %276 {offsets = [4, 0, 0], sizes = [8, 16, 16], strides = [1, 1, 1]} : vector<14x16x16xf32> to vector<8x16x16xf32>
    %306 = vector.extract_strided_slice %21 {offsets = [4, 5, 0], sizes = [1, 1, 16], strides = [1, 1, 1]} : vector<7x7x16xf32> to vector<1x1x16xf32>
    %307 = vector.shape_cast %306 : vector<1x1x16xf32> to vector<16xf32>
    %308 = vector.shape_cast %307 : vector<16xf32> to vector<1x1x16xf32>
    %309 = vector.broadcast %308 : vector<1x1x16xf32> to vector<8x16x16xf32>
    %310 = arith.mulf %305, %309 : vector<8x16x16xf32>
    %311 = arith.addf %304, %310 : vector<8x16x16xf32>
    %312 = vector.extract_strided_slice %276 {offsets = [5, 0, 0], sizes = [8, 16, 16], strides = [1, 1, 1]} : vector<14x16x16xf32> to vector<8x16x16xf32>
    %313 = vector.extract_strided_slice %21 {offsets = [5, 5, 0], sizes = [1, 1, 16], strides = [1, 1, 1]} : vector<7x7x16xf32> to vector<1x1x16xf32>
    %314 = vector.shape_cast %313 : vector<1x1x16xf32> to vector<16xf32>
    %315 = vector.shape_cast %314 : vector<16xf32> to vector<1x1x16xf32>
    %316 = vector.broadcast %315 : vector<1x1x16xf32> to vector<8x16x16xf32>
    %317 = arith.mulf %312, %316 : vector<8x16x16xf32>
    %318 = arith.addf %311, %317 : vector<8x16x16xf32>
    %319 = vector.extract_strided_slice %276 {offsets = [6, 0, 0], sizes = [8, 16, 16], strides = [1, 1, 1]} : vector<14x16x16xf32> to vector<8x16x16xf32>
    %320 = vector.extract_strided_slice %21 {offsets = [6, 5, 0], sizes = [1, 1, 16], strides = [1, 1, 1]} : vector<7x7x16xf32> to vector<1x1x16xf32>
    %321 = vector.shape_cast %320 : vector<1x1x16xf32> to vector<16xf32>
    %322 = vector.shape_cast %321 : vector<16xf32> to vector<1x1x16xf32>
    %323 = vector.broadcast %322 : vector<1x1x16xf32> to vector<8x16x16xf32>
    %324 = arith.mulf %319, %323 : vector<8x16x16xf32>
    %325 = arith.addf %318, %324 : vector<8x16x16xf32>
    %c0_33 = arith.constant 0 : index
    %c11 = arith.constant 11 : index
    %c0_34 = arith.constant 0 : index
    %326 = vector.load %arg12[%c0_33, %c11, %c0_34] : memref<14x27x16xf32, #tpu.memory_space<vmem>>, vector<14x16x16xf32>
    %327 = vector.extract_strided_slice %326 {offsets = [0, 0, 0], sizes = [8, 16, 16], strides = [1, 1, 1]} : vector<14x16x16xf32> to vector<8x16x16xf32>
    %328 = vector.extract_strided_slice %21 {offsets = [0, 6, 0], sizes = [1, 1, 16], strides = [1, 1, 1]} : vector<7x7x16xf32> to vector<1x1x16xf32>
    %329 = vector.shape_cast %328 : vector<1x1x16xf32> to vector<16xf32>
    %330 = vector.shape_cast %329 : vector<16xf32> to vector<1x1x16xf32>
    %331 = vector.broadcast %330 : vector<1x1x16xf32> to vector<8x16x16xf32>
    %332 = arith.mulf %327, %331 : vector<8x16x16xf32>
    %333 = arith.addf %325, %332 : vector<8x16x16xf32>
    %334 = vector.extract_strided_slice %326 {offsets = [1, 0, 0], sizes = [8, 16, 16], strides = [1, 1, 1]} : vector<14x16x16xf32> to vector<8x16x16xf32>
    %335 = vector.extract_strided_slice %21 {offsets = [1, 6, 0], sizes = [1, 1, 16], strides = [1, 1, 1]} : vector<7x7x16xf32> to vector<1x1x16xf32>
    %336 = vector.shape_cast %335 : vector<1x1x16xf32> to vector<16xf32>
    %337 = vector.shape_cast %336 : vector<16xf32> to vector<1x1x16xf32>
    %338 = vector.broadcast %337 : vector<1x1x16xf32> to vector<8x16x16xf32>
    %339 = arith.mulf %334, %338 : vector<8x16x16xf32>
    %340 = arith.addf %333, %339 : vector<8x16x16xf32>
    %341 = vector.extract_strided_slice %326 {offsets = [2, 0, 0], sizes = [8, 16, 16], strides = [1, 1, 1]} : vector<14x16x16xf32> to vector<8x16x16xf32>
    %342 = vector.extract_strided_slice %21 {offsets = [2, 6, 0], sizes = [1, 1, 16], strides = [1, 1, 1]} : vector<7x7x16xf32> to vector<1x1x16xf32>
    %343 = vector.shape_cast %342 : vector<1x1x16xf32> to vector<16xf32>
    %344 = vector.shape_cast %343 : vector<16xf32> to vector<1x1x16xf32>
    %345 = vector.broadcast %344 : vector<1x1x16xf32> to vector<8x16x16xf32>
    %346 = arith.mulf %341, %345 : vector<8x16x16xf32>
    %347 = arith.addf %340, %346 : vector<8x16x16xf32>
    %348 = vector.extract_strided_slice %326 {offsets = [3, 0, 0], sizes = [8, 16, 16], strides = [1, 1, 1]} : vector<14x16x16xf32> to vector<8x16x16xf32>
    %349 = vector.extract_strided_slice %21 {offsets = [3, 6, 0], sizes = [1, 1, 16], strides = [1, 1, 1]} : vector<7x7x16xf32> to vector<1x1x16xf32>
    %350 = vector.shape_cast %349 : vector<1x1x16xf32> to vector<16xf32>
    %351 = vector.shape_cast %350 : vector<16xf32> to vector<1x1x16xf32>
    %352 = vector.broadcast %351 : vector<1x1x16xf32> to vector<8x16x16xf32>
    %353 = arith.mulf %348, %352 : vector<8x16x16xf32>
    %354 = arith.addf %347, %353 : vector<8x16x16xf32>
    %355 = vector.extract_strided_slice %326 {offsets = [4, 0, 0], sizes = [8, 16, 16], strides = [1, 1, 1]} : vector<14x16x16xf32> to vector<8x16x16xf32>
    %356 = vector.extract_strided_slice %21 {offsets = [4, 6, 0], sizes = [1, 1, 16], strides = [1, 1, 1]} : vector<7x7x16xf32> to vector<1x1x16xf32>
    %357 = vector.shape_cast %356 : vector<1x1x16xf32> to vector<16xf32>
    %358 = vector.shape_cast %357 : vector<16xf32> to vector<1x1x16xf32>
    %359 = vector.broadcast %358 : vector<1x1x16xf32> to vector<8x16x16xf32>
    %360 = arith.mulf %355, %359 : vector<8x16x16xf32>
    %361 = arith.addf %354, %360 : vector<8x16x16xf32>
    %362 = vector.extract_strided_slice %326 {offsets = [5, 0, 0], sizes = [8, 16, 16], strides = [1, 1, 1]} : vector<14x16x16xf32> to vector<8x16x16xf32>
    %363 = vector.extract_strided_slice %21 {offsets = [5, 6, 0], sizes = [1, 1, 16], strides = [1, 1, 1]} : vector<7x7x16xf32> to vector<1x1x16xf32>
    %364 = vector.shape_cast %363 : vector<1x1x16xf32> to vector<16xf32>
    %365 = vector.shape_cast %364 : vector<16xf32> to vector<1x1x16xf32>
    %366 = vector.broadcast %365 : vector<1x1x16xf32> to vector<8x16x16xf32>
    %367 = arith.mulf %362, %366 : vector<8x16x16xf32>
    %368 = arith.addf %361, %367 : vector<8x16x16xf32>
    %369 = vector.extract_strided_slice %326 {offsets = [6, 0, 0], sizes = [8, 16, 16], strides = [1, 1, 1]} : vector<14x16x16xf32> to vector<8x16x16xf32>
    %370 = vector.extract_strided_slice %21 {offsets = [6, 6, 0], sizes = [1, 1, 16], strides = [1, 1, 1]} : vector<7x7x16xf32> to vector<1x1x16xf32>
    %371 = vector.shape_cast %370 : vector<1x1x16xf32> to vector<16xf32>
    %372 = vector.shape_cast %371 : vector<16xf32> to vector<1x1x16xf32>
    %373 = vector.broadcast %372 : vector<1x1x16xf32> to vector<8x16x16xf32>
    %374 = arith.mulf %369, %373 : vector<8x16x16xf32>
    %375 = arith.addf %368, %374 : vector<8x16x16xf32>
    %cst_35 = arith.constant dense<0.000000e+00> : vector<8x16xf32>
    %376 = vector.multi_reduction <add>, %375, %cst_35 [2] : vector<8x16x16xf32> to vector<8x16xf32>
    %377 = vector.shape_cast %376 : vector<8x16xf32> to vector<8x16x1xf32>
    %cst_36 = arith.constant 6.250000e-02 : f32
    %378 = vector.broadcast %cst_36 : f32 to vector<8x16x1xf32>
    %379 = arith.mulf %377, %378 : vector<8x16x1xf32>
    %380 = vector.broadcast %379 : vector<8x16x1xf32> to vector<8x16x16xf32>
    %381 = arith.subf %375, %380 : vector<8x16x16xf32>
    %382 = arith.mulf %381, %381 : vector<8x16x16xf32>
    %cst_37 = arith.constant dense<0.000000e+00> : vector<8x16xf32>
    %383 = vector.multi_reduction <add>, %382, %cst_37 [2] : vector<8x16x16xf32> to vector<8x16xf32>
    %384 = vector.shape_cast %383 : vector<8x16xf32> to vector<8x16x1xf32>
    %cst_38 = arith.constant 6.250000e-02 : f32
    %385 = vector.broadcast %cst_38 : f32 to vector<8x16x1xf32>
    %386 = arith.mulf %384, %385 : vector<8x16x1xf32>
    %cst_39 = arith.constant 9.99999997E-7 : f32
    %387 = vector.broadcast %cst_39 : f32 to vector<8x16x1xf32>
    %388 = arith.addf %386, %387 : vector<8x16x1xf32>
    %389 = math.rsqrt %388 : vector<8x16x1xf32>
    %390 = vector.broadcast %389 : vector<8x16x1xf32> to vector<8x16x16xf32>
    %391 = arith.mulf %381, %390 : vector<8x16x16xf32>
    %c0_40 = arith.constant 0 : index
    %c0_41 = arith.constant 0 : index
    %392 = vector.load %arg5[%c0_40, %c0_41] : memref<1x16xf32, #tpu.memory_space<vmem>>, vector<1x16xf32>
    %393 = vector.shape_cast %392 : vector<1x16xf32> to vector<16xf32>
    %394 = vector.shape_cast %393 : vector<16xf32> to vector<1x1x16xf32>
    %395 = vector.broadcast %394 : vector<1x1x16xf32> to vector<8x16x16xf32>
    %396 = arith.mulf %391, %395 : vector<8x16x16xf32>
    %c0_42 = arith.constant 0 : index
    %c0_43 = arith.constant 0 : index
    %397 = vector.load %arg6[%c0_42, %c0_43] : memref<1x16xf32, #tpu.memory_space<vmem>>, vector<1x16xf32>
    %398 = vector.shape_cast %397 : vector<1x16xf32> to vector<16xf32>
    %399 = vector.shape_cast %398 : vector<16xf32> to vector<1x1x16xf32>
    %400 = vector.broadcast %399 : vector<1x1x16xf32> to vector<8x16x16xf32>
    %401 = arith.addf %396, %400 : vector<8x16x16xf32>
    %402 = vector.shape_cast %401 : vector<8x16x16xf32> to vector<128x16xf32>
    %c0_44 = arith.constant 0 : index
    %c0_45 = arith.constant 0 : index
    %403 = vector.load %arg7[%c0_44, %c0_45] : memref<16x64xf32, #tpu.memory_space<vmem>>, vector<16x64xf32>
    %cst_46 = arith.constant dense<0.000000e+00> : vector<128x64xf32>
    %404 = tpu.matmul %402, %403, %cst_46 {dimension_numbers = #tpu.dot_dimension_numbers<[1], [0], [0], [1], [0, 0, 1, 1], [], []>} : vector<128x16xf32>, vector<16x64xf32>, vector<128x64xf32> -> vector<128x64xf32>
    %c0_47 = arith.constant 0 : index
    %c0_48 = arith.constant 0 : index
    %405 = vector.load %arg8[%c0_47, %c0_48] : memref<1x64xf32, #tpu.memory_space<vmem>>, vector<1x64xf32>
    %406 = vector.shape_cast %405 : vector<1x64xf32> to vector<64xf32>
    %407 = vector.shape_cast %406 : vector<64xf32> to vector<1x64xf32>
    %408 = vector.broadcast %407 : vector<1x64xf32> to vector<128x64xf32>
    %409 = arith.addf %404, %408 : vector<128x64xf32>
    %cst_49 = arith.constant 5.000000e-01 : f32
    %410 = vector.broadcast %cst_49 : f32 to vector<128x64xf32>
    %411 = arith.mulf %410, %409 : vector<128x64xf32>
    %cst_50 = arith.constant 0.707106769 : f32
    %412 = vector.broadcast %cst_50 : f32 to vector<128x64xf32>
    %413 = arith.mulf %409, %412 : vector<128x64xf32>
    %414 = math.erf %413 : vector<128x64xf32>
    %cst_51 = arith.constant 1.000000e+00 : f32
    %415 = vector.broadcast %cst_51 : f32 to vector<128x64xf32>
    %416 = arith.addf %415, %414 : vector<128x64xf32>
    %417 = arith.mulf %411, %416 : vector<128x64xf32>
    %c0_52 = arith.constant 0 : index
    %c0_53 = arith.constant 0 : index
    %418 = vector.load %arg9[%c0_52, %c0_53] : memref<64x16xf32, #tpu.memory_space<vmem>>, vector<64x16xf32>
    %cst_54 = arith.constant dense<0.000000e+00> : vector<128x16xf32>
    %419 = tpu.matmul %417, %418, %cst_54 {dimension_numbers = #tpu.dot_dimension_numbers<[1], [0], [0], [1], [0, 0, 1, 1], [], []>} : vector<128x64xf32>, vector<64x16xf32>, vector<128x16xf32> -> vector<128x16xf32>
    %c0_55 = arith.constant 0 : index
    %c0_56 = arith.constant 0 : index
    %420 = vector.load %arg10[%c0_55, %c0_56] : memref<1x16xf32, #tpu.memory_space<vmem>>, vector<1x16xf32>
    %421 = vector.shape_cast %420 : vector<1x16xf32> to vector<16xf32>
    %422 = vector.shape_cast %421 : vector<16xf32> to vector<1x16xf32>
    %423 = vector.broadcast %422 : vector<1x16xf32> to vector<128x16xf32>
    %424 = arith.addf %419, %423 : vector<128x16xf32>
    %425 = vector.shape_cast %424 : vector<128x16xf32> to vector<8x16x16xf32>
    %c3_57 = arith.constant 3 : index
    %c8_58 = arith.constant 8 : index
    %c0_59 = arith.constant 0 : index
    %426 = vector.load %arg12[%c3_57, %c8_58, %c0_59] : memref<14x27x16xf32, #tpu.memory_space<vmem>>, vector<8x16x16xf32>
    %427 = arith.addf %426, %425 : vector<8x16x16xf32>
    %428 = vector.shape_cast %427 : vector<8x16x16xf32> to vector<1x8x16x16xf32>
    %c0_60 = arith.constant 0 : index
    %c0_61 = arith.constant 0 : index
    %c0_62 = arith.constant 0 : index
    %c0_63 = arith.constant 0 : index
    %429 = vector.load %arg11[%c0_60, %c0_61, %c0_62, %c0_63] : memref<1x8x16x16xf32, #tpu.memory_space<vmem>>, vector<1x8x16x16xf32>
    tpu.vector_store %arg11[%c0_60, %c0_61, %c0_62, %c0_63], %428 {strides = array<i32>} : memref<1x8x16x16xf32, #tpu.memory_space<vmem>>, vector<1x8x16x16xf32>,
    return
  }
  func.func @transform_0(%arg0: i32, %arg1: i32) -> (i32, i32, i32, i32) {
    %c0_i32 = arith.constant 0 : i32
    %c0_i32_0 = arith.constant 0 : i32
    %c0_i32_1 = arith.constant 0 : i32
    %c0_i32_2 = arith.constant 0 : i32
    return %arg0, %c0_i32, %c0_i32_0, %c0_i32_1 : i32, i32, i32, i32
  }
  func.func @transform_1(%arg0: i32, %arg1: i32) -> (i32, i32, i32) {
    %c0_i32 = arith.constant 0 : i32
    %c0_i32_0 = arith.constant 0 : i32
    %c0_i32_1 = arith.constant 0 : i32
    %c0_i32_2 = arith.constant 0 : i32
    return %c0_i32, %c0_i32_0, %c0_i32_1 : i32, i32, i32
  }
  func.func @transform_2(%arg0: i32, %arg1: i32) -> (i32, i32) {
    %c0_i32 = arith.constant 0 : i32
    %c0_i32_0 = arith.constant 0 : i32
    %c0_i32_1 = arith.constant 0 : i32
    return %c0_i32, %c0_i32_0 : i32, i32
  }
  func.func @transform_3(%arg0: i32, %arg1: i32) -> (i32, i32) {
    %c0_i32 = arith.constant 0 : i32
    %c0_i32_0 = arith.constant 0 : i32
    %c0_i32_1 = arith.constant 0 : i32
    return %c0_i32, %c0_i32_0 : i32, i32
  }
  func.func @transform_4(%arg0: i32, %arg1: i32) -> (i32, i32) {
    %c0_i32 = arith.constant 0 : i32
    %c0_i32_0 = arith.constant 0 : i32
    %c0_i32_1 = arith.constant 0 : i32
    return %c0_i32, %c0_i32_0 : i32, i32
  }
  func.func @transform_5(%arg0: i32, %arg1: i32) -> (i32, i32) {
    %c0_i32 = arith.constant 0 : i32
    %c0_i32_0 = arith.constant 0 : i32
    %c0_i32_1 = arith.constant 0 : i32
    return %c0_i32, %c0_i32_0 : i32, i32
  }
  func.func @transform_6(%arg0: i32, %arg1: i32) -> (i32, i32) {
    %c0_i32 = arith.constant 0 : i32
    %c0_i32_0 = arith.constant 0 : i32
    %c0_i32_1 = arith.constant 0 : i32
    return %c0_i32, %c0_i32_0 : i32, i32
  }
  func.func @transform_7(%arg0: i32, %arg1: i32) -> (i32, i32) {
    %c0_i32 = arith.constant 0 : i32
    %c0_i32_0 = arith.constant 0 : i32
    %c0_i32_1 = arith.constant 0 : i32
    return %c0_i32, %c0_i32_0 : i32, i32
  }
  func.func @transform_8(%arg0: i32, %arg1: i32) -> (i32, i32) {
    %c0_i32 = arith.constant 0 : i32
    %c0_i32_0 = arith.constant 0 : i32
    %c0_i32_1 = arith.constant 0 : i32
    return %c0_i32, %c0_i32_0 : i32, i32
  }
  func.func @transform_9(%arg0: i32, %arg1: i32) -> (i32, i32, i32, i32) {
    %c0_i32 = arith.constant 0 : i32
    %c0_i32_0 = arith.constant 0 : i32
    %c0_i32_1 = arith.constant 0 : i32
    return %arg0, %arg1, %c0_i32, %c0_i32_0 : i32, i32, i32, i32
  }
}

</mosaic_0001>

<llo_original>
// kernel: tpu_custom_call.1
$region0: #{tpu_custom_call.1}
  #allocation0 [shape = 'u32[]', space=smem, size = 0x4, offset = 0x4, fixed_abs, tag = 'smem constant byte address 0x4 - core index']
  #allocation1 [shape = 'u32[72,128]{1,0:T(1,128)}', space=vmem, size = 0x9000, scoped, tag = 'internal scratch']
  #allocation2 [shape = 'f32[14,27,16]{2,1,0:T(8,128)}', space=vmem, size = 0x38000, scoped, tag = 'scratch operand']
  %s0 = inlined_call_operand.hbm [shape: f32[2,16,16,16], index: 0, kind: input, shape index: {}]
  %s1 = inlined_call_operand.vmem [shape: f32[7,7,16], index: 1, kind: input, shape index: {}]
  %s2 = inlined_call_operand.vmem [shape: f32[1,16], index: 2, kind: input, shape index: {}]
  %s3 = inlined_call_operand.vmem [shape: f32[1,16], index: 3, kind: input, shape index: {}]
  %s4 = inlined_call_operand.vmem [shape: f32[1,16], index: 4, kind: input, shape index: {}]
  %s5 = inlined_call_operand.vmem [shape: f32[16,64], index: 5, kind: input, shape index: {}]
  %s6 = inlined_call_operand.vmem [shape: f32[1,64], index: 6, kind: input, shape index: {}]
  %s7 = inlined_call_operand.vmem [shape: f32[64,16], index: 7, kind: input, shape index: {}]
  %s8 = inlined_call_operand.vmem [shape: f32[1,16], index: 8, kind: input, shape index: {}]
  %s9 = inlined_call_operand.hbm [shape: f32[2,16,16,16], index: 9, kind: output, shape index: {}]
  %s10 = sld [smem:[#allocation0]]
  $region89: #{tpu_custom_call.1} parent=0
    _
  %s12 = ssub.s32 1, %s10
  %s13 = scalar_select 0, %s12, %s10
  $region1: #{tpu_custom_call.1} parent=0
    #allocation3 [shape = 'u8[262144]{0}', space=vmem, size = 0x40000, scoped, tag = 'input window, operand 0']
    #allocation4 [shape = 's32[2]{0}', space=sflag, size = 0x8, scoped, tag = 'scoped memory for tpu_custom_call.1']
    #allocation5 [shape = 's32[2]{0}', space=sflag, size = 0x8, scoped, tag = 'scoped memory for tpu_custom_call.1']
    #allocation6 [shape = 'u8[131072]{0}', space=vmem, size = 0x20000, scoped, tag = 'output window, operand 0']
    %14 = vsyncpa [#allocation4], 0
    %s15 = scalar_lea.sflag [#allocation4], 1
    %16 = vsyncpa %s15, 0
    %17 = vsyncpa [#allocation5], 0
    %s18 = scalar_lea.sflag [#allocation5], 1
    %19 = vsyncpa %s18, 0
    loop: start=0, step=1, limit=6
    $region2: #{tpu_custom_call.1} parent=1 // loop_pre_header
      _
    $region3: #{tpu_custom_call.1} parent=1 // loop_header
      %s21 = sphi 0, %s25
      %p22 = scmp.ge.s32.totalorder %s21, 6
      %s28 = sphi 0, %s40
      %s29 = sphi 0, %s36
      %s30 = sphi 0, %s28
      %s31 = sphi 0, %s29
      %s32 = sphi 0, %s30
      %s33 = sphi 0, %s31
      %s43 = sphi 0, %s45
      %s46 = sphi 0, %s43
      %s47 = sphi 0, %s46
      %s63 = sphi 0, %s47
      %s67 = sphi 0, %s67
      %s69 = sphi 0, %s67
      %s70 = sphi 0, %s69
      %s84 = sphi 0, %s70
      %s88 = sphi 0, %s88
      %s90 = sphi 0, %s88
      %s91 = sphi 0, %s90
      %s105 = sphi 0, %s91
      %s109 = sphi 0, %s109
      %s111 = sphi 0, %s109
      %s112 = sphi 0, %s111
      %s126 = sphi 0, %s112
      %s130 = sphi 0, %s130
      %s132 = sphi 0, %s130
      %s133 = sphi 0, %s132
      %s147 = sphi 0, %s133
      %s151 = sphi 0, %s151
      %s153 = sphi 0, %s151
      %s154 = sphi 0, %s153
      %s168 = sphi 0, %s154
      %s172 = sphi 0, %s172
      %s174 = sphi 0, %s172
      %s175 = sphi 0, %s174
      %s189 = sphi 0, %s175
      %s193 = sphi 0, %s193
      %s195 = sphi 0, %s193
      %s196 = sphi 0, %s195
      %s210 = sphi 0, %s196
      %s214 = sphi 0, %s214
      %s216 = sphi 0, %s214
      %s217 = sphi 0, %s216
      %s231 = sphi 0, %s217
      %s239 = sphi 0, %s241
      %s242 = sphi 0, %s239
      %s243 = sphi 0, %s242
      %s259 = sphi 0, %s243
    $region4: #{tpu_custom_call.1} parent=1 // loop_header_branch
      %24 = sbr.rel (%p22) target = $region8
    $region5: #{tpu_custom_call.1} parent=1 // loop_body
      %s26 = ssub.s32 %s21, 1
      %s27 = ssub.s32 %s21, 2
      %s34 = sadd.s32 1, %s29
      %p35 = scmp.ge.s32.totalorder %s34, 2
      %s36 = scalar_select %p35, 0, %s34
      %s37 = sadd.s32 1, %s28
      %s38 = scalar_select %p35, %s37, %s28
      %p39 = scmp.ge.s32.totalorder %s38, 2
      %s40 = scalar_select %p39, 0, %s38
      %s41 = ssub.s32 %s28, %s40
      %p42 = scmp.eq.s32.totalorder %s41, 0
      %s44 = sadd.s32 %s43, 1
      %s45 = scalar_select %p42, %s43, %s44
      %p48 = pneg %p42
      %p49 = scmp.eq.s32.totalorder %s21, 3
      %p50 = por %p48, %p49
      %p51 = scmp.ne.s32.totalorder %s43, %s46
      %p52 = scmp.eq.s32.totalorder %s21, 0
      %p53 = por %p51, %p52
      %p54 = scmp.ne.s32.totalorder %s43, %s46
      %p55 = scmp.eq.s32.totalorder %s26, 3
      %p56 = por %p54, %p55
      %p57 = scmp.ne.s32.totalorder %s46, %s47
      %p58 = scmp.eq.s32.totalorder %s26, 0
      %p59 = por %p57, %p58
      %p60 = scmp.ne.s32.totalorder %s46, %s47
      %p61 = scmp.eq.s32.totalorder %s27, 3
      %p62 = por %p60, %p61
      %p64 = scmp.ne.s32.totalorder %s47, %s63
      %p65 = scmp.eq.s32.totalorder %s27, 0
      %p66 = por %p64, %p65
      %s68 = sadd.s32 %s67, 1
      %p71 = scmp.eq.s32.totalorder %s21, 3
      %p72 = scmp.ne.s32.totalorder %s67, %s69
      %p73 = scmp.eq.s32.totalorder %s21, 0
      %p74 = por %p72, %p73
      %p75 = scmp.ne.s32.totalorder %s67, %s69
      %p76 = scmp.eq.s32.totalorder %s26, 3
      %p77 = por %p75, %p76
      %p78 = scmp.ne.s32.totalorder %s69, %s70
      %p79 = scmp.eq.s32.totalorder %s26, 0
      %p80 = por %p78, %p79
      %p81 = scmp.ne.s32.totalorder %s69, %s70
      %p82 = scmp.eq.s32.totalorder %s27, 3
      %p83 = por %p81, %p82
      %p85 = scmp.ne.s32.totalorder %s70, %s84
      %p86 = scmp.eq.s32.totalorder %s27, 0
      %p87 = por %p85, %p86
      %s89 = sadd.s32 %s88, 1
      %p92 = scmp.eq.s32.totalorder %s21, 3
      %p93 = scmp.ne.s32.totalorder %s88, %s90
      %p94 = scmp.eq.s32.totalorder %s21, 0
      %p95 = por %p93, %p94
      %p96 = scmp.ne.s32.totalorder %s88, %s90
      %p97 = scmp.eq.s32.totalorder %s26, 3
      %p98 = por %p96, %p97
      %p99 = scmp.ne.s32.totalorder %s90, %s91
      %p100 = scmp.eq.s32.totalorder %s26, 0
      %p101 = por %p99, %p100
      %p102 = scmp.ne.s32.totalorder %s90, %s91
      %p103 = scmp.eq.s32.totalorder %s27, 3
      %p104 = por %p102, %p103
      %p106 = scmp.ne.s32.totalorder %s91, %s105
      %p107 = scmp.eq.s32.totalorder %s27, 0
      %p108 = por %p106, %p107
      %s110 = sadd.s32 %s109, 1
      %p113 = scmp.eq.s32.totalorder %s21, 3
      %p114 = scmp.ne.s32.totalorder %s109, %s111
      %p115 = scmp.eq.s32.totalorder %s21, 0
      %p116 = por %p114, %p115
      %p117 = scmp.ne.s32.totalorder %s109, %s111
      %p118 = scmp.eq.s32.totalorder %s26, 3
      %p119 = por %p117, %p118
      %p120 = scmp.ne.s32.totalorder %s111, %s112
      %p121 = scmp.eq.s32.totalorder %s26, 0
      %p122 = por %p120, %p121
      %p123 = scmp.ne.s32.totalorder %s111, %s112
      %p124 = scmp.eq.s32.totalorder %s27, 3
      %p125 = por %p123, %p124
      %p127 = scmp.ne.s32.totalorder %s112, %s126
      %p128 = scmp.eq.s32.totalorder %s27, 0
      %p129 = por %p127, %p128
      %s131 = sadd.s32 %s130, 1
      %p134 = scmp.eq.s32.totalorder %s21, 3
      %p135 = scmp.ne.s32.totalorder %s130, %s132
      %p136 = scmp.eq.s32.totalorder %s21, 0
      %p137 = por %p135, %p136
      %p138 = scmp.ne.s32.totalorder %s130, %s132
      %p139 = scmp.eq.s32.totalorder %s26, 3
      %p140 = por %p138, %p139
      %p141 = scmp.ne.s32.totalorder %s132, %s133
      %p142 = scmp.eq.s32.totalorder %s26, 0
      %p143 = por %p141, %p142
      %p144 = scmp.ne.s32.totalorder %s132, %s133
      %p145 = scmp.eq.s32.totalorder %s27, 3
      %p146 = por %p144, %p145
      %p148 = scmp.ne.s32.totalorder %s133, %s147
      %p149 = scmp.eq.s32.totalorder %s27, 0
      %p150 = por %p148, %p149
      %s152 = sadd.s32 %s151, 1
      %p155 = scmp.eq.s32.totalorder %s21, 3
      %p156 = scmp.ne.s32.totalorder %s151, %s153
      %p157 = scmp.eq.s32.totalorder %s21, 0
      %p158 = por %p156, %p157
      %p159 = scmp.ne.s32.totalorder %s151, %s153
      %p160 = scmp.eq.s32.totalorder %s26, 3
      %p161 = por %p159, %p160
      %p162 = scmp.ne.s32.totalorder %s153, %s154
      %p163 = scmp.eq.s32.totalorder %s26, 0
      %p164 = por %p162, %p163
      %p165 = scmp.ne.s32.totalorder %s153, %s154
      %p166 = scmp.eq.s32.totalorder %s27, 3
      %p167 = por %p165, %p166
      %p169 = scmp.ne.s32.totalorder %s154, %s168
      %p170 = scmp.eq.s32.totalorder %s27, 0
      %p171 = por %p169, %p170
      %s173 = sadd.s32 %s172, 1
      %p176 = scmp.eq.s32.totalorder %s21, 3
      %p177 = scmp.ne.s32.totalorder %s172, %s174
      %p178 = scmp.eq.s32.totalorder %s21, 0
      %p179 = por %p177, %p178
      %p180 = scmp.ne.s32.totalorder %s172, %s174
      %p181 = scmp.eq.s32.totalorder %s26, 3
      %p182 = por %p180, %p181
      %p183 = scmp.ne.s32.totalorder %s174, %s175
      %p184 = scmp.eq.s32.totalorder %s26, 0
      %p185 = por %p183, %p184
      %p186 = scmp.ne.s32.totalorder %s174, %s175
      %p187 = scmp.eq.s32.totalorder %s27, 3
      %p188 = por %p186, %p187
      %p190 = scmp.ne.s32.totalorder %s175, %s189
      %p191 = scmp.eq.s32.totalorder %s27, 0
      %p192 = por %p190, %p191
      %s194 = sadd.s32 %s193, 1
      %p197 = scmp.eq.s32.totalorder %s21, 3
      %p198 = scmp.ne.s32.totalorder %s193, %s195
      %p199 = scmp.eq.s32.totalorder %s21, 0
      %p200 = por %p198, %p199
      %p201 = scmp.ne.s32.totalorder %s193, %s195
      %p202 = scmp.eq.s32.totalorder %s26, 3
      %p203 = por %p201, %p202
      %p204 = scmp.ne.s32.totalorder %s195, %s196
      %p205 = scmp.eq.s32.totalorder %s26, 0
      %p206 = por %p204, %p205
      %p207 = scmp.ne.s32.totalorder %s195, %s196
      %p208 = scmp.eq.s32.totalorder %s27, 3
      %p209 = por %p207, %p208
      %p211 = scmp.ne.s32.totalorder %s196, %s210
      %p212 = scmp.eq.s32.totalorder %s27, 0
      %p213 = por %p211, %p212
      %s215 = sadd.s32 %s214, 1
      %p218 = scmp.eq.s32.totalorder %s21, 3
      %p219 = scmp.ne.s32.totalorder %s214, %s216
      %p220 = scmp.eq.s32.totalorder %s21, 0
      %p221 = por %p219, %p220
      %p222 = scmp.ne.s32.totalorder %s214, %s216
      %p223 = scmp.eq.s32.totalorder %s26, 3
      %p224 = por %p222, %p223
      %p225 = scmp.ne.s32.totalorder %s216, %s217
      %p226 = scmp.eq.s32.totalorder %s26, 0
      %p227 = por %p225, %p226
      %p228 = scmp.ne.s32.totalorder %s216, %s217
      %p229 = scmp.eq.s32.totalorder %s27, 3
      %p230 = por %p228, %p229
      %p232 = scmp.ne.s32.totalorder %s217, %s231
      %p233 = scmp.eq.s32.totalorder %s27, 0
      %p234 = por %p232, %p233
      %s235 = ssub.s32 %s28, %s40
      %s236 = ssub.s32 %s29, %s36
      %s237 = sor.u32 %s235, %s236
      %p238 = scmp.eq.s32.totalorder %s237, 0
      %s240 = sadd.s32 %s239, 1
      %s241 = scalar_select %p238, %s239, %s240
      %p244 = pneg %p238
      %p245 = scmp.eq.s32.totalorder %s21, 3
      %p246 = por %p244, %p245
      %p247 = scmp.ne.s32.totalorder %s239, %s242
      %p248 = scmp.eq.s32.totalorder %s21, 0
      %p249 = por %p247, %p248
      %p250 = scmp.ne.s32.totalorder %s239, %s242
      %p251 = scmp.eq.s32.totalorder %s26, 3
      %p252 = por %p250, %p251
      %p253 = scmp.ne.s32.totalorder %s242, %s243
      %p254 = scmp.eq.s32.totalorder %s26, 0
      %p255 = por %p253, %p254
      %p256 = scmp.ne.s32.totalorder %s242, %s243
      %p257 = scmp.eq.s32.totalorder %s27, 3
      %p258 = por %p256, %p257
      %p260 = scmp.ne.s32.totalorder %s243, %s259
      %p261 = scmp.eq.s32.totalorder %s27, 0
      %p262 = por %p260, %p261
      %p263 = scmp.le.s32.totalorder 1, %s21
      %p264 = scmp.lt.s32.totalorder %s21, 5
      %p265 = pnand %p263, %p264
      %p266 = pneg %p265
      // Predicated region
      $region9: #{tpu_custom_call.1} parent=5 // pred_check
        _
      $region10: #{tpu_custom_call.1} parent=5 // pred_check_branch
        %268 = sbr.rel (%p265) target = $region12
      $region11: #{tpu_custom_call.1} parent=5 // pred_region
        %s269 = ssub.s32 %s21, 1
        // Predicated region
        $region13: #{tpu_custom_call.1} parent=11 // pred_check
          %p270 = pneg %p80
        $region14: #{tpu_custom_call.1} parent=11 // pred_check_branch
          %272 = sbr.rel (%p270) target = $region16
        $region15: #{tpu_custom_call.1} parent=11 // pred_region
          _
        $region16: #{tpu_custom_call.1} parent=11 // pred_fallthru
          _
        // Predicated region
        $region17: #{tpu_custom_call.1} parent=11 // pred_check
          %p273 = pneg %p101
        $region18: #{tpu_custom_call.1} parent=11 // pred_check_branch
          %275 = sbr.rel (%p273) target = $region20
        $region19: #{tpu_custom_call.1} parent=11 // pred_region
          _
        $region20: #{tpu_custom_call.1} parent=11 // pred_fallthru
          _
        // Predicated region
        $region21: #{tpu_custom_call.1} parent=11 // pred_check
          %p276 = pneg %p122
        $region22: #{tpu_custom_call.1} parent=11 // pred_check_branch
          %278 = sbr.rel (%p276) target = $region24
        $region23: #{tpu_custom_call.1} parent=11 // pred_region
          _
        $region24: #{tpu_custom_call.1} parent=11 // pred_fallthru
          _
        // Predicated region
        $region25: #{tpu_custom_call.1} parent=11 // pred_check
          %p279 = pneg %p143
        $region26: #{tpu_custom_call.1} parent=11 // pred_check_branch
          %281 = sbr.rel (%p279) target = $region28
        $region27: #{tpu_custom_call.1} parent=11 // pred_region
          _
        $region28: #{tpu_custom_call.1} parent=11 // pred_fallthru
          _
        // Predicated region
        $region29: #{tpu_custom_call.1} parent=11 // pred_check
          %p282 = pneg %p164
        $region30: #{tpu_custom_call.1} parent=11 // pred_check_branch
          %284 = sbr.rel (%p282) target = $region32
        $region31: #{tpu_custom_call.1} parent=11 // pred_region
          _
        $region32: #{tpu_custom_call.1} parent=11 // pred_fallthru
          _
        // Predicated region
        $region33: #{tpu_custom_call.1} parent=11 // pred_check
          %p285 = pneg %p185
        $region34: #{tpu_custom_call.1} parent=11 // pred_check_branch
          %287 = sbr.rel (%p285) target = $region36
        $region35: #{tpu_custom_call.1} parent=11 // pred_region
          _
        $region36: #{tpu_custom_call.1} parent=11 // pred_fallthru
          _
        // Predicated region
        $region37: #{tpu_custom_call.1} parent=11 // pred_check
          %p288 = pneg %p206
        $region38: #{tpu_custom_call.1} parent=11 // pred_check_branch
          %290 = sbr.rel (%p288) target = $region40
        $region39: #{tpu_custom_call.1} parent=11 // pred_region
          _
        $region40: #{tpu_custom_call.1} parent=11 // pred_fallthru
          _
        // Predicated region
        $region41: #{tpu_custom_call.1} parent=11 // pred_check
          %p291 = pneg %p227
        $region42: #{tpu_custom_call.1} parent=11 // pred_check_branch
          %293 = sbr.rel (%p291) target = $region44
        $region43: #{tpu_custom_call.1} parent=11 // pred_region
          _
        $region44: #{tpu_custom_call.1} parent=11 // pred_fallthru
          _
      $region12: #{tpu_custom_call.1} parent=5 // pred_fallthru
        _
      %p294 = scmp.lt.s32.totalorder %s21, 4
      // Predicated region
      $region45: #{tpu_custom_call.1} parent=5 // pred_check
        %p295 = pneg %p294
      $region46: #{tpu_custom_call.1} parent=5 // pred_check_branch
        %297 = sbr.rel (%p295) target = $region48
      $region47: #{tpu_custom_call.1} parent=5 // pred_region
        // Predicated region
        $region49: #{tpu_custom_call.1} parent=47 // pred_check
          %p298 = pneg %p53
        $region50: #{tpu_custom_call.1} parent=47 // pred_check_branch
          %300 = sbr.rel (%p298) target = $region52
        $region51: #{tpu_custom_call.1} parent=47 // pred_region
          %s301 = sand.u32 %s43, 1
          %s302 = scalar_lea.sflag [#allocation4], %s301
          %s303 = sand.u32 %s43, 1
          %s304 = smul.addr %s303, 256
          %s305 = scalar_lea.vmem [#allocation3], %s304
          %307 = vsyncadd %s302, 0
          %s308 = smul.addr %s28, 32
          %s309 = smul.addr %s308, 8
          %s310 = scalar_lea.hbm %s0, %s309
          %s311 = sshll.u32 %s310, 4
          %s312 = int_to_ptr.hbm [resolvable:$true] %s311
          %s313 = sshll.u32 %s305, 4
          %s314 = int_to_ptr.vmem [resolvable:$true] %s313
          %319 = dma.hbm_to_vmem [thread:$0]  %s312, 4096, %s314, %s302, 128, 128, 8
        $region52: #{tpu_custom_call.1} parent=47 // pred_fallthru
          _
      $region48: #{tpu_custom_call.1} parent=5 // pred_fallthru
        _
      %p320 = scmp.le.s32.totalorder 1, %s21
      %p321 = scmp.lt.s32.totalorder %s21, 5
      %p322 = pnand %p320, %p321
      %p323 = pneg %p322
      // Predicated region
      $region53: #{tpu_custom_call.1} parent=5 // pred_check
        _
      $region54: #{tpu_custom_call.1} parent=5 // pred_check_branch
        %325 = sbr.rel (%p322) target = $region56
      $region55: #{tpu_custom_call.1} parent=5 // pred_region
        %s326 = ssub.s32 %s21, 1
        %s327 = sand.u32 %s46, 1
        %s328 = scalar_lea.sflag [#allocation4], %s327
        %s329 = sand.u32 %s46, 1
        %s330 = smul.addr %s329, 256
        %s331 = scalar_lea.vmem [#allocation3], %s330
        // Predicated region
        $region57: #{tpu_custom_call.1} parent=55 // pred_check
          %p332 = pneg %p59
        $region58: #{tpu_custom_call.1} parent=55 // pred_check_branch
          %334 = sbr.rel (%p332) target = $region60
        $region59: #{tpu_custom_call.1} parent=55 // pred_region
          %336 = dma.done %s328, 4096
        $region60: #{tpu_custom_call.1} parent=55 // pred_fallthru
          _
        %s337 = sand.u32 %s46, 1
        %s338 = scalar_lea.sflag [#allocation4], %s337
        %s339 = sand.u32 %s46, 1
        %s340 = smul.addr %s339, 256
        %s341 = scalar_lea.vmem [#allocation3], %s340
        %p342 = pneg %p59
        %p343 = pneg %p56
        %p344 = pneg %p80
        %p345 = pneg %p77
        %p346 = pneg %p101
        %p347 = pneg %p98
        %p348 = pneg %p122
        %p349 = pneg %p119
        %p350 = pneg %p143
        %p351 = pneg %p140
        %p352 = pneg %p164
        %p353 = pneg %p161
        %p354 = pneg %p185
        %p355 = pneg %p182
        %p356 = pneg %p206
        %p357 = pneg %p203
        %p358 = pneg %p227
        %p359 = pneg %p224
        %p360 = pneg %p255
        %p361 = pneg %p252
        %s362 = sand.u32 %s242, 1
        %s363 = scalar_lea.sflag [#allocation5], %s362
        %s364 = sand.u32 %s242, 1
        %s365 = smul.addr %s364, 128
        %s366 = scalar_lea.vmem [#allocation6], %s365
        %s367 = smul.u32 8, %s31
        %s368 = smul.u32 %s31, 8
        %vm369 = vcmask 130048
        %370 = vst.msk [vmem:[#allocation2] sm:$0xff] %vm369, 0.0
        %371 = vst.msk [vmem:[#allocation2 + $0x20] sm:$0xff] %vm369, 0.0
        %372 = vst.msk [vmem:[#allocation2 + $0x40] sm:$0xff] %vm369, 0.0
        %373 = vst.msk [vmem:[#allocation2 + $0x60] sm:$0xff] %vm369, 0.0
        %374 = vst.msk [vmem:[#allocation2 + $0x80] sm:$0xff] %vm369, 0.0
        %375 = vst.msk [vmem:[#allocation2 + $0xa0] sm:$0xff] %vm369, 0.0
        %376 = vst.msk [vmem:[#allocation2 + $0xc0] sm:$0xff] %vm369, 0.0
        %377 = vst.msk [vmem:[#allocation2 + $0xe0] sm:$0xff] %vm369, 0.0
        %378 = vst.msk [vmem:[#allocation2 + $0x100] sm:$0xff] %vm369, 0.0
        %379 = vst.msk [vmem:[#allocation2 + $0x120] sm:$0xff] %vm369, 0.0
        %380 = vst.msk [vmem:[#allocation2 + $0x140] sm:$0xff] %vm369, 0.0
        %381 = vst.msk [vmem:[#allocation2 + $0x160] sm:$0xff] %vm369, 0.0
        %382 = vst.msk [vmem:[#allocation2 + $0x180] sm:$0xff] %vm369, 0.0
        %383 = vst.msk [vmem:[#allocation2 + $0x1a0] sm:$0xff] %vm369, 0.0
        %vm384 = vcmask 124928
        %385 = vst.msk [vmem:[#allocation2 + $0x18] sm:$0x7] %vm384, 0.0
        %386 = vst.msk [vmem:[#allocation2 + $0x38] sm:$0x7] %vm384, 0.0
        %387 = vst.msk [vmem:[#allocation2 + $0x58] sm:$0x7] %vm384, 0.0
        %388 = vst.msk [vmem:[#allocation2 + $0x78] sm:$0x7] %vm384, 0.0
        %389 = vst.msk [vmem:[#allocation2 + $0x98] sm:$0x7] %vm384, 0.0
        %390 = vst.msk [vmem:[#allocation2 + $0xb8] sm:$0x7] %vm384, 0.0
        %391 = vst.msk [vmem:[#allocation2 + $0xd8] sm:$0x7] %vm384, 0.0
        %392 = vst.msk [vmem:[#allocation2 + $0xf8] sm:$0x7] %vm384, 0.0
        %393 = vst.msk [vmem:[#allocation2 + $0x118] sm:$0x7] %vm384, 0.0
        %394 = vst.msk [vmem:[#allocation2 + $0x138] sm:$0x7] %vm384, 0.0
        %395 = vst.msk [vmem:[#allocation2 + $0x158] sm:$0x7] %vm384, 0.0
        %396 = vst.msk [vmem:[#allocation2 + $0x178] sm:$0x7] %vm384, 0.0
        %397 = vst.msk [vmem:[#allocation2 + $0x198] sm:$0x7] %vm384, 0.0
        %398 = vst.msk [vmem:[#allocation2 + $0x1b8] sm:$0x7] %vm384, 0.0
        %s399 = smul.u32 %s368, 16
        %s400 = scalar_lea.vmem %s331, %s399 [#allocation3]
        %v401 = vld [vmem:[%s400] sm:$0xff]
        %v402 = vld [vmem:[%s400 + $0x8] sm:$0xff]
        %v403 = vld [vmem:[%s400 + $0x10] sm:$0xff]
        %v404 = vld [vmem:[%s400 + $0x18] sm:$0xff]
        %v405 = vld [vmem:[%s400 + $0x20] sm:$0xff]
        %v406 = vld [vmem:[%s400 + $0x28] sm:$0xff]
        %v407 = vld [vmem:[%s400 + $0x30] sm:$0xff]
        %v408 = vld [vmem:[%s400 + $0x38] sm:$0xff]
        %v409 = vld [vmem:[%s400 + $0x40] sm:$0xff]
        %v410 = vld [vmem:[%s400 + $0x48] sm:$0xff]
        %v411 = vld [vmem:[%s400 + $0x50] sm:$0xff]
        %v412 = vld [vmem:[%s400 + $0x58] sm:$0xff]
        %v413 = vld [vmem:[%s400 + $0x60] sm:$0xff]
        %v414 = vld [vmem:[%s400 + $0x68] sm:$0xff]
        %v415 = vld [vmem:[%s400 + $0x70] sm:$0xff]
        %v416 = vld [vmem:[%s400 + $0x78] sm:$0xff]
        %s417 = scalar_lea.vmem [#allocation2], 96
        %418 = vst.msk [vmem:[%s417 + $0x8] sm:$0xff] %vm369, %v401
        %419 = vst.msk [vmem:[%s417 + $0x10] sm:$0xff] %vm369, %v402
        %420 = vst.msk [vmem:[%s417 + $0x28] sm:$0xff] %vm369, %v403
        %421 = vst.msk [vmem:[%s417 + $0x30] sm:$0xff] %vm369, %v404
        %422 = vst.msk [vmem:[%s417 + $0x48] sm:$0xff] %vm369, %v405
        %423 = vst.msk [vmem:[%s417 + $0x50] sm:$0xff] %vm369, %v406
        %424 = vst.msk [vmem:[%s417 + $0x68] sm:$0xff] %vm369, %v407
        %425 = vst.msk [vmem:[%s417 + $0x70] sm:$0xff] %vm369, %v408
        %426 = vst.msk [vmem:[%s417 + $0x88] sm:$0xff] %vm369, %v409
        %427 = vst.msk [vmem:[%s417 + $0x90] sm:$0xff] %vm369, %v410
        %428 = vst.msk [vmem:[%s417 + $0xa8] sm:$0xff] %vm369, %v411
        %429 = vst.msk [vmem:[%s417 + $0xb0] sm:$0xff] %vm369, %v412
        %430 = vst.msk [vmem:[%s417 + $0xc8] sm:$0xff] %vm369, %v413
        %431 = vst.msk [vmem:[%s417 + $0xd0] sm:$0xff] %vm369, %v414
        %432 = vst.msk [vmem:[%s417 + $0xe8] sm:$0xff] %vm369, %v415
        %433 = vst.msk [vmem:[%s417 + $0xf0] sm:$0xff] %vm369, %v416
        %p434 = scmp.gt.s32.totalorder %s31, 0
        // Predicated region
        $region61: #{tpu_custom_call.1} parent=55 // pred_check
          %p435 = pneg %p434
        $region62: #{tpu_custom_call.1} parent=55 // pred_check_branch
          %437 = sbr.rel (%p435) target = $region64
        $region63: #{tpu_custom_call.1} parent=55 // pred_region
          %s438 = ssub.s32 %s368, 3
          %s439 = smul.u32 %s438, 16
          %s440 = scalar_lea.vmem %s331, %s439 [#allocation3]
          %v441 = vld [vmem:[%s440] sm:$0xff]
          %v442 = vld [vmem:[%s440 + $0x8] sm:$0xff]
          %v443 = vld [vmem:[%s440 + $0x10] sm:$0xff]
          %v444 = vld [vmem:[%s440 + $0x18] sm:$0xff]
          %v445 = vld [vmem:[%s440 + $0x20] sm:$0xff]
          %v446 = vld [vmem:[%s440 + $0x28] sm:$0xff]
          %447 = vst.msk [vmem:[#allocation2 + $0x8] sm:$0xff] %vm369, %v441
          %448 = vst.msk [vmem:[#allocation2 + $0x10] sm:$0xff] %vm369, %v442
          %449 = vst.msk [vmem:[#allocation2 + $0x28] sm:$0xff] %vm369, %v443
          %450 = vst.msk [vmem:[#allocation2 + $0x30] sm:$0xff] %vm369, %v444
          %451 = vst.msk [vmem:[#allocation2 + $0x48] sm:$0xff] %vm369, %v445
          %452 = vst.msk [vmem:[#allocation2 + $0x50] sm:$0xff] %vm369, %v446
        $region64: #{tpu_custom_call.1} parent=55 // pred_fallthru
          _
        %p453 = scmp.eq.s32.totalorder %s31, 0
        // Predicated region
        $region65: #{tpu_custom_call.1} parent=55 // pred_check
          %p454 = pneg %p453
        $region66: #{tpu_custom_call.1} parent=55 // pred_check_branch
          %456 = sbr.rel (%p454) target = $region68
        $region67: #{tpu_custom_call.1} parent=55 // pred_region
          %457 = vst.msk [vmem:[#allocation2 + $0x8] sm:$0xff] %vm369, 0.0
          %458 = vst.msk [vmem:[#allocation2 + $0x10] sm:$0xff] %vm369, 0.0
          %459 = vst.msk [vmem:[#allocation2 + $0x28] sm:$0xff] %vm369, 0.0
          %460 = vst.msk [vmem:[#allocation2 + $0x30] sm:$0xff] %vm369, 0.0
          %461 = vst.msk [vmem:[#allocation2 + $0x48] sm:$0xff] %vm369, 0.0
          %462 = vst.msk [vmem:[#allocation2 + $0x50] sm:$0xff] %vm369, 0.0
        $region68: #{tpu_custom_call.1} parent=55 // pred_fallthru
          _
        %p463 = scmp.lt.s32.totalorder %s31, 1
        // Predicated region
        $region69: #{tpu_custom_call.1} parent=55 // pred_check
          %p464 = pneg %p463
        $region70: #{tpu_custom_call.1} parent=55 // pred_check_branch
          %466 = sbr.rel (%p464) target = $region72
        $region71: #{tpu_custom_call.1} parent=55 // pred_region
          %s467 = sadd.s32 %s368, 8
          %s468 = smul.u32 %s467, 16
          %s469 = scalar_lea.vmem %s331, %s468 [#allocation3]
          %v470 = vld [vmem:[%s469] sm:$0xff]
          %v471 = vld [vmem:[%s469 + $0x8] sm:$0xff]
          %v472 = vld [vmem:[%s469 + $0x10] sm:$0xff]
          %v473 = vld [vmem:[%s469 + $0x18] sm:$0xff]
          %v474 = vld [vmem:[%s469 + $0x20] sm:$0xff]
          %v475 = vld [vmem:[%s469 + $0x28] sm:$0xff]
          %s476 = scalar_lea.vmem [#allocation2], 352
          %477 = vst.msk [vmem:[%s476 + $0x8] sm:$0xff] %vm369, %v470
          %478 = vst.msk [vmem:[%s476 + $0x10] sm:$0xff] %vm369, %v471
          %479 = vst.msk [vmem:[%s476 + $0x28] sm:$0xff] %vm369, %v472
          %480 = vst.msk [vmem:[%s476 + $0x30] sm:$0xff] %vm369, %v473
          %481 = vst.msk [vmem:[%s476 + $0x48] sm:$0xff] %vm369, %v474
          %482 = vst.msk [vmem:[%s476 + $0x50] sm:$0xff] %vm369, %v475
        $region72: #{tpu_custom_call.1} parent=55 // pred_fallthru
          _
        %p483 = scmp.eq.s32.totalorder %s31, 1
        // Predicated region
        $region73: #{tpu_custom_call.1} parent=55 // pred_check
          %p484 = pneg %p483
        $region74: #{tpu_custom_call.1} parent=55 // pred_check_branch
          %486 = sbr.rel (%p484) target = $region76
        $region75: #{tpu_custom_call.1} parent=55 // pred_region
          %s487 = scalar_lea.vmem [#allocation2], 352
          %488 = vst.msk [vmem:[%s487 + $0x8] sm:$0xff] %vm369, 0.0
          %489 = vst.msk [vmem:[%s487 + $0x10] sm:$0xff] %vm369, 0.0
          %490 = vst.msk [vmem:[%s487 + $0x28] sm:$0xff] %vm369, 0.0
          %491 = vst.msk [vmem:[%s487 + $0x30] sm:$0xff] %vm369, 0.0
          %492 = vst.msk [vmem:[%s487 + $0x48] sm:$0xff] %vm369, 0.0
          %493 = vst.msk [vmem:[%s487 + $0x50] sm:$0xff] %vm369, 0.0
        $region76: #{tpu_custom_call.1} parent=55 // pred_fallthru
          _
        %v494 = vld [vmem:[%s1] sm:$0x7f]
        %v495 = vld [vmem:[%s1 + $0x8] sm:$0x7f]
        %v496 = vld [vmem:[%s1 + $0x10] sm:$0x7f]
        %v497 = vld [vmem:[%s1 + $0x18] sm:$0x7f]
        %v498 = vld [vmem:[%s1 + $0x20] sm:$0x7f]
        %v499 = vld [vmem:[%s1 + $0x28] sm:$0x7f]
        %v500 = vld [vmem:[%s1 + $0x30] sm:$0x7f]
        %v501 = vld [vmem:[%s2] sm:$0x1]
        %v503 = vperm.slane %v501, 0
        %v505 = vld [vmem:[#allocation2 + $0x5] sm:$0xff]
        %v506 = vld [vmem:[#allocation2 + $0xd] sm:$0xff]
        %v507 = vld [vmem:[#allocation2 + $0x25] sm:$0xff]
        %v508 = vld [vmem:[#allocation2 + $0x2d] sm:$0xff]
        %v509 = vld [vmem:[#allocation2 + $0x45] sm:$0xff]
        %v510 = vld [vmem:[#allocation2 + $0x4d] sm:$0xff]
        %v511 = vld [vmem:[#allocation2 + $0x65] sm:$0xff]
        %v512 = vld [vmem:[#allocation2 + $0x6d] sm:$0xff]
        %v513 = vld [vmem:[#allocation2 + $0x85] sm:$0xff]
        %v514 = vld [vmem:[#allocation2 + $0x8d] sm:$0xff]
        %v515 = vld [vmem:[#allocation2 + $0xa5] sm:$0xff]
        %v516 = vld [vmem:[#allocation2 + $0xad] sm:$0xff]
        %v517 = vld [vmem:[#allocation2 + $0xc5] sm:$0xff]
        %v518 = vld [vmem:[#allocation2 + $0xcd] sm:$0xff]
        %v519 = vld [vmem:[#allocation2 + $0xe5] sm:$0xff]
        %v520 = vld [vmem:[#allocation2 + $0xed] sm:$0xff]
        %v521 = vld [vmem:[#allocation2 + $0x105] sm:$0xff]
        %v522 = vld [vmem:[#allocation2 + $0x10d] sm:$0xff]
        %v523 = vld [vmem:[#allocation2 + $0x125] sm:$0xff]
        %v524 = vld [vmem:[#allocation2 + $0x12d] sm:$0xff]
        %v525 = vld [vmem:[#allocation2 + $0x145] sm:$0xff]
        %v526 = vld [vmem:[#allocation2 + $0x14d] sm:$0xff]
        %v527 = vld [vmem:[#allocation2 + $0x165] sm:$0xff]
        %v528 = vld [vmem:[#allocation2 + $0x16d] sm:$0xff]
        %v529 = vld [vmem:[#allocation2 + $0x185] sm:$0xff]
        %v530 = vld [vmem:[#allocation2 + $0x18d] sm:$0xff]
        %v531 = vld [vmem:[#allocation2 + $0x1a5] sm:$0xff]
        %v532 = vld [vmem:[#allocation2 + $0x1ad] sm:$0xff]
        %v533 = vperm.slane %v494, 0
        %v534 = vmul.f32 %v505, %v533
        %v535 = vmul.f32 %v506, %v533
        %v536 = vmul.f32 %v507, %v533
        %v537 = vmul.f32 %v508, %v533
        %v538 = vmul.f32 %v509, %v533
        %v539 = vmul.f32 %v510, %v533
        %v540 = vmul.f32 %v511, %v533
        %v541 = vmul.f32 %v512, %v533
        %v542 = vmul.f32 %v513, %v533
        %v543 = vmul.f32 %v514, %v533
        %v544 = vmul.f32 %v515, %v533
        %v545 = vmul.f32 %v516, %v533
        %v546 = vmul.f32 %v517, %v533
        %v547 = vmul.f32 %v518, %v533
        %v548 = vmul.f32 %v519, %v533
        %v549 = vmul.f32 %v520, %v533
        %v550 = vadd.f32 %v503, %v534
        %v551 = vadd.f32 %v503, %v535
        %v552 = vadd.f32 %v503, %v536
        %v553 = vadd.f32 %v503, %v537
        %v554 = vadd.f32 %v503, %v538
        %v555 = vadd.f32 %v503, %v539
        %v556 = vadd.f32 %v503, %v540
        %v557 = vadd.f32 %v503, %v541
        %v558 = vadd.f32 %v503, %v542
        %v559 = vadd.f32 %v503, %v543
        %v560 = vadd.f32 %v503, %v544
        %v561 = vadd.f32 %v503, %v545
        %v562 = vadd.f32 %v503, %v546
        %v563 = vadd.f32 %v503, %v547
        %v564 = vadd.f32 %v503, %v548
        %v565 = vadd.f32 %v503, %v549
        %v566 = vperm.slane %v495, 0
        %v567 = vmul.f32 %v507, %v566
        %v568 = vmul.f32 %v508, %v566
        %v569 = vmul.f32 %v509, %v566
        %v570 = vmul.f32 %v510, %v566
        %v571 = vmul.f32 %v511, %v566
        %v572 = vmul.f32 %v512, %v566
        %v573 = vmul.f32 %v513, %v566
        %v574 = vmul.f32 %v514, %v566
        %v575 = vmul.f32 %v515, %v566
        %v576 = vmul.f32 %v516, %v566
        %v577 = vmul.f32 %v517, %v566
        %v578 = vmul.f32 %v518, %v566
        %v579 = vmul.f32 %v519, %v566
        %v580 = vmul.f32 %v520, %v566
        %v581 = vmul.f32 %v521, %v566
        %v582 = vmul.f32 %v522, %v566
        %v583 = vadd.f32 %v550, %v567
        %v584 = vadd.f32 %v551, %v568
        %v585 = vadd.f32 %v552, %v569
        %v586 = vadd.f32 %v553, %v570
        %v587 = vadd.f32 %v554, %v571
        %v588 = vadd.f32 %v555, %v572
        %v589 = vadd.f32 %v556, %v573
        %v590 = vadd.f32 %v557, %v574
        %v591 = vadd.f32 %v558, %v575
        %v592 = vadd.f32 %v559, %v576
        %v593 = vadd.f32 %v560, %v577
        %v594 = vadd.f32 %v561, %v578
        %v595 = vadd.f32 %v562, %v579
        %v596 = vadd.f32 %v563, %v580
        %v597 = vadd.f32 %v564, %v581
        %v598 = vadd.f32 %v565, %v582
        %v599 = vperm.slane %v496, 0
        %v600 = vmul.f32 %v509, %v599
        %v601 = vmul.f32 %v510, %v599
        %v602 = vmul.f32 %v511, %v599
        %v603 = vmul.f32 %v512, %v599
        %v604 = vmul.f32 %v513, %v599
        %v605 = vmul.f32 %v514, %v599
        %v606 = vmul.f32 %v515, %v599
        %v607 = vmul.f32 %v516, %v599
        %v608 = vmul.f32 %v517, %v599
        %v609 = vmul.f32 %v518, %v599
        %v610 = vmul.f32 %v519, %v599
        %v611 = vmul.f32 %v520, %v599
        %v612 = vmul.f32 %v521, %v599
        %v613 = vmul.f32 %v522, %v599
        %v614 = vmul.f32 %v523, %v599
        %v615 = vmul.f32 %v524, %v599
        %v616 = vadd.f32 %v583, %v600
        %v617 = vadd.f32 %v584, %v601
        %v618 = vadd.f32 %v585, %v602
        %v619 = vadd.f32 %v586, %v603
        %v620 = vadd.f32 %v587, %v604
        %v621 = vadd.f32 %v588, %v605
        %v622 = vadd.f32 %v589, %v606
        %v623 = vadd.f32 %v590, %v607
        %v624 = vadd.f32 %v591, %v608
        %v625 = vadd.f32 %v592, %v609
        %v626 = vadd.f32 %v593, %v610
        %v627 = vadd.f32 %v594, %v611
        %v628 = vadd.f32 %v595, %v612
        %v629 = vadd.f32 %v596, %v613
        %v630 = vadd.f32 %v597, %v614
        %v631 = vadd.f32 %v598, %v615
        %v632 = vperm.slane %v497, 0
        %v633 = vmul.f32 %v511, %v632
        %v634 = vmul.f32 %v512, %v632
        %v635 = vmul.f32 %v513, %v632
        %v636 = vmul.f32 %v514, %v632
        %v637 = vmul.f32 %v515, %v632
        %v638 = vmul.f32 %v516, %v632
        %v639 = vmul.f32 %v517, %v632
        %v640 = vmul.f32 %v518, %v632
        %v641 = vmul.f32 %v519, %v632
        %v642 = vmul.f32 %v520, %v632
        %v643 = vmul.f32 %v521, %v632
        %v644 = vmul.f32 %v522, %v632
        %v645 = vmul.f32 %v523, %v632
        %v646 = vmul.f32 %v524, %v632
        %v647 = vmul.f32 %v525, %v632
        %v648 = vmul.f32 %v526, %v632
        %v649 = vadd.f32 %v616, %v633
        %v650 = vadd.f32 %v617, %v634
        %v651 = vadd.f32 %v618, %v635
        %v652 = vadd.f32 %v619, %v636
        %v653 = vadd.f32 %v620, %v637
        %v654 = vadd.f32 %v621, %v638
        %v655 = vadd.f32 %v622, %v639
        %v656 = vadd.f32 %v623, %v640
        %v657 = vadd.f32 %v624, %v641
        %v658 = vadd.f32 %v625, %v642
        %v659 = vadd.f32 %v626, %v643
        %v660 = vadd.f32 %v627, %v644
        %v661 = vadd.f32 %v628, %v645
        %v662 = vadd.f32 %v629, %v646
        %v663 = vadd.f32 %v630, %v647
        %v664 = vadd.f32 %v631, %v648
        %v665 = vperm.slane %v498, 0
        %v666 = vmul.f32 %v513, %v665
        %v667 = vmul.f32 %v514, %v665
        %v668 = vmul.f32 %v515, %v665
        %v669 = vmul.f32 %v516, %v665
        %v670 = vmul.f32 %v517, %v665
        %v671 = vmul.f32 %v518, %v665
        %v672 = vmul.f32 %v519, %v665
        %v673 = vmul.f32 %v520, %v665
        %v674 = vmul.f32 %v521, %v665
        %v675 = vmul.f32 %v522, %v665
        %v676 = vmul.f32 %v523, %v665
        %v677 = vmul.f32 %v524, %v665
        %v678 = vmul.f32 %v525, %v665
        %v679 = vmul.f32 %v526, %v665
        %v680 = vmul.f32 %v527, %v665
        %v681 = vmul.f32 %v528, %v665
        %v682 = vadd.f32 %v649, %v666
        %v683 = vadd.f32 %v650, %v667
        %v684 = vadd.f32 %v651, %v668
        %v685 = vadd.f32 %v652, %v669
        %v686 = vadd.f32 %v653, %v670
        %v687 = vadd.f32 %v654, %v671
        %v688 = vadd.f32 %v655, %v672
        %v689 = vadd.f32 %v656, %v673
        %v690 = vadd.f32 %v657, %v674
        %v691 = vadd.f32 %v658, %v675
        %v692 = vadd.f32 %v659, %v676
        %v693 = vadd.f32 %v660, %v677
        %v694 = vadd.f32 %v661, %v678
        %v695 = vadd.f32 %v662, %v679
        %v696 = vadd.f32 %v663, %v680
        %v697 = vadd.f32 %v664, %v681
        %v698 = vperm.slane %v499, 0
        %v699 = vmul.f32 %v515, %v698
        %v700 = vmul.f32 %v516, %v698
        %v701 = vmul.f32 %v517, %v698
        %v702 = vmul.f32 %v518, %v698
        %v703 = vmul.f32 %v519, %v698
        %v704 = vmul.f32 %v520, %v698
        %v705 = vmul.f32 %v521, %v698
        %v706 = vmul.f32 %v522, %v698
        %v707 = vmul.f32 %v523, %v698
        %v708 = vmul.f32 %v524, %v698
        %v709 = vmul.f32 %v525, %v698
        %v710 = vmul.f32 %v526, %v698
        %v711 = vmul.f32 %v527, %v698
        %v712 = vmul.f32 %v528, %v698
        %v713 = vmul.f32 %v529, %v698
        %v714 = vmul.f32 %v530, %v698
        %v715 = vadd.f32 %v682, %v699
        %v716 = vadd.f32 %v683, %v700
        %v717 = vadd.f32 %v684, %v701
        %v718 = vadd.f32 %v685, %v702
        %v719 = vadd.f32 %v686, %v703
        %v720 = vadd.f32 %v687, %v704
        %v721 = vadd.f32 %v688, %v705
        %v722 = vadd.f32 %v689, %v706
        %v723 = vadd.f32 %v690, %v707
        %v724 = vadd.f32 %v691, %v708
        %v725 = vadd.f32 %v692, %v709
        %v726 = vadd.f32 %v693, %v710
        %v727 = vadd.f32 %v694, %v711
        %v728 = vadd.f32 %v695, %v712
        %v729 = vadd.f32 %v696, %v713
        %v730 = vadd.f32 %v697, %v714
        %v731 = vperm.slane %v500, 0
        %v732 = vmul.f32 %v517, %v731
        %v733 = vmul.f32 %v518, %v731
        %v734 = vmul.f32 %v519, %v731
        %v735 = vmul.f32 %v520, %v731
        %v736 = vmul.f32 %v521, %v731
        %v737 = vmul.f32 %v522, %v731
        %v738 = vmul.f32 %v523, %v731
        %v739 = vmul.f32 %v524, %v731
        %v740 = vmul.f32 %v525, %v731
        %v741 = vmul.f32 %v526, %v731
        %v742 = vmul.f32 %v527, %v731
        %v743 = vmul.f32 %v528, %v731
        %v744 = vmul.f32 %v529, %v731
        %v745 = vmul.f32 %v530, %v731
        %v746 = vmul.f32 %v531, %v731
        %v747 = vmul.f32 %v532, %v731
        %v748 = vadd.f32 %v715, %v732
        %v749 = vadd.f32 %v716, %v733
        %v750 = vadd.f32 %v717, %v734
        %v751 = vadd.f32 %v718, %v735
        %v752 = vadd.f32 %v719, %v736
        %v753 = vadd.f32 %v720, %v737
        %v754 = vadd.f32 %v721, %v738
        %v755 = vadd.f32 %v722, %v739
        %v756 = vadd.f32 %v723, %v740
        %v757 = vadd.f32 %v724, %v741
        %v758 = vadd.f32 %v725, %v742
        %v759 = vadd.f32 %v726, %v743
        %v760 = vadd.f32 %v727, %v744
        %v761 = vadd.f32 %v728, %v745
        %v762 = vadd.f32 %v729, %v746
        %v763 = vadd.f32 %v730, %v747
        %v764 = vld [vmem:[#allocation2 + $0x6] sm:$0xff]
        %v765 = vld [vmem:[#allocation2 + $0xe] sm:$0xff]
        %v766 = vld [vmem:[#allocation2 + $0x26] sm:$0xff]
        %v767 = vld [vmem:[#allocation2 + $0x2e] sm:$0xff]
        %v768 = vld [vmem:[#allocation2 + $0x46] sm:$0xff]
        %v769 = vld [vmem:[#allocation2 + $0x4e] sm:$0xff]
        %v770 = vld [vmem:[#allocation2 + $0x66] sm:$0xff]
        %v771 = vld [vmem:[#allocation2 + $0x6e] sm:$0xff]
        %v772 = vld [vmem:[#allocation2 + $0x86] sm:$0xff]
        %v773 = vld [vmem:[#allocation2 + $0x8e] sm:$0xff]
        %v774 = vld [vmem:[#allocation2 + $0xa6] sm:$0xff]
        %v775 = vld [vmem:[#allocation2 + $0xae] sm:$0xff]
        %v776 = vld [vmem:[#allocation2 + $0xc6] sm:$0xff]
        %v777 = vld [vmem:[#allocation2 + $0xce] sm:$0xff]
        %v778 = vld [vmem:[#allocation2 + $0xe6] sm:$0xff]
        %v779 = vld [vmem:[#allocation2 + $0xee] sm:$0xff]
        %v780 = vld [vmem:[#allocation2 + $0x106] sm:$0xff]
        %v781 = vld [vmem:[#allocation2 + $0x10e] sm:$0xff]
        %v782 = vld [vmem:[#allocation2 + $0x126] sm:$0xff]
        %v783 = vld [vmem:[#allocation2 + $0x12e] sm:$0xff]
        %v784 = vld [vmem:[#allocation2 + $0x146] sm:$0xff]
        %v785 = vld [vmem:[#allocation2 + $0x14e] sm:$0xff]
        %v786 = vld [vmem:[#allocation2 + $0x166] sm:$0xff]
        %v787 = vld [vmem:[#allocation2 + $0x16e] sm:$0xff]
        %v788 = vld [vmem:[#allocation2 + $0x186] sm:$0xff]
        %v789 = vld [vmem:[#allocation2 + $0x18e] sm:$0xff]
        %v790 = vld [vmem:[#allocation2 + $0x1a6] sm:$0xff]
        %v791 = vld [vmem:[#allocation2 + $0x1ae] sm:$0xff]
        %v792 = vperm.slane %v494, 1
        %v793 = vmul.f32 %v764, %v792
        %v794 = vmul.f32 %v765, %v792
        %v795 = vmul.f32 %v766, %v792
        %v796 = vmul.f32 %v767, %v792
        %v797 = vmul.f32 %v768, %v792
        %v798 = vmul.f32 %v769, %v792
        %v799 = vmul.f32 %v770, %v792
        %v800 = vmul.f32 %v771, %v792
        %v801 = vmul.f32 %v772, %v792
        %v802 = vmul.f32 %v773, %v792
        %v803 = vmul.f32 %v774, %v792
        %v804 = vmul.f32 %v775, %v792
        %v805 = vmul.f32 %v776, %v792
        %v806 = vmul.f32 %v777, %v792
        %v807 = vmul.f32 %v778, %v792
        %v808 = vmul.f32 %v779, %v792
        %v809 = vadd.f32 %v748, %v793
        %v810 = vadd.f32 %v749, %v794
        %v811 = vadd.f32 %v750, %v795
        %v812 = vadd.f32 %v751, %v796
        %v813 = vadd.f32 %v752, %v797
        %v814 = vadd.f32 %v753, %v798
        %v815 = vadd.f32 %v754, %v799
        %v816 = vadd.f32 %v755, %v800
        %v817 = vadd.f32 %v756, %v801
        %v818 = vadd.f32 %v757, %v802
        %v819 = vadd.f32 %v758, %v803
        %v820 = vadd.f32 %v759, %v804
        %v821 = vadd.f32 %v760, %v805
        %v822 = vadd.f32 %v761, %v806
        %v823 = vadd.f32 %v762, %v807
        %v824 = vadd.f32 %v763, %v808
        %v825 = vperm.slane %v495, 1
        %v826 = vmul.f32 %v766, %v825
        %v827 = vmul.f32 %v767, %v825
        %v828 = vmul.f32 %v768, %v825
        %v829 = vmul.f32 %v769, %v825
        %v830 = vmul.f32 %v770, %v825
        %v831 = vmul.f32 %v771, %v825
        %v832 = vmul.f32 %v772, %v825
        %v833 = vmul.f32 %v773, %v825
        %v834 = vmul.f32 %v774, %v825
        %v835 = vmul.f32 %v775, %v825
        %v836 = vmul.f32 %v776, %v825
        %v837 = vmul.f32 %v777, %v825
        %v838 = vmul.f32 %v778, %v825
        %v839 = vmul.f32 %v779, %v825
        %v840 = vmul.f32 %v780, %v825
        %v841 = vmul.f32 %v781, %v825
        %v842 = vadd.f32 %v809, %v826
        %v843 = vadd.f32 %v810, %v827
        %v844 = vadd.f32 %v811, %v828
        %v845 = vadd.f32 %v812, %v829
        %v846 = vadd.f32 %v813, %v830
        %v847 = vadd.f32 %v814, %v831
        %v848 = vadd.f32 %v815, %v832
        %v849 = vadd.f32 %v816, %v833
        %v850 = vadd.f32 %v817, %v834
        %v851 = vadd.f32 %v818, %v835
        %v852 = vadd.f32 %v819, %v836
        %v853 = vadd.f32 %v820, %v837
        %v854 = vadd.f32 %v821, %v838
        %v855 = vadd.f32 %v822, %v839
        %v856 = vadd.f32 %v823, %v840
        %v857 = vadd.f32 %v824, %v841
        %v858 = vperm.slane %v496, 1
        %v859 = vmul.f32 %v768, %v858
        %v860 = vmul.f32 %v769, %v858
        %v861 = vmul.f32 %v770, %v858
        %v862 = vmul.f32 %v771, %v858
        %v863 = vmul.f32 %v772, %v858
        %v864 = vmul.f32 %v773, %v858
        %v865 = vmul.f32 %v774, %v858
        %v866 = vmul.f32 %v775, %v858
        %v867 = vmul.f32 %v776, %v858
        %v868 = vmul.f32 %v777, %v858
        %v869 = vmul.f32 %v778, %v858
        %v870 = vmul.f32 %v779, %v858
        %v871 = vmul.f32 %v780, %v858
        %v872 = vmul.f32 %v781, %v858
        %v873 = vmul.f32 %v782, %v858
        %v874 = vmul.f32 %v783, %v858
        %v875 = vadd.f32 %v842, %v859
        %v876 = vadd.f32 %v843, %v860
        %v877 = vadd.f32 %v844, %v861
        %v878 = vadd.f32 %v845, %v862
        %v879 = vadd.f32 %v846, %v863
        %v880 = vadd.f32 %v847, %v864
        %v881 = vadd.f32 %v848, %v865
        %v882 = vadd.f32 %v849, %v866
        %v883 = vadd.f32 %v850, %v867
        %v884 = vadd.f32 %v851, %v868
        %v885 = vadd.f32 %v852, %v869
        %v886 = vadd.f32 %v853, %v870
        %v887 = vadd.f32 %v854, %v871
        %v888 = vadd.f32 %v855, %v872
        %v889 = vadd.f32 %v856, %v873
        %v890 = vadd.f32 %v857, %v874
        %v891 = vperm.slane %v497, 1
        %v892 = vmul.f32 %v770, %v891
        %v893 = vmul.f32 %v771, %v891
        %v894 = vmul.f32 %v772, %v891
        %v895 = vmul.f32 %v773, %v891
        %v896 = vmul.f32 %v774, %v891
        %v897 = vmul.f32 %v775, %v891
        %v898 = vmul.f32 %v776, %v891
        %v899 = vmul.f32 %v777, %v891
        %v900 = vmul.f32 %v778, %v891
        %v901 = vmul.f32 %v779, %v891
        %v902 = vmul.f32 %v780, %v891
        %v903 = vmul.f32 %v781, %v891
        %v904 = vmul.f32 %v782, %v891
        %v905 = vmul.f32 %v783, %v891
        %v906 = vmul.f32 %v784, %v891
        %v907 = vmul.f32 %v785, %v891
        %v908 = vadd.f32 %v875, %v892
        %v909 = vadd.f32 %v876, %v893
        %v910 = vadd.f32 %v877, %v894
        %v911 = vadd.f32 %v878, %v895
        %v912 = vadd.f32 %v879, %v896
        %v913 = vadd.f32 %v880, %v897
        %v914 = vadd.f32 %v881, %v898
        %v915 = vadd.f32 %v882, %v899
        %v916 = vadd.f32 %v883, %v900
        %v917 = vadd.f32 %v884, %v901
        %v918 = vadd.f32 %v885, %v902
        %v919 = vadd.f32 %v886, %v903
        %v920 = vadd.f32 %v887, %v904
        %v921 = vadd.f32 %v888, %v905
        %v922 = vadd.f32 %v889, %v906
        %v923 = vadd.f32 %v890, %v907
        %v924 = vperm.slane %v498, 1
        %v925 = vmul.f32 %v772, %v924
        %v926 = vmul.f32 %v773, %v924
        %v927 = vmul.f32 %v774, %v924
        %v928 = vmul.f32 %v775, %v924
        %v929 = vmul.f32 %v776, %v924
        %v930 = vmul.f32 %v777, %v924
        %v931 = vmul.f32 %v778, %v924
        %v932 = vmul.f32 %v779, %v924
        %v933 = vmul.f32 %v780, %v924
        %v934 = vmul.f32 %v781, %v924
        %v935 = vmul.f32 %v782, %v924
        %v936 = vmul.f32 %v783, %v924
        %v937 = vmul.f32 %v784, %v924
        %v938 = vmul.f32 %v785, %v924
        %v939 = vmul.f32 %v786, %v924
        %v940 = vmul.f32 %v787, %v924
        %v941 = vadd.f32 %v908, %v925
        %v942 = vadd.f32 %v909, %v926
        %v943 = vadd.f32 %v910, %v927
        %v944 = vadd.f32 %v911, %v928
        %v945 = vadd.f32 %v912, %v929
        %v946 = vadd.f32 %v913, %v930
        %v947 = vadd.f32 %v914, %v931
        %v948 = vadd.f32 %v915, %v932
        %v949 = vadd.f32 %v916, %v933
        %v950 = vadd.f32 %v917, %v934
        %v951 = vadd.f32 %v918, %v935
        %v952 = vadd.f32 %v919, %v936
        %v953 = vadd.f32 %v920, %v937
        %v954 = vadd.f32 %v921, %v938
        %v955 = vadd.f32 %v922, %v939
        %v956 = vadd.f32 %v923, %v940
        %v957 = vperm.slane %v499, 1
        %v958 = vmul.f32 %v774, %v957
        %v959 = vmul.f32 %v775, %v957
        %v960 = vmul.f32 %v776, %v957
        %v961 = vmul.f32 %v777, %v957
        %v962 = vmul.f32 %v778, %v957
        %v963 = vmul.f32 %v779, %v957
        %v964 = vmul.f32 %v780, %v957
        %v965 = vmul.f32 %v781, %v957
        %v966 = vmul.f32 %v782, %v957
        %v967 = vmul.f32 %v783, %v957
        %v968 = vmul.f32 %v784, %v957
        %v969 = vmul.f32 %v785, %v957
        %v970 = vmul.f32 %v786, %v957
        %v971 = vmul.f32 %v787, %v957
        %v972 = vmul.f32 %v788, %v957
        %v973 = vmul.f32 %v789, %v957
        %v974 = vadd.f32 %v941, %v958
        %v975 = vadd.f32 %v942, %v959
        %v976 = vadd.f32 %v943, %v960
        %v977 = vadd.f32 %v944, %v961
        %v978 = vadd.f32 %v945, %v962
        %v979 = vadd.f32 %v946, %v963
        %v980 = vadd.f32 %v947, %v964
        %v981 = vadd.f32 %v948, %v965
        %v982 = vadd.f32 %v949, %v966
        %v983 = vadd.f32 %v950, %v967
        %v984 = vadd.f32 %v951, %v968
        %v985 = vadd.f32 %v952, %v969
        %v986 = vadd.f32 %v953, %v970
        %v987 = vadd.f32 %v954, %v971
        %v988 = vadd.f32 %v955, %v972
        %v989 = vadd.f32 %v956, %v973
        %v990 = vperm.slane %v500, 1
        %v991 = vmul.f32 %v776, %v990
        %v992 = vmul.f32 %v777, %v990
        %v993 = vmul.f32 %v778, %v990
        %v994 = vmul.f32 %v779, %v990
        %v995 = vmul.f32 %v780, %v990
        %v996 = vmul.f32 %v781, %v990
        %v997 = vmul.f32 %v782, %v990
        %v998 = vmul.f32 %v783, %v990
        %v999 = vmul.f32 %v784, %v990
        %v1000 = vmul.f32 %v785, %v990
        %v1001 = vmul.f32 %v786, %v990
        %v1002 = vmul.f32 %v787, %v990
        %v1003 = vmul.f32 %v788, %v990
        %v1004 = vmul.f32 %v789, %v990
        %v1005 = vmul.f32 %v790, %v990
        %v1006 = vmul.f32 %v791, %v990
        %v1007 = vadd.f32 %v974, %v991
        %v1008 = vadd.f32 %v975, %v992
        %v1009 = vadd.f32 %v976, %v993
        %v1010 = vadd.f32 %v977, %v994
        %v1011 = vadd.f32 %v978, %v995
        %v1012 = vadd.f32 %v979, %v996
        %v1013 = vadd.f32 %v980, %v997
        %v1014 = vadd.f32 %v981, %v998
        %v1015 = vadd.f32 %v982, %v999
        %v1016 = vadd.f32 %v983, %v1000
        %v1017 = vadd.f32 %v984, %v1001
        %v1018 = vadd.f32 %v985, %v1002
        %v1019 = vadd.f32 %v986, %v1003
        %v1020 = vadd.f32 %v987, %v1004
        %v1021 = vadd.f32 %v988, %v1005
        %v1022 = vadd.f32 %v989, %v1006
        %v1023 = vld [vmem:[#allocation2 + $0x7] sm:$0xff]
        %v1024 = vld [vmem:[#allocation2 + $0xf] sm:$0xff]
        %v1025 = vld [vmem:[#allocation2 + $0x27] sm:$0xff]
        %v1026 = vld [vmem:[#allocation2 + $0x2f] sm:$0xff]
        %v1027 = vld [vmem:[#allocation2 + $0x47] sm:$0xff]
        %v1028 = vld [vmem:[#allocation2 + $0x4f] sm:$0xff]
        %v1029 = vld [vmem:[#allocation2 + $0x67] sm:$0xff]
        %v1030 = vld [vmem:[#allocation2 + $0x6f] sm:$0xff]
        %v1031 = vld [vmem:[#allocation2 + $0x87] sm:$0xff]
        %v1032 = vld [vmem:[#allocation2 + $0x8f] sm:$0xff]
        %v1033 = vld [vmem:[#allocation2 + $0xa7] sm:$0xff]
        %v1034 = vld [vmem:[#allocation2 + $0xaf] sm:$0xff]
        %v1035 = vld [vmem:[#allocation2 + $0xc7] sm:$0xff]
        %v1036 = vld [vmem:[#allocation2 + $0xcf] sm:$0xff]
        %v1037 = vld [vmem:[#allocation2 + $0xe7] sm:$0xff]
        %v1038 = vld [vmem:[#allocation2 + $0xef] sm:$0xff]
        %v1039 = vld [vmem:[#allocation2 + $0x107] sm:$0xff]
        %v1040 = vld [vmem:[#allocation2 + $0x10f] sm:$0xff]
        %v1041 = vld [vmem:[#allocation2 + $0x127] sm:$0xff]
        %v1042 = vld [vmem:[#allocation2 + $0x12f] sm:$0xff]
        %v1043 = vld [vmem:[#allocation2 + $0x147] sm:$0xff]
        %v1044 = vld [vmem:[#allocation2 + $0x14f] sm:$0xff]
        %v1045 = vld [vmem:[#allocation2 + $0x167] sm:$0xff]
        %v1046 = vld [vmem:[#allocation2 + $0x16f] sm:$0xff]
        %v1047 = vld [vmem:[#allocation2 + $0x187] sm:$0xff]
        %v1048 = vld [vmem:[#allocation2 + $0x18f] sm:$0xff]
        %v1049 = vld [vmem:[#allocation2 + $0x1a7] sm:$0xff]
        %v1050 = vld [vmem:[#allocation2 + $0x1af] sm:$0xff]
        %v1051 = vperm.slane %v494, 2
        %v1052 = vmul.f32 %v1023, %v1051
        %v1053 = vmul.f32 %v1024, %v1051
        %v1054 = vmul.f32 %v1025, %v1051
        %v1055 = vmul.f32 %v1026, %v1051
        %v1056 = vmul.f32 %v1027, %v1051
        %v1057 = vmul.f32 %v1028, %v1051
        %v1058 = vmul.f32 %v1029, %v1051
        %v1059 = vmul.f32 %v1030, %v1051
        %v1060 = vmul.f32 %v1031, %v1051
        %v1061 = vmul.f32 %v1032, %v1051
        %v1062 = vmul.f32 %v1033, %v1051
        %v1063 = vmul.f32 %v1034, %v1051
        %v1064 = vmul.f32 %v1035, %v1051
        %v1065 = vmul.f32 %v1036, %v1051
        %v1066 = vmul.f32 %v1037, %v1051
        %v1067 = vmul.f32 %v1038, %v1051
        %v1068 = vadd.f32 %v1007, %v1052
        %v1069 = vadd.f32 %v1008, %v1053
        %v1070 = vadd.f32 %v1009, %v1054
        %v1071 = vadd.f32 %v1010, %v1055
        %v1072 = vadd.f32 %v1011, %v1056
        %v1073 = vadd.f32 %v1012, %v1057
        %v1074 = vadd.f32 %v1013, %v1058
        %v1075 = vadd.f32 %v1014, %v1059
        %v1076 = vadd.f32 %v1015, %v1060
        %v1077 = vadd.f32 %v1016, %v1061
        %v1078 = vadd.f32 %v1017, %v1062
        %v1079 = vadd.f32 %v1018, %v1063
        %v1080 = vadd.f32 %v1019, %v1064
        %v1081 = vadd.f32 %v1020, %v1065
        %v1082 = vadd.f32 %v1021, %v1066
        %v1083 = vadd.f32 %v1022, %v1067
        %v1084 = vperm.slane %v495, 2
        %v1085 = vmul.f32 %v1025, %v1084
        %v1086 = vmul.f32 %v1026, %v1084
        %v1087 = vmul.f32 %v1027, %v1084
        %v1088 = vmul.f32 %v1028, %v1084
        %v1089 = vmul.f32 %v1029, %v1084
        %v1090 = vmul.f32 %v1030, %v1084
        %v1091 = vmul.f32 %v1031, %v1084
        %v1092 = vmul.f32 %v1032, %v1084
        %v1093 = vmul.f32 %v1033, %v1084
        %v1094 = vmul.f32 %v1034, %v1084
        %v1095 = vmul.f32 %v1035, %v1084
        %v1096 = vmul.f32 %v1036, %v1084
        %v1097 = vmul.f32 %v1037, %v1084
        %v1098 = vmul.f32 %v1038, %v1084
        %v1099 = vmul.f32 %v1039, %v1084
        %v1100 = vmul.f32 %v1040, %v1084
        %v1101 = vadd.f32 %v1068, %v1085
        %v1102 = vadd.f32 %v1069, %v1086
        %v1103 = vadd.f32 %v1070, %v1087
        %v1104 = vadd.f32 %v1071, %v1088
        %v1105 = vadd.f32 %v1072, %v1089
        %v1106 = vadd.f32 %v1073, %v1090
        %v1107 = vadd.f32 %v1074, %v1091
        %v1108 = vadd.f32 %v1075, %v1092
        %v1109 = vadd.f32 %v1076, %v1093
        %v1110 = vadd.f32 %v1077, %v1094
        %v1111 = vadd.f32 %v1078, %v1095
        %v1112 = vadd.f32 %v1079, %v1096
        %v1113 = vadd.f32 %v1080, %v1097
        %v1114 = vadd.f32 %v1081, %v1098
        %v1115 = vadd.f32 %v1082, %v1099
        %v1116 = vadd.f32 %v1083, %v1100
        %v1117 = vperm.slane %v496, 2
        %v1118 = vmul.f32 %v1027, %v1117
        %v1119 = vmul.f32 %v1028, %v1117
        %v1120 = vmul.f32 %v1029, %v1117
        %v1121 = vmul.f32 %v1030, %v1117
        %v1122 = vmul.f32 %v1031, %v1117
        %v1123 = vmul.f32 %v1032, %v1117
        %v1124 = vmul.f32 %v1033, %v1117
        %v1125 = vmul.f32 %v1034, %v1117
        %v1126 = vmul.f32 %v1035, %v1117
        %v1127 = vmul.f32 %v1036, %v1117
        %v1128 = vmul.f32 %v1037, %v1117
        %v1129 = vmul.f32 %v1038, %v1117
        %v1130 = vmul.f32 %v1039, %v1117
        %v1131 = vmul.f32 %v1040, %v1117
        %v1132 = vmul.f32 %v1041, %v1117
        %v1133 = vmul.f32 %v1042, %v1117
        %v1134 = vadd.f32 %v1101, %v1118
        %v1135 = vadd.f32 %v1102, %v1119
        %v1136 = vadd.f32 %v1103, %v1120
        %v1137 = vadd.f32 %v1104, %v1121
        %v1138 = vadd.f32 %v1105, %v1122
        %v1139 = vadd.f32 %v1106, %v1123
        %v1140 = vadd.f32 %v1107, %v1124
        %v1141 = vadd.f32 %v1108, %v1125
        %v1142 = vadd.f32 %v1109, %v1126
        %v1143 = vadd.f32 %v1110, %v1127
        %v1144 = vadd.f32 %v1111, %v1128
        %v1145 = vadd.f32 %v1112, %v1129
        %v1146 = vadd.f32 %v1113, %v1130
        %v1147 = vadd.f32 %v1114, %v1131
        %v1148 = vadd.f32 %v1115, %v1132
        %v1149 = vadd.f32 %v1116, %v1133
        %v1150 = vperm.slane %v497, 2
        %v1151 = vmul.f32 %v1029, %v1150
        %v1152 = vmul.f32 %v1030, %v1150
        %v1153 = vmul.f32 %v1031, %v1150
        %v1154 = vmul.f32 %v1032, %v1150
        %v1155 = vmul.f32 %v1033, %v1150
        %v1156 = vmul.f32 %v1034, %v1150
        %v1157 = vmul.f32 %v1035, %v1150
        %v1158 = vmul.f32 %v1036, %v1150
        %v1159 = vmul.f32 %v1037, %v1150
        %v1160 = vmul.f32 %v1038, %v1150
        %v1161 = vmul.f32 %v1039, %v1150
        %v1162 = vmul.f32 %v1040, %v1150
        %v1163 = vmul.f32 %v1041, %v1150
        %v1164 = vmul.f32 %v1042, %v1150
        %v1165 = vmul.f32 %v1043, %v1150
        %v1166 = vmul.f32 %v1044, %v1150
        %v1167 = vadd.f32 %v1134, %v1151
        %v1168 = vadd.f32 %v1135, %v1152
        %v1169 = vadd.f32 %v1136, %v1153
        %v1170 = vadd.f32 %v1137, %v1154
        %v1171 = vadd.f32 %v1138, %v1155
        %v1172 = vadd.f32 %v1139, %v1156
        %v1173 = vadd.f32 %v1140, %v1157
        %v1174 = vadd.f32 %v1141, %v1158
        %v1175 = vadd.f32 %v1142, %v1159
        %v1176 = vadd.f32 %v1143, %v1160
        %v1177 = vadd.f32 %v1144, %v1161
        %v1178 = vadd.f32 %v1145, %v1162
        %v1179 = vadd.f32 %v1146, %v1163
        %v1180 = vadd.f32 %v1147, %v1164
        %v1181 = vadd.f32 %v1148, %v1165
        %v1182 = vadd.f32 %v1149, %v1166
        %v1183 = vperm.slane %v498, 2
        %v1184 = vmul.f32 %v1031, %v1183
        %v1185 = vmul.f32 %v1032, %v1183
        %v1186 = vmul.f32 %v1033, %v1183
        %v1187 = vmul.f32 %v1034, %v1183
        %v1188 = vmul.f32 %v1035, %v1183
        %v1189 = vmul.f32 %v1036, %v1183
        %v1190 = vmul.f32 %v1037, %v1183
        %v1191 = vmul.f32 %v1038, %v1183
        %v1192 = vmul.f32 %v1039, %v1183
        %v1193 = vmul.f32 %v1040, %v1183
        %v1194 = vmul.f32 %v1041, %v1183
        %v1195 = vmul.f32 %v1042, %v1183
        %v1196 = vmul.f32 %v1043, %v1183
        %v1197 = vmul.f32 %v1044, %v1183
        %v1198 = vmul.f32 %v1045, %v1183
        %v1199 = vmul.f32 %v1046, %v1183
        %v1200 = vadd.f32 %v1167, %v1184
        %v1201 = vadd.f32 %v1168, %v1185
        %v1202 = vadd.f32 %v1169, %v1186
        %v1203 = vadd.f32 %v1170, %v1187
        %v1204 = vadd.f32 %v1171, %v1188
        %v1205 = vadd.f32 %v1172, %v1189
        %v1206 = vadd.f32 %v1173, %v1190
        %v1207 = vadd.f32 %v1174, %v1191
        %v1208 = vadd.f32 %v1175, %v1192
        %v1209 = vadd.f32 %v1176, %v1193
        %v1210 = vadd.f32 %v1177, %v1194
        %v1211 = vadd.f32 %v1178, %v1195
        %v1212 = vadd.f32 %v1179, %v1196
        %v1213 = vadd.f32 %v1180, %v1197
        %v1214 = vadd.f32 %v1181, %v1198
        %v1215 = vadd.f32 %v1182, %v1199
        %v1216 = vperm.slane %v499, 2
        %v1217 = vmul.f32 %v1033, %v1216
        %v1218 = vmul.f32 %v1034, %v1216
        %v1219 = vmul.f32 %v1035, %v1216
        %v1220 = vmul.f32 %v1036, %v1216
        %v1221 = vmul.f32 %v1037, %v1216
        %v1222 = vmul.f32 %v1038, %v1216
        %v1223 = vmul.f32 %v1039, %v1216
        %v1224 = vmul.f32 %v1040, %v1216
        %v1225 = vmul.f32 %v1041, %v1216
        %v1226 = vmul.f32 %v1042, %v1216
        %v1227 = vmul.f32 %v1043, %v1216
        %v1228 = vmul.f32 %v1044, %v1216
        %v1229 = vmul.f32 %v1045, %v1216
        %v1230 = vmul.f32 %v1046, %v1216
        %v1231 = vmul.f32 %v1047, %v1216
        %v1232 = vmul.f32 %v1048, %v1216
        %v1233 = vadd.f32 %v1200, %v1217
        %v1234 = vadd.f32 %v1201, %v1218
        %v1235 = vadd.f32 %v1202, %v1219
        %v1236 = vadd.f32 %v1203, %v1220
        %v1237 = vadd.f32 %v1204, %v1221
        %v1238 = vadd.f32 %v1205, %v1222
        %v1239 = vadd.f32 %v1206, %v1223
        %v1240 = vadd.f32 %v1207, %v1224
        %v1241 = vadd.f32 %v1208, %v1225
        %v1242 = vadd.f32 %v1209, %v1226
        %v1243 = vadd.f32 %v1210, %v1227
        %v1244 = vadd.f32 %v1211, %v1228
        %v1245 = vadd.f32 %v1212, %v1229
        %v1246 = vadd.f32 %v1213, %v1230
        %v1247 = vadd.f32 %v1214, %v1231
        %v1248 = vadd.f32 %v1215, %v1232
        %v1249 = vperm.slane %v500, 2
        %v1250 = vmul.f32 %v1035, %v1249
        %v1251 = vmul.f32 %v1036, %v1249
        %v1252 = vmul.f32 %v1037, %v1249
        %v1253 = vmul.f32 %v1038, %v1249
        %v1254 = vmul.f32 %v1039, %v1249
        %v1255 = vmul.f32 %v1040, %v1249
        %v1256 = vmul.f32 %v1041, %v1249
        %v1257 = vmul.f32 %v1042, %v1249
        %v1258 = vmul.f32 %v1043, %v1249
        %v1259 = vmul.f32 %v1044, %v1249
        %v1260 = vmul.f32 %v1045, %v1249
        %v1261 = vmul.f32 %v1046, %v1249
        %v1262 = vmul.f32 %v1047, %v1249
        %v1263 = vmul.f32 %v1048, %v1249
        %v1264 = vmul.f32 %v1049, %v1249
        %v1265 = vmul.f32 %v1050, %v1249
        %v1266 = vadd.f32 %v1233, %v1250
        %v1267 = vadd.f32 %v1234, %v1251
        %v1268 = vadd.f32 %v1235, %v1252
        %v1269 = vadd.f32 %v1236, %v1253
        %v1270 = vadd.f32 %v1237, %v1254
        %v1271 = vadd.f32 %v1238, %v1255
        %v1272 = vadd.f32 %v1239, %v1256
        %v1273 = vadd.f32 %v1240, %v1257
        %v1274 = vadd.f32 %v1241, %v1258
        %v1275 = vadd.f32 %v1242, %v1259
        %v1276 = vadd.f32 %v1243, %v1260
        %v1277 = vadd.f32 %v1244, %v1261
        %v1278 = vadd.f32 %v1245, %v1262
        %v1279 = vadd.f32 %v1246, %v1263
        %v1280 = vadd.f32 %v1247, %v1264
        %v1281 = vadd.f32 %v1248, %v1265
        %v1282 = vld [vmem:[#allocation2 + $0x8] sm:$0xff]
        %v1283 = vld [vmem:[#allocation2 + $0x10] sm:$0xff]
        %v1284 = vld [vmem:[#allocation2 + $0x28] sm:$0xff]
        %v1285 = vld [vmem:[#allocation2 + $0x30] sm:$0xff]
        %v1286 = vld [vmem:[#allocation2 + $0x48] sm:$0xff]
        %v1287 = vld [vmem:[#allocation2 + $0x50] sm:$0xff]
        %v1288 = vld [vmem:[#allocation2 + $0x68] sm:$0xff]
        %v1289 = vld [vmem:[#allocation2 + $0x70] sm:$0xff]
        %v1290 = vld [vmem:[#allocation2 + $0x88] sm:$0xff]
        %v1291 = vld [vmem:[#allocation2 + $0x90] sm:$0xff]
        %v1292 = vld [vmem:[#allocation2 + $0xa8] sm:$0xff]
        %v1293 = vld [vmem:[#allocation2 + $0xb0] sm:$0xff]
        %v1294 = vld [vmem:[#allocation2 + $0xc8] sm:$0xff]
        %v1295 = vld [vmem:[#allocation2 + $0xd0] sm:$0xff]
        %v1296 = vld [vmem:[#allocation2 + $0xe8] sm:$0xff]
        %v1297 = vld [vmem:[#allocation2 + $0xf0] sm:$0xff]
        %v1298 = vld [vmem:[#allocation2 + $0x108] sm:$0xff]
        %v1299 = vld [vmem:[#allocation2 + $0x110] sm:$0xff]
        %v1300 = vld [vmem:[#allocation2 + $0x128] sm:$0xff]
        %v1301 = vld [vmem:[#allocation2 + $0x130] sm:$0xff]
        %v1302 = vld [vmem:[#allocation2 + $0x148] sm:$0xff]
        %v1303 = vld [vmem:[#allocation2 + $0x150] sm:$0xff]
        %v1304 = vld [vmem:[#allocation2 + $0x168] sm:$0xff]
        %v1305 = vld [vmem:[#allocation2 + $0x170] sm:$0xff]
        %v1306 = vld [vmem:[#allocation2 + $0x188] sm:$0xff]
        %v1307 = vld [vmem:[#allocation2 + $0x190] sm:$0xff]
        %v1308 = vld [vmem:[#allocation2 + $0x1a8] sm:$0xff]
        %v1309 = vld [vmem:[#allocation2 + $0x1b0] sm:$0xff]
        %v1310 = vperm.slane %v494, 3
        %v1311 = vmul.f32 %v1282, %v1310
        %v1312 = vmul.f32 %v1283, %v1310
        %v1313 = vmul.f32 %v1284, %v1310
        %v1314 = vmul.f32 %v1285, %v1310
        %v1315 = vmul.f32 %v1286, %v1310
        %v1316 = vmul.f32 %v1287, %v1310
        %v1317 = vmul.f32 %v1288, %v1310
        %v1318 = vmul.f32 %v1289, %v1310
        %v1319 = vmul.f32 %v1290, %v1310
        %v1320 = vmul.f32 %v1291, %v1310
        %v1321 = vmul.f32 %v1292, %v1310
        %v1322 = vmul.f32 %v1293, %v1310
        %v1323 = vmul.f32 %v1294, %v1310
        %v1324 = vmul.f32 %v1295, %v1310
        %v1325 = vmul.f32 %v1296, %v1310
        %v1326 = vmul.f32 %v1297, %v1310
        %v1327 = vadd.f32 %v1266, %v1311
        %v1328 = vadd.f32 %v1267, %v1312
        %v1329 = vadd.f32 %v1268, %v1313
        %v1330 = vadd.f32 %v1269, %v1314
        %v1331 = vadd.f32 %v1270, %v1315
        %v1332 = vadd.f32 %v1271, %v1316
        %v1333 = vadd.f32 %v1272, %v1317
        %v1334 = vadd.f32 %v1273, %v1318
        %v1335 = vadd.f32 %v1274, %v1319
        %v1336 = vadd.f32 %v1275, %v1320
        %v1337 = vadd.f32 %v1276, %v1321
        %v1338 = vadd.f32 %v1277, %v1322
        %v1339 = vadd.f32 %v1278, %v1323
        %v1340 = vadd.f32 %v1279, %v1324
        %v1341 = vadd.f32 %v1280, %v1325
        %v1342 = vadd.f32 %v1281, %v1326
        %v1343 = vperm.slane %v495, 3
        %v1344 = vmul.f32 %v1284, %v1343
        %v1345 = vmul.f32 %v1285, %v1343
        %v1346 = vmul.f32 %v1286, %v1343
        %v1347 = vmul.f32 %v1287, %v1343
        %v1348 = vmul.f32 %v1288, %v1343
        %v1349 = vmul.f32 %v1289, %v1343
        %v1350 = vmul.f32 %v1290, %v1343
        %v1351 = vmul.f32 %v1291, %v1343
        %v1352 = vmul.f32 %v1292, %v1343
        %v1353 = vmul.f32 %v1293, %v1343
        %v1354 = vmul.f32 %v1294, %v1343
        %v1355 = vmul.f32 %v1295, %v1343
        %v1356 = vmul.f32 %v1296, %v1343
        %v1357 = vmul.f32 %v1297, %v1343
        %v1358 = vmul.f32 %v1298, %v1343
        %v1359 = vmul.f32 %v1299, %v1343
        %v1360 = vadd.f32 %v1327, %v1344
        %v1361 = vadd.f32 %v1328, %v1345
        %v1362 = vadd.f32 %v1329, %v1346
        %v1363 = vadd.f32 %v1330, %v1347
        %v1364 = vadd.f32 %v1331, %v1348
        %v1365 = vadd.f32 %v1332, %v1349
        %v1366 = vadd.f32 %v1333, %v1350
        %v1367 = vadd.f32 %v1334, %v1351
        %v1368 = vadd.f32 %v1335, %v1352
        %v1369 = vadd.f32 %v1336, %v1353
        %v1370 = vadd.f32 %v1337, %v1354
        %v1371 = vadd.f32 %v1338, %v1355
        %v1372 = vadd.f32 %v1339, %v1356
        %v1373 = vadd.f32 %v1340, %v1357
        %v1374 = vadd.f32 %v1341, %v1358
        %v1375 = vadd.f32 %v1342, %v1359
        %v1376 = vperm.slane %v496, 3
        %v1377 = vmul.f32 %v1286, %v1376
        %v1378 = vmul.f32 %v1287, %v1376
        %v1379 = vmul.f32 %v1288, %v1376
        %v1380 = vmul.f32 %v1289, %v1376
        %v1381 = vmul.f32 %v1290, %v1376
        %v1382 = vmul.f32 %v1291, %v1376
        %v1383 = vmul.f32 %v1292, %v1376
        %v1384 = vmul.f32 %v1293, %v1376
        %v1385 = vmul.f32 %v1294, %v1376
        %v1386 = vmul.f32 %v1295, %v1376
        %v1387 = vmul.f32 %v1296, %v1376
        %v1388 = vmul.f32 %v1297, %v1376
        %v1389 = vmul.f32 %v1298, %v1376
        %v1390 = vmul.f32 %v1299, %v1376
        %v1391 = vmul.f32 %v1300, %v1376
        %v1392 = vmul.f32 %v1301, %v1376
        %v1393 = vadd.f32 %v1360, %v1377
        %v1394 = vadd.f32 %v1361, %v1378
        %v1395 = vadd.f32 %v1362, %v1379
        %v1396 = vadd.f32 %v1363, %v1380
        %v1397 = vadd.f32 %v1364, %v1381
        %v1398 = vadd.f32 %v1365, %v1382
        %v1399 = vadd.f32 %v1366, %v1383
        %v1400 = vadd.f32 %v1367, %v1384
        %v1401 = vadd.f32 %v1368, %v1385
        %v1402 = vadd.f32 %v1369, %v1386
        %v1403 = vadd.f32 %v1370, %v1387
        %v1404 = vadd.f32 %v1371, %v1388
        %v1405 = vadd.f32 %v1372, %v1389
        %v1406 = vadd.f32 %v1373, %v1390
        %v1407 = vadd.f32 %v1374, %v1391
        %v1408 = vadd.f32 %v1375, %v1392
        %v1409 = vperm.slane %v497, 3
        %v1410 = vmul.f32 %v1288, %v1409
        %v1411 = vmul.f32 %v1289, %v1409
        %v1412 = vmul.f32 %v1290, %v1409
        %v1413 = vmul.f32 %v1291, %v1409
        %v1414 = vmul.f32 %v1292, %v1409
        %v1415 = vmul.f32 %v1293, %v1409
        %v1416 = vmul.f32 %v1294, %v1409
        %v1417 = vmul.f32 %v1295, %v1409
        %v1418 = vmul.f32 %v1296, %v1409
        %v1419 = vmul.f32 %v1297, %v1409
        %v1420 = vmul.f32 %v1298, %v1409
        %v1421 = vmul.f32 %v1299, %v1409
        %v1422 = vmul.f32 %v1300, %v1409
        %v1423 = vmul.f32 %v1301, %v1409
        %v1424 = vmul.f32 %v1302, %v1409
        %v1425 = vmul.f32 %v1303, %v1409
        %v1426 = vadd.f32 %v1393, %v1410
        %v1427 = vadd.f32 %v1394, %v1411
        %v1428 = vadd.f32 %v1395, %v1412
        %v1429 = vadd.f32 %v1396, %v1413
        %v1430 = vadd.f32 %v1397, %v1414
        %v1431 = vadd.f32 %v1398, %v1415
        %v1432 = vadd.f32 %v1399, %v1416
        %v1433 = vadd.f32 %v1400, %v1417
        %v1434 = vadd.f32 %v1401, %v1418
        %v1435 = vadd.f32 %v1402, %v1419
        %v1436 = vadd.f32 %v1403, %v1420
        %v1437 = vadd.f32 %v1404, %v1421
        %v1438 = vadd.f32 %v1405, %v1422
        %v1439 = vadd.f32 %v1406, %v1423
        %v1440 = vadd.f32 %v1407, %v1424
        %v1441 = vadd.f32 %v1408, %v1425
        %v1442 = vperm.slane %v498, 3
        %v1443 = vmul.f32 %v1290, %v1442
        %v1444 = vmul.f32 %v1291, %v1442
        %v1445 = vmul.f32 %v1292, %v1442
        %v1446 = vmul.f32 %v1293, %v1442
        %v1447 = vmul.f32 %v1294, %v1442
        %v1448 = vmul.f32 %v1295, %v1442
        %v1449 = vmul.f32 %v1296, %v1442
        %v1450 = vmul.f32 %v1297, %v1442
        %v1451 = vmul.f32 %v1298, %v1442
        %v1452 = vmul.f32 %v1299, %v1442
        %v1453 = vmul.f32 %v1300, %v1442
        %v1454 = vmul.f32 %v1301, %v1442
        %v1455 = vmul.f32 %v1302, %v1442
        %v1456 = vmul.f32 %v1303, %v1442
        %v1457 = vmul.f32 %v1304, %v1442
        %v1458 = vmul.f32 %v1305, %v1442
        %v1459 = vadd.f32 %v1426, %v1443
        %v1460 = vadd.f32 %v1427, %v1444
        %v1461 = vadd.f32 %v1428, %v1445
        %v1462 = vadd.f32 %v1429, %v1446
        %v1463 = vadd.f32 %v1430, %v1447
        %v1464 = vadd.f32 %v1431, %v1448
        %v1465 = vadd.f32 %v1432, %v1449
        %v1466 = vadd.f32 %v1433, %v1450
        %v1467 = vadd.f32 %v1434, %v1451
        %v1468 = vadd.f32 %v1435, %v1452
        %v1469 = vadd.f32 %v1436, %v1453
        %v1470 = vadd.f32 %v1437, %v1454
        %v1471 = vadd.f32 %v1438, %v1455
        %v1472 = vadd.f32 %v1439, %v1456
        %v1473 = vadd.f32 %v1440, %v1457
        %v1474 = vadd.f32 %v1441, %v1458
        %v1475 = vperm.slane %v499, 3
        %v1476 = vmul.f32 %v1292, %v1475
        %v1477 = vmul.f32 %v1293, %v1475
        %v1478 = vmul.f32 %v1294, %v1475
        %v1479 = vmul.f32 %v1295, %v1475
        %v1480 = vmul.f32 %v1296, %v1475
        %v1481 = vmul.f32 %v1297, %v1475
        %v1482 = vmul.f32 %v1298, %v1475
        %v1483 = vmul.f32 %v1299, %v1475
        %v1484 = vmul.f32 %v1300, %v1475
        %v1485 = vmul.f32 %v1301, %v1475
        %v1486 = vmul.f32 %v1302, %v1475
        %v1487 = vmul.f32 %v1303, %v1475
        %v1488 = vmul.f32 %v1304, %v1475
        %v1489 = vmul.f32 %v1305, %v1475
        %v1490 = vmul.f32 %v1306, %v1475
        %v1491 = vmul.f32 %v1307, %v1475
        %v1492 = vadd.f32 %v1459, %v1476
        %v1493 = vadd.f32 %v1460, %v1477
        %v1494 = vadd.f32 %v1461, %v1478
        %v1495 = vadd.f32 %v1462, %v1479
        %v1496 = vadd.f32 %v1463, %v1480
        %v1497 = vadd.f32 %v1464, %v1481
        %v1498 = vadd.f32 %v1465, %v1482
        %v1499 = vadd.f32 %v1466, %v1483
        %v1500 = vadd.f32 %v1467, %v1484
        %v1501 = vadd.f32 %v1468, %v1485
        %v1502 = vadd.f32 %v1469, %v1486
        %v1503 = vadd.f32 %v1470, %v1487
        %v1504 = vadd.f32 %v1471, %v1488
        %v1505 = vadd.f32 %v1472, %v1489
        %v1506 = vadd.f32 %v1473, %v1490
        %v1507 = vadd.f32 %v1474, %v1491
        %v1508 = vperm.slane %v500, 3
        %v1509 = vmul.f32 %v1294, %v1508
        %v1510 = vmul.f32 %v1295, %v1508
        %v1511 = vmul.f32 %v1296, %v1508
        %v1512 = vmul.f32 %v1297, %v1508
        %v1513 = vmul.f32 %v1298, %v1508
        %v1514 = vmul.f32 %v1299, %v1508
        %v1515 = vmul.f32 %v1300, %v1508
        %v1516 = vmul.f32 %v1301, %v1508
        %v1517 = vmul.f32 %v1302, %v1508
        %v1518 = vmul.f32 %v1303, %v1508
        %v1519 = vmul.f32 %v1304, %v1508
        %v1520 = vmul.f32 %v1305, %v1508
        %v1521 = vmul.f32 %v1306, %v1508
        %v1522 = vmul.f32 %v1307, %v1508
        %v1523 = vmul.f32 %v1308, %v1508
        %v1524 = vmul.f32 %v1309, %v1508
        %v1525 = vadd.f32 %v1492, %v1509
        %v1526 = vadd.f32 %v1493, %v1510
        %v1527 = vadd.f32 %v1494, %v1511
        %v1528 = vadd.f32 %v1495, %v1512
        %v1529 = vadd.f32 %v1496, %v1513
        %v1530 = vadd.f32 %v1497, %v1514
        %v1531 = vadd.f32 %v1498, %v1515
        %v1532 = vadd.f32 %v1499, %v1516
        %v1533 = vadd.f32 %v1500, %v1517
        %v1534 = vadd.f32 %v1501, %v1518
        %v1535 = vadd.f32 %v1502, %v1519
        %v1536 = vadd.f32 %v1503, %v1520
        %v1537 = vadd.f32 %v1504, %v1521
        %v1538 = vadd.f32 %v1505, %v1522
        %v1539 = vadd.f32 %v1506, %v1523
        %v1540 = vadd.f32 %v1507, %v1524
        %v1541 = vld [vmem:[#allocation2 + $0x9] sm:$0xff]
        %v1542 = vld [vmem:[#allocation2 + $0x11] sm:$0xff]
        %v1543 = vld [vmem:[#allocation2 + $0x29] sm:$0xff]
        %v1544 = vld [vmem:[#allocation2 + $0x31] sm:$0xff]
        %v1545 = vld [vmem:[#allocation2 + $0x49] sm:$0xff]
        %v1546 = vld [vmem:[#allocation2 + $0x51] sm:$0xff]
        %v1547 = vld [vmem:[#allocation2 + $0x69] sm:$0xff]
        %v1548 = vld [vmem:[#allocation2 + $0x71] sm:$0xff]
        %v1549 = vld [vmem:[#allocation2 + $0x89] sm:$0xff]
        %v1550 = vld [vmem:[#allocation2 + $0x91] sm:$0xff]
        %v1551 = vld [vmem:[#allocation2 + $0xa9] sm:$0xff]
        %v1552 = vld [vmem:[#allocation2 + $0xb1] sm:$0xff]
        %v1553 = vld [vmem:[#allocation2 + $0xc9] sm:$0xff]
        %v1554 = vld [vmem:[#allocation2 + $0xd1] sm:$0xff]
        %v1555 = vld [vmem:[#allocation2 + $0xe9] sm:$0xff]
        %v1556 = vld [vmem:[#allocation2 + $0xf1] sm:$0xff]
        %v1557 = vld [vmem:[#allocation2 + $0x109] sm:$0xff]
        %v1558 = vld [vmem:[#allocation2 + $0x111] sm:$0xff]
        %v1559 = vld [vmem:[#allocation2 + $0x129] sm:$0xff]
        %v1560 = vld [vmem:[#allocation2 + $0x131] sm:$0xff]
        %v1561 = vld [vmem:[#allocation2 + $0x149] sm:$0xff]
        %v1562 = vld [vmem:[#allocation2 + $0x151] sm:$0xff]
        %v1563 = vld [vmem:[#allocation2 + $0x169] sm:$0xff]
        %v1564 = vld [vmem:[#allocation2 + $0x171] sm:$0xff]
        %v1565 = vld [vmem:[#allocation2 + $0x189] sm:$0xff]
        %v1566 = vld [vmem:[#allocation2 + $0x191] sm:$0xff]
        %v1567 = vld [vmem:[#allocation2 + $0x1a9] sm:$0xff]
        %v1568 = vld [vmem:[#allocation2 + $0x1b1] sm:$0xff]
        %v1569 = vperm.slane %v494, 4
        %v1570 = vmul.f32 %v1541, %v1569
        %v1571 = vmul.f32 %v1542, %v1569
        %v1572 = vmul.f32 %v1543, %v1569
        %v1573 = vmul.f32 %v1544, %v1569
        %v1574 = vmul.f32 %v1545, %v1569
        %v1575 = vmul.f32 %v1546, %v1569
        %v1576 = vmul.f32 %v1547, %v1569
        %v1577 = vmul.f32 %v1548, %v1569
        %v1578 = vmul.f32 %v1549, %v1569
        %v1579 = vmul.f32 %v1550, %v1569
        %v1580 = vmul.f32 %v1551, %v1569
        %v1581 = vmul.f32 %v1552, %v1569
        %v1582 = vmul.f32 %v1553, %v1569
        %v1583 = vmul.f32 %v1554, %v1569
        %v1584 = vmul.f32 %v1555, %v1569
        %v1585 = vmul.f32 %v1556, %v1569
        %v1586 = vadd.f32 %v1525, %v1570
        %v1587 = vadd.f32 %v1526, %v1571
        %v1588 = vadd.f32 %v1527, %v1572
        %v1589 = vadd.f32 %v1528, %v1573
        %v1590 = vadd.f32 %v1529, %v1574
        %v1591 = vadd.f32 %v1530, %v1575
        %v1592 = vadd.f32 %v1531, %v1576
        %v1593 = vadd.f32 %v1532, %v1577
        %v1594 = vadd.f32 %v1533, %v1578
        %v1595 = vadd.f32 %v1534, %v1579
        %v1596 = vadd.f32 %v1535, %v1580
        %v1597 = vadd.f32 %v1536, %v1581
        %v1598 = vadd.f32 %v1537, %v1582
        %v1599 = vadd.f32 %v1538, %v1583
        %v1600 = vadd.f32 %v1539, %v1584
        %v1601 = vadd.f32 %v1540, %v1585
        %v1602 = vperm.slane %v495, 4
        %v1603 = vmul.f32 %v1543, %v1602
        %v1604 = vmul.f32 %v1544, %v1602
        %v1605 = vmul.f32 %v1545, %v1602
        %v1606 = vmul.f32 %v1546, %v1602
        %v1607 = vmul.f32 %v1547, %v1602
        %v1608 = vmul.f32 %v1548, %v1602
        %v1609 = vmul.f32 %v1549, %v1602
        %v1610 = vmul.f32 %v1550, %v1602
        %v1611 = vmul.f32 %v1551, %v1602
        %v1612 = vmul.f32 %v1552, %v1602
        %v1613 = vmul.f32 %v1553, %v1602
        %v1614 = vmul.f32 %v1554, %v1602
        %v1615 = vmul.f32 %v1555, %v1602
        %v1616 = vmul.f32 %v1556, %v1602
        %v1617 = vmul.f32 %v1557, %v1602
        %v1618 = vmul.f32 %v1558, %v1602
        %v1619 = vadd.f32 %v1586, %v1603
        %v1620 = vadd.f32 %v1587, %v1604
        %v1621 = vadd.f32 %v1588, %v1605
        %v1622 = vadd.f32 %v1589, %v1606
        %v1623 = vadd.f32 %v1590, %v1607
        %v1624 = vadd.f32 %v1591, %v1608
        %v1625 = vadd.f32 %v1592, %v1609
        %v1626 = vadd.f32 %v1593, %v1610
        %v1627 = vadd.f32 %v1594, %v1611
        %v1628 = vadd.f32 %v1595, %v1612
        %v1629 = vadd.f32 %v1596, %v1613
        %v1630 = vadd.f32 %v1597, %v1614
        %v1631 = vadd.f32 %v1598, %v1615
        %v1632 = vadd.f32 %v1599, %v1616
        %v1633 = vadd.f32 %v1600, %v1617
        %v1634 = vadd.f32 %v1601, %v1618
        %v1635 = vperm.slane %v496, 4
        %v1636 = vmul.f32 %v1545, %v1635
        %v1637 = vmul.f32 %v1546, %v1635
        %v1638 = vmul.f32 %v1547, %v1635
        %v1639 = vmul.f32 %v1548, %v1635
        %v1640 = vmul.f32 %v1549, %v1635
        %v1641 = vmul.f32 %v1550, %v1635
        %v1642 = vmul.f32 %v1551, %v1635
        %v1643 = vmul.f32 %v1552, %v1635
        %v1644 = vmul.f32 %v1553, %v1635
        %v1645 = vmul.f32 %v1554, %v1635
        %v1646 = vmul.f32 %v1555, %v1635
        %v1647 = vmul.f32 %v1556, %v1635
        %v1648 = vmul.f32 %v1557, %v1635
        %v1649 = vmul.f32 %v1558, %v1635
        %v1650 = vmul.f32 %v1559, %v1635
        %v1651 = vmul.f32 %v1560, %v1635
        %v1652 = vadd.f32 %v1619, %v1636
        %v1653 = vadd.f32 %v1620, %v1637
        %v1654 = vadd.f32 %v1621, %v1638
        %v1655 = vadd.f32 %v1622, %v1639
        %v1656 = vadd.f32 %v1623, %v1640
        %v1657 = vadd.f32 %v1624, %v1641
        %v1658 = vadd.f32 %v1625, %v1642
        %v1659 = vadd.f32 %v1626, %v1643
        %v1660 = vadd.f32 %v1627, %v1644
        %v1661 = vadd.f32 %v1628, %v1645
        %v1662 = vadd.f32 %v1629, %v1646
        %v1663 = vadd.f32 %v1630, %v1647
        %v1664 = vadd.f32 %v1631, %v1648
        %v1665 = vadd.f32 %v1632, %v1649
        %v1666 = vadd.f32 %v1633, %v1650
        %v1667 = vadd.f32 %v1634, %v1651
        %v1668 = vperm.slane %v497, 4
        %v1669 = vmul.f32 %v1547, %v1668
        %v1670 = vmul.f32 %v1548, %v1668
        %v1671 = vmul.f32 %v1549, %v1668
        %v1672 = vmul.f32 %v1550, %v1668
        %v1673 = vmul.f32 %v1551, %v1668
        %v1674 = vmul.f32 %v1552, %v1668
        %v1675 = vmul.f32 %v1553, %v1668
        %v1676 = vmul.f32 %v1554, %v1668
        %v1677 = vmul.f32 %v1555, %v1668
        %v1678 = vmul.f32 %v1556, %v1668
        %v1679 = vmul.f32 %v1557, %v1668
        %v1680 = vmul.f32 %v1558, %v1668
        %v1681 = vmul.f32 %v1559, %v1668
        %v1682 = vmul.f32 %v1560, %v1668
        %v1683 = vmul.f32 %v1561, %v1668
        %v1684 = vmul.f32 %v1562, %v1668
        %v1685 = vadd.f32 %v1652, %v1669
        %v1686 = vadd.f32 %v1653, %v1670
        %v1687 = vadd.f32 %v1654, %v1671
        %v1688 = vadd.f32 %v1655, %v1672
        %v1689 = vadd.f32 %v1656, %v1673
        %v1690 = vadd.f32 %v1657, %v1674
        %v1691 = vadd.f32 %v1658, %v1675
        %v1692 = vadd.f32 %v1659, %v1676
        %v1693 = vadd.f32 %v1660, %v1677
        %v1694 = vadd.f32 %v1661, %v1678
        %v1695 = vadd.f32 %v1662, %v1679
        %v1696 = vadd.f32 %v1663, %v1680
        %v1697 = vadd.f32 %v1664, %v1681
        %v1698 = vadd.f32 %v1665, %v1682
        %v1699 = vadd.f32 %v1666, %v1683
        %v1700 = vadd.f32 %v1667, %v1684
        %v1701 = vperm.slane %v498, 4
        %v1702 = vmul.f32 %v1549, %v1701
        %v1703 = vmul.f32 %v1550, %v1701
        %v1704 = vmul.f32 %v1551, %v1701
        %v1705 = vmul.f32 %v1552, %v1701
        %v1706 = vmul.f32 %v1553, %v1701
        %v1707 = vmul.f32 %v1554, %v1701
        %v1708 = vmul.f32 %v1555, %v1701
        %v1709 = vmul.f32 %v1556, %v1701
        %v1710 = vmul.f32 %v1557, %v1701
        %v1711 = vmul.f32 %v1558, %v1701
        %v1712 = vmul.f32 %v1559, %v1701
        %v1713 = vmul.f32 %v1560, %v1701
        %v1714 = vmul.f32 %v1561, %v1701
        %v1715 = vmul.f32 %v1562, %v1701
        %v1716 = vmul.f32 %v1563, %v1701
        %v1717 = vmul.f32 %v1564, %v1701
        %v1718 = vadd.f32 %v1685, %v1702
        %v1719 = vadd.f32 %v1686, %v1703
        %v1720 = vadd.f32 %v1687, %v1704
        %v1721 = vadd.f32 %v1688, %v1705
        %v1722 = vadd.f32 %v1689, %v1706
        %v1723 = vadd.f32 %v1690, %v1707
        %v1724 = vadd.f32 %v1691, %v1708
        %v1725 = vadd.f32 %v1692, %v1709
        %v1726 = vadd.f32 %v1693, %v1710
        %v1727 = vadd.f32 %v1694, %v1711
        %v1728 = vadd.f32 %v1695, %v1712
        %v1729 = vadd.f32 %v1696, %v1713
        %v1730 = vadd.f32 %v1697, %v1714
        %v1731 = vadd.f32 %v1698, %v1715
        %v1732 = vadd.f32 %v1699, %v1716
        %v1733 = vadd.f32 %v1700, %v1717
        %v1734 = vperm.slane %v499, 4
        %v1735 = vmul.f32 %v1551, %v1734
        %v1736 = vmul.f32 %v1552, %v1734
        %v1737 = vmul.f32 %v1553, %v1734
        %v1738 = vmul.f32 %v1554, %v1734
        %v1739 = vmul.f32 %v1555, %v1734
        %v1740 = vmul.f32 %v1556, %v1734
        %v1741 = vmul.f32 %v1557, %v1734
        %v1742 = vmul.f32 %v1558, %v1734
        %v1743 = vmul.f32 %v1559, %v1734
        %v1744 = vmul.f32 %v1560, %v1734
        %v1745 = vmul.f32 %v1561, %v1734
        %v1746 = vmul.f32 %v1562, %v1734
        %v1747 = vmul.f32 %v1563, %v1734
        %v1748 = vmul.f32 %v1564, %v1734
        %v1749 = vmul.f32 %v1565, %v1734
        %v1750 = vmul.f32 %v1566, %v1734
        %v1751 = vadd.f32 %v1718, %v1735
        %v1752 = vadd.f32 %v1719, %v1736
        %v1753 = vadd.f32 %v1720, %v1737
        %v1754 = vadd.f32 %v1721, %v1738
        %v1755 = vadd.f32 %v1722, %v1739
        %v1756 = vadd.f32 %v1723, %v1740
        %v1757 = vadd.f32 %v1724, %v1741
        %v1758 = vadd.f32 %v1725, %v1742
        %v1759 = vadd.f32 %v1726, %v1743
        %v1760 = vadd.f32 %v1727, %v1744
        %v1761 = vadd.f32 %v1728, %v1745
        %v1762 = vadd.f32 %v1729, %v1746
        %v1763 = vadd.f32 %v1730, %v1747
        %v1764 = vadd.f32 %v1731, %v1748
        %v1765 = vadd.f32 %v1732, %v1749
        %v1766 = vadd.f32 %v1733, %v1750
        %v1767 = vperm.slane %v500, 4
        %v1768 = vmul.f32 %v1553, %v1767
        %v1769 = vmul.f32 %v1554, %v1767
        %v1770 = vmul.f32 %v1555, %v1767
        %v1771 = vmul.f32 %v1556, %v1767
        %v1772 = vmul.f32 %v1557, %v1767
        %v1773 = vmul.f32 %v1558, %v1767
        %v1774 = vmul.f32 %v1559, %v1767
        %v1775 = vmul.f32 %v1560, %v1767
        %v1776 = vmul.f32 %v1561, %v1767
        %v1777 = vmul.f32 %v1562, %v1767
        %v1778 = vmul.f32 %v1563, %v1767
        %v1779 = vmul.f32 %v1564, %v1767
        %v1780 = vmul.f32 %v1565, %v1767
        %v1781 = vmul.f32 %v1566, %v1767
        %v1782 = vmul.f32 %v1567, %v1767
        %v1783 = vmul.f32 %v1568, %v1767
        %v1784 = vadd.f32 %v1751, %v1768
        %v1785 = vadd.f32 %v1752, %v1769
        %v1786 = vadd.f32 %v1753, %v1770
        %v1787 = vadd.f32 %v1754, %v1771
        %v1788 = vadd.f32 %v1755, %v1772
        %v1789 = vadd.f32 %v1756, %v1773
        %v1790 = vadd.f32 %v1757, %v1774
        %v1791 = vadd.f32 %v1758, %v1775
        %v1792 = vadd.f32 %v1759, %v1776
        %v1793 = vadd.f32 %v1760, %v1777
        %v1794 = vadd.f32 %v1761, %v1778
        %v1795 = vadd.f32 %v1762, %v1779
        %v1796 = vadd.f32 %v1763, %v1780
        %v1797 = vadd.f32 %v1764, %v1781
        %v1798 = vadd.f32 %v1765, %v1782
        %v1799 = vadd.f32 %v1766, %v1783
        %v1800 = vld [vmem:[#allocation2 + $0xa] sm:$0xff]
        %v1801 = vld [vmem:[#allocation2 + $0x12] sm:$0xff]
        %v1802 = vld [vmem:[#allocation2 + $0x2a] sm:$0xff]
        %v1803 = vld [vmem:[#allocation2 + $0x32] sm:$0xff]
        %v1804 = vld [vmem:[#allocation2 + $0x4a] sm:$0xff]
        %v1805 = vld [vmem:[#allocation2 + $0x52] sm:$0xff]
        %v1806 = vld [vmem:[#allocation2 + $0x6a] sm:$0xff]
        %v1807 = vld [vmem:[#allocation2 + $0x72] sm:$0xff]
        %v1808 = vld [vmem:[#allocation2 + $0x8a] sm:$0xff]
        %v1809 = vld [vmem:[#allocation2 + $0x92] sm:$0xff]
        %v1810 = vld [vmem:[#allocation2 + $0xaa] sm:$0xff]
        %v1811 = vld [vmem:[#allocation2 + $0xb2] sm:$0xff]
        %v1812 = vld [vmem:[#allocation2 + $0xca] sm:$0xff]
        %v1813 = vld [vmem:[#allocation2 + $0xd2] sm:$0xff]
        %v1814 = vld [vmem:[#allocation2 + $0xea] sm:$0xff]
        %v1815 = vld [vmem:[#allocation2 + $0xf2] sm:$0xff]
        %v1816 = vld [vmem:[#allocation2 + $0x10a] sm:$0xff]
        %v1817 = vld [vmem:[#allocation2 + $0x112] sm:$0xff]
        %v1818 = vld [vmem:[#allocation2 + $0x12a] sm:$0xff]
        %v1819 = vld [vmem:[#allocation2 + $0x132] sm:$0xff]
        %v1820 = vld [vmem:[#allocation2 + $0x14a] sm:$0xff]
        %v1821 = vld [vmem:[#allocation2 + $0x152] sm:$0xff]
        %v1822 = vld [vmem:[#allocation2 + $0x16a] sm:$0xff]
        %v1823 = vld [vmem:[#allocation2 + $0x172] sm:$0xff]
        %v1824 = vld [vmem:[#allocation2 + $0x18a] sm:$0xff]
        %v1825 = vld [vmem:[#allocation2 + $0x192] sm:$0xff]
        %v1826 = vld [vmem:[#allocation2 + $0x1aa] sm:$0xff]
        %v1827 = vld [vmem:[#allocation2 + $0x1b2] sm:$0xff]
        %v1828 = vperm.slane %v494, 5
        %v1829 = vmul.f32 %v1800, %v1828
        %v1830 = vmul.f32 %v1801, %v1828
        %v1831 = vmul.f32 %v1802, %v1828
        %v1832 = vmul.f32 %v1803, %v1828
        %v1833 = vmul.f32 %v1804, %v1828
        %v1834 = vmul.f32 %v1805, %v1828
        %v1835 = vmul.f32 %v1806, %v1828
        %v1836 = vmul.f32 %v1807, %v1828
        %v1837 = vmul.f32 %v1808, %v1828
        %v1838 = vmul.f32 %v1809, %v1828
        %v1839 = vmul.f32 %v1810, %v1828
        %v1840 = vmul.f32 %v1811, %v1828
        %v1841 = vmul.f32 %v1812, %v1828
        %v1842 = vmul.f32 %v1813, %v1828
        %v1843 = vmul.f32 %v1814, %v1828
        %v1844 = vmul.f32 %v1815, %v1828
        %v1845 = vadd.f32 %v1784, %v1829
        %v1846 = vadd.f32 %v1785, %v1830
        %v1847 = vadd.f32 %v1786, %v1831
        %v1848 = vadd.f32 %v1787, %v1832
        %v1849 = vadd.f32 %v1788, %v1833
        %v1850 = vadd.f32 %v1789, %v1834
        %v1851 = vadd.f32 %v1790, %v1835
        %v1852 = vadd.f32 %v1791, %v1836
        %v1853 = vadd.f32 %v1792, %v1837
        %v1854 = vadd.f32 %v1793, %v1838
        %v1855 = vadd.f32 %v1794, %v1839
        %v1856 = vadd.f32 %v1795, %v1840
        %v1857 = vadd.f32 %v1796, %v1841
        %v1858 = vadd.f32 %v1797, %v1842
        %v1859 = vadd.f32 %v1798, %v1843
        %v1860 = vadd.f32 %v1799, %v1844
        %v1861 = vperm.slane %v495, 5
        %v1862 = vmul.f32 %v1802, %v1861
        %v1863 = vmul.f32 %v1803, %v1861
        %v1864 = vmul.f32 %v1804, %v1861
        %v1865 = vmul.f32 %v1805, %v1861
        %v1866 = vmul.f32 %v1806, %v1861
        %v1867 = vmul.f32 %v1807, %v1861
        %v1868 = vmul.f32 %v1808, %v1861
        %v1869 = vmul.f32 %v1809, %v1861
        %v1870 = vmul.f32 %v1810, %v1861
        %v1871 = vmul.f32 %v1811, %v1861
        %v1872 = vmul.f32 %v1812, %v1861
        %v1873 = vmul.f32 %v1813, %v1861
        %v1874 = vmul.f32 %v1814, %v1861
        %v1875 = vmul.f32 %v1815, %v1861
        %v1876 = vmul.f32 %v1816, %v1861
        %v1877 = vmul.f32 %v1817, %v1861
        %v1878 = vadd.f32 %v1845, %v1862
        %v1879 = vadd.f32 %v1846, %v1863
        %v1880 = vadd.f32 %v1847, %v1864
        %v1881 = vadd.f32 %v1848, %v1865
        %v1882 = vadd.f32 %v1849, %v1866
        %v1883 = vadd.f32 %v1850, %v1867
        %v1884 = vadd.f32 %v1851, %v1868
        %v1885 = vadd.f32 %v1852, %v1869
        %v1886 = vadd.f32 %v1853, %v1870
        %v1887 = vadd.f32 %v1854, %v1871
        %v1888 = vadd.f32 %v1855, %v1872
        %v1889 = vadd.f32 %v1856, %v1873
        %v1890 = vadd.f32 %v1857, %v1874
        %v1891 = vadd.f32 %v1858, %v1875
        %v1892 = vadd.f32 %v1859, %v1876
        %v1893 = vadd.f32 %v1860, %v1877
        %v1894 = vperm.slane %v496, 5
        %v1895 = vmul.f32 %v1804, %v1894
        %v1896 = vmul.f32 %v1805, %v1894
        %v1897 = vmul.f32 %v1806, %v1894
        %v1898 = vmul.f32 %v1807, %v1894
        %v1899 = vmul.f32 %v1808, %v1894
        %v1900 = vmul.f32 %v1809, %v1894
        %v1901 = vmul.f32 %v1810, %v1894
        %v1902 = vmul.f32 %v1811, %v1894
        %v1903 = vmul.f32 %v1812, %v1894
        %v1904 = vmul.f32 %v1813, %v1894
        %v1905 = vmul.f32 %v1814, %v1894
        %v1906 = vmul.f32 %v1815, %v1894
        %v1907 = vmul.f32 %v1816, %v1894
        %v1908 = vmul.f32 %v1817, %v1894
        %v1909 = vmul.f32 %v1818, %v1894
        %v1910 = vmul.f32 %v1819, %v1894
        %v1911 = vadd.f32 %v1878, %v1895
        %v1912 = vadd.f32 %v1879, %v1896
        %v1913 = vadd.f32 %v1880, %v1897
        %v1914 = vadd.f32 %v1881, %v1898
        %v1915 = vadd.f32 %v1882, %v1899
        %v1916 = vadd.f32 %v1883, %v1900
        %v1917 = vadd.f32 %v1884, %v1901
        %v1918 = vadd.f32 %v1885, %v1902
        %v1919 = vadd.f32 %v1886, %v1903
        %v1920 = vadd.f32 %v1887, %v1904
        %v1921 = vadd.f32 %v1888, %v1905
        %v1922 = vadd.f32 %v1889, %v1906
        %v1923 = vadd.f32 %v1890, %v1907
        %v1924 = vadd.f32 %v1891, %v1908
        %v1925 = vadd.f32 %v1892, %v1909
        %v1926 = vadd.f32 %v1893, %v1910
        %v1927 = vperm.slane %v497, 5
        %v1928 = vmul.f32 %v1806, %v1927
        %v1929 = vmul.f32 %v1807, %v1927
        %v1930 = vmul.f32 %v1808, %v1927
        %v1931 = vmul.f32 %v1809, %v1927
        %v1932 = vmul.f32 %v1810, %v1927
        %v1933 = vmul.f32 %v1811, %v1927
        %v1934 = vmul.f32 %v1812, %v1927
        %v1935 = vmul.f32 %v1813, %v1927
        %v1936 = vmul.f32 %v1814, %v1927
        %v1937 = vmul.f32 %v1815, %v1927
        %v1938 = vmul.f32 %v1816, %v1927
        %v1939 = vmul.f32 %v1817, %v1927
        %v1940 = vmul.f32 %v1818, %v1927
        %v1941 = vmul.f32 %v1819, %v1927
        %v1942 = vmul.f32 %v1820, %v1927
        %v1943 = vmul.f32 %v1821, %v1927
        %v1944 = vadd.f32 %v1911, %v1928
        %v1945 = vadd.f32 %v1912, %v1929
        %v1946 = vadd.f32 %v1913, %v1930
        %v1947 = vadd.f32 %v1914, %v1931
        %v1948 = vadd.f32 %v1915, %v1932
        %v1949 = vadd.f32 %v1916, %v1933
        %v1950 = vadd.f32 %v1917, %v1934
        %v1951 = vadd.f32 %v1918, %v1935
        %v1952 = vadd.f32 %v1919, %v1936
        %v1953 = vadd.f32 %v1920, %v1937
        %v1954 = vadd.f32 %v1921, %v1938
        %v1955 = vadd.f32 %v1922, %v1939
        %v1956 = vadd.f32 %v1923, %v1940
        %v1957 = vadd.f32 %v1924, %v1941
        %v1958 = vadd.f32 %v1925, %v1942
        %v1959 = vadd.f32 %v1926, %v1943
        %v1960 = vperm.slane %v498, 5
        %v1961 = vmul.f32 %v1808, %v1960
        %v1962 = vmul.f32 %v1809, %v1960
        %v1963 = vmul.f32 %v1810, %v1960
        %v1964 = vmul.f32 %v1811, %v1960
        %v1965 = vmul.f32 %v1812, %v1960
        %v1966 = vmul.f32 %v1813, %v1960
        %v1967 = vmul.f32 %v1814, %v1960
        %v1968 = vmul.f32 %v1815, %v1960
        %v1969 = vmul.f32 %v1816, %v1960
        %v1970 = vmul.f32 %v1817, %v1960
        %v1971 = vmul.f32 %v1818, %v1960
        %v1972 = vmul.f32 %v1819, %v1960
        %v1973 = vmul.f32 %v1820, %v1960
        %v1974 = vmul.f32 %v1821, %v1960
        %v1975 = vmul.f32 %v1822, %v1960
        %v1976 = vmul.f32 %v1823, %v1960
        %v1977 = vadd.f32 %v1944, %v1961
        %v1978 = vadd.f32 %v1945, %v1962
        %v1979 = vadd.f32 %v1946, %v1963
        %v1980 = vadd.f32 %v1947, %v1964
        %v1981 = vadd.f32 %v1948, %v1965
        %v1982 = vadd.f32 %v1949, %v1966
        %v1983 = vadd.f32 %v1950, %v1967
        %v1984 = vadd.f32 %v1951, %v1968
        %v1985 = vadd.f32 %v1952, %v1969
        %v1986 = vadd.f32 %v1953, %v1970
        %v1987 = vadd.f32 %v1954, %v1971
        %v1988 = vadd.f32 %v1955, %v1972
        %v1989 = vadd.f32 %v1956, %v1973
        %v1990 = vadd.f32 %v1957, %v1974
        %v1991 = vadd.f32 %v1958, %v1975
        %v1992 = vadd.f32 %v1959, %v1976
        %v1993 = vperm.slane %v499, 5
        %v1994 = vmul.f32 %v1810, %v1993
        %v1995 = vmul.f32 %v1811, %v1993
        %v1996 = vmul.f32 %v1812, %v1993
        %v1997 = vmul.f32 %v1813, %v1993
        %v1998 = vmul.f32 %v1814, %v1993
        %v1999 = vmul.f32 %v1815, %v1993
        %v2000 = vmul.f32 %v1816, %v1993
        %v2001 = vmul.f32 %v1817, %v1993
        %v2002 = vmul.f32 %v1818, %v1993
        %v2003 = vmul.f32 %v1819, %v1993
        %v2004 = vmul.f32 %v1820, %v1993
        %v2005 = vmul.f32 %v1821, %v1993
        %v2006 = vmul.f32 %v1822, %v1993
        %v2007 = vmul.f32 %v1823, %v1993
        %v2008 = vmul.f32 %v1824, %v1993
        %v2009 = vmul.f32 %v1825, %v1993
        %v2010 = vadd.f32 %v1977, %v1994
        %v2011 = vadd.f32 %v1978, %v1995
        %v2012 = vadd.f32 %v1979, %v1996
        %v2013 = vadd.f32 %v1980, %v1997
        %v2014 = vadd.f32 %v1981, %v1998
        %v2015 = vadd.f32 %v1982, %v1999
        %v2016 = vadd.f32 %v1983, %v2000
        %v2017 = vadd.f32 %v1984, %v2001
        %v2018 = vadd.f32 %v1985, %v2002
        %v2019 = vadd.f32 %v1986, %v2003
        %v2020 = vadd.f32 %v1987, %v2004
        %v2021 = vadd.f32 %v1988, %v2005
        %v2022 = vadd.f32 %v1989, %v2006
        %v2023 = vadd.f32 %v1990, %v2007
        %v2024 = vadd.f32 %v1991, %v2008
        %v2025 = vadd.f32 %v1992, %v2009
        %v2026 = vperm.slane %v500, 5
        %v2027 = vmul.f32 %v1812, %v2026
        %v2028 = vmul.f32 %v1813, %v2026
        %v2029 = vmul.f32 %v1814, %v2026
        %v2030 = vmul.f32 %v1815, %v2026
        %v2031 = vmul.f32 %v1816, %v2026
        %v2032 = vmul.f32 %v1817, %v2026
        %v2033 = vmul.f32 %v1818, %v2026
        %v2034 = vmul.f32 %v1819, %v2026
        %v2035 = vmul.f32 %v1820, %v2026
        %v2036 = vmul.f32 %v1821, %v2026
        %v2037 = vmul.f32 %v1822, %v2026
        %v2038 = vmul.f32 %v1823, %v2026
        %v2039 = vmul.f32 %v1824, %v2026
        %v2040 = vmul.f32 %v1825, %v2026
        %v2041 = vmul.f32 %v1826, %v2026
        %v2042 = vmul.f32 %v1827, %v2026
        %v2043 = vadd.f32 %v2010, %v2027
        %v2044 = vadd.f32 %v2011, %v2028
        %v2045 = vadd.f32 %v2012, %v2029
        %v2046 = vadd.f32 %v2013, %v2030
        %v2047 = vadd.f32 %v2014, %v2031
        %v2048 = vadd.f32 %v2015, %v2032
        %v2049 = vadd.f32 %v2016, %v2033
        %v2050 = vadd.f32 %v2017, %v2034
        %v2051 = vadd.f32 %v2018, %v2035
        %v2052 = vadd.f32 %v2019, %v2036
        %v2053 = vadd.f32 %v2020, %v2037
        %v2054 = vadd.f32 %v2021, %v2038
        %v2055 = vadd.f32 %v2022, %v2039
        %v2056 = vadd.f32 %v2023, %v2040
        %v2057 = vadd.f32 %v2024, %v2041
        %v2058 = vadd.f32 %v2025, %v2042
        %v2059 = vld [vmem:[#allocation2 + $0xb] sm:$0xff]
        %v2060 = vld [vmem:[#allocation2 + $0x13] sm:$0xff]
        %v2061 = vld [vmem:[#allocation2 + $0x2b] sm:$0xff]
        %v2062 = vld [vmem:[#allocation2 + $0x33] sm:$0xff]
        %v2063 = vld [vmem:[#allocation2 + $0x4b] sm:$0xff]
        %v2064 = vld [vmem:[#allocation2 + $0x53] sm:$0xff]
        %v2065 = vld [vmem:[#allocation2 + $0x6b] sm:$0xff]
        %v2066 = vld [vmem:[#allocation2 + $0x73] sm:$0xff]
        %v2067 = vld [vmem:[#allocation2 + $0x8b] sm:$0xff]
        %v2068 = vld [vmem:[#allocation2 + $0x93] sm:$0xff]
        %v2069 = vld [vmem:[#allocation2 + $0xab] sm:$0xff]
        %v2070 = vld [vmem:[#allocation2 + $0xb3] sm:$0xff]
        %v2071 = vld [vmem:[#allocation2 + $0xcb] sm:$0xff]
        %v2072 = vld [vmem:[#allocation2 + $0xd3] sm:$0xff]
        %v2073 = vld [vmem:[#allocation2 + $0xeb] sm:$0xff]
        %v2074 = vld [vmem:[#allocation2 + $0xf3] sm:$0xff]
        %v2075 = vld [vmem:[#allocation2 + $0x10b] sm:$0xff]
        %v2076 = vld [vmem:[#allocation2 + $0x113] sm:$0xff]
        %v2077 = vld [vmem:[#allocation2 + $0x12b] sm:$0xff]
        %v2078 = vld [vmem:[#allocation2 + $0x133] sm:$0xff]
        %v2079 = vld [vmem:[#allocation2 + $0x14b] sm:$0xff]
        %v2080 = vld [vmem:[#allocation2 + $0x153] sm:$0xff]
        %v2081 = vld [vmem:[#allocation2 + $0x16b] sm:$0xff]
        %v2082 = vld [vmem:[#allocation2 + $0x173] sm:$0xff]
        %v2083 = vld [vmem:[#allocation2 + $0x18b] sm:$0xff]
        %v2084 = vld [vmem:[#allocation2 + $0x193] sm:$0xff]
        %v2085 = vld [vmem:[#allocation2 + $0x1ab] sm:$0xff]
        %v2086 = vld [vmem:[#allocation2 + $0x1b3] sm:$0xff]
        %v2087 = vperm.slane %v494, 6
        %v2088 = vmul.f32 %v2059, %v2087
        %v2089 = vmul.f32 %v2060, %v2087
        %v2090 = vmul.f32 %v2061, %v2087
        %v2091 = vmul.f32 %v2062, %v2087
        %v2092 = vmul.f32 %v2063, %v2087
        %v2093 = vmul.f32 %v2064, %v2087
        %v2094 = vmul.f32 %v2065, %v2087
        %v2095 = vmul.f32 %v2066, %v2087
        %v2096 = vmul.f32 %v2067, %v2087
        %v2097 = vmul.f32 %v2068, %v2087
        %v2098 = vmul.f32 %v2069, %v2087
        %v2099 = vmul.f32 %v2070, %v2087
        %v2100 = vmul.f32 %v2071, %v2087
        %v2101 = vmul.f32 %v2072, %v2087
        %v2102 = vmul.f32 %v2073, %v2087
        %v2103 = vmul.f32 %v2074, %v2087
        %v2104 = vadd.f32 %v2043, %v2088
        %v2105 = vadd.f32 %v2044, %v2089
        %v2106 = vadd.f32 %v2045, %v2090
        %v2107 = vadd.f32 %v2046, %v2091
        %v2108 = vadd.f32 %v2047, %v2092
        %v2109 = vadd.f32 %v2048, %v2093
        %v2110 = vadd.f32 %v2049, %v2094
        %v2111 = vadd.f32 %v2050, %v2095
        %v2112 = vadd.f32 %v2051, %v2096
        %v2113 = vadd.f32 %v2052, %v2097
        %v2114 = vadd.f32 %v2053, %v2098
        %v2115 = vadd.f32 %v2054, %v2099
        %v2116 = vadd.f32 %v2055, %v2100
        %v2117 = vadd.f32 %v2056, %v2101
        %v2118 = vadd.f32 %v2057, %v2102
        %v2119 = vadd.f32 %v2058, %v2103
        %v2120 = vperm.slane %v495, 6
        %v2121 = vmul.f32 %v2061, %v2120
        %v2122 = vmul.f32 %v2062, %v2120
        %v2123 = vmul.f32 %v2063, %v2120
        %v2124 = vmul.f32 %v2064, %v2120
        %v2125 = vmul.f32 %v2065, %v2120
        %v2126 = vmul.f32 %v2066, %v2120
        %v2127 = vmul.f32 %v2067, %v2120
        %v2128 = vmul.f32 %v2068, %v2120
        %v2129 = vmul.f32 %v2069, %v2120
        %v2130 = vmul.f32 %v2070, %v2120
        %v2131 = vmul.f32 %v2071, %v2120
        %v2132 = vmul.f32 %v2072, %v2120
        %v2133 = vmul.f32 %v2073, %v2120
        %v2134 = vmul.f32 %v2074, %v2120
        %v2135 = vmul.f32 %v2075, %v2120
        %v2136 = vmul.f32 %v2076, %v2120
        %v2137 = vadd.f32 %v2104, %v2121
        %v2138 = vadd.f32 %v2105, %v2122
        %v2139 = vadd.f32 %v2106, %v2123
        %v2140 = vadd.f32 %v2107, %v2124
        %v2141 = vadd.f32 %v2108, %v2125
        %v2142 = vadd.f32 %v2109, %v2126
        %v2143 = vadd.f32 %v2110, %v2127
        %v2144 = vadd.f32 %v2111, %v2128
        %v2145 = vadd.f32 %v2112, %v2129
        %v2146 = vadd.f32 %v2113, %v2130
        %v2147 = vadd.f32 %v2114, %v2131
        %v2148 = vadd.f32 %v2115, %v2132
        %v2149 = vadd.f32 %v2116, %v2133
        %v2150 = vadd.f32 %v2117, %v2134
        %v2151 = vadd.f32 %v2118, %v2135
        %v2152 = vadd.f32 %v2119, %v2136
        %v2153 = vperm.slane %v496, 6
        %v2154 = vmul.f32 %v2063, %v2153
        %v2155 = vmul.f32 %v2064, %v2153
        %v2156 = vmul.f32 %v2065, %v2153
        %v2157 = vmul.f32 %v2066, %v2153
        %v2158 = vmul.f32 %v2067, %v2153
        %v2159 = vmul.f32 %v2068, %v2153
        %v2160 = vmul.f32 %v2069, %v2153
        %v2161 = vmul.f32 %v2070, %v2153
        %v2162 = vmul.f32 %v2071, %v2153
        %v2163 = vmul.f32 %v2072, %v2153
        %v2164 = vmul.f32 %v2073, %v2153
        %v2165 = vmul.f32 %v2074, %v2153
        %v2166 = vmul.f32 %v2075, %v2153
        %v2167 = vmul.f32 %v2076, %v2153
        %v2168 = vmul.f32 %v2077, %v2153
        %v2169 = vmul.f32 %v2078, %v2153
        %v2170 = vadd.f32 %v2137, %v2154
        %v2171 = vadd.f32 %v2138, %v2155
        %v2172 = vadd.f32 %v2139, %v2156
        %v2173 = vadd.f32 %v2140, %v2157
        %v2174 = vadd.f32 %v2141, %v2158
        %v2175 = vadd.f32 %v2142, %v2159
        %v2176 = vadd.f32 %v2143, %v2160
        %v2177 = vadd.f32 %v2144, %v2161
        %v2178 = vadd.f32 %v2145, %v2162
        %v2179 = vadd.f32 %v2146, %v2163
        %v2180 = vadd.f32 %v2147, %v2164
        %v2181 = vadd.f32 %v2148, %v2165
        %v2182 = vadd.f32 %v2149, %v2166
        %v2183 = vadd.f32 %v2150, %v2167
        %v2184 = vadd.f32 %v2151, %v2168
        %v2185 = vadd.f32 %v2152, %v2169
        %v2186 = vperm.slane %v497, 6
        %v2187 = vmul.f32 %v2065, %v2186
        %v2188 = vmul.f32 %v2066, %v2186
        %v2189 = vmul.f32 %v2067, %v2186
        %v2190 = vmul.f32 %v2068, %v2186
        %v2191 = vmul.f32 %v2069, %v2186
        %v2192 = vmul.f32 %v2070, %v2186
        %v2193 = vmul.f32 %v2071, %v2186
        %v2194 = vmul.f32 %v2072, %v2186
        %v2195 = vmul.f32 %v2073, %v2186
        %v2196 = vmul.f32 %v2074, %v2186
        %v2197 = vmul.f32 %v2075, %v2186
        %v2198 = vmul.f32 %v2076, %v2186
        %v2199 = vmul.f32 %v2077, %v2186
        %v2200 = vmul.f32 %v2078, %v2186
        %v2201 = vmul.f32 %v2079, %v2186
        %v2202 = vmul.f32 %v2080, %v2186
        %v2203 = vadd.f32 %v2170, %v2187
        %v2204 = vadd.f32 %v2171, %v2188
        %v2205 = vadd.f32 %v2172, %v2189
        %v2206 = vadd.f32 %v2173, %v2190
        %v2207 = vadd.f32 %v2174, %v2191
        %v2208 = vadd.f32 %v2175, %v2192
        %v2209 = vadd.f32 %v2176, %v2193
        %v2210 = vadd.f32 %v2177, %v2194
        %v2211 = vadd.f32 %v2178, %v2195
        %v2212 = vadd.f32 %v2179, %v2196
        %v2213 = vadd.f32 %v2180, %v2197
        %v2214 = vadd.f32 %v2181, %v2198
        %v2215 = vadd.f32 %v2182, %v2199
        %v2216 = vadd.f32 %v2183, %v2200
        %v2217 = vadd.f32 %v2184, %v2201
        %v2218 = vadd.f32 %v2185, %v2202
        %v2219 = vperm.slane %v498, 6
        %v2220 = vmul.f32 %v2067, %v2219
        %v2221 = vmul.f32 %v2068, %v2219
        %v2222 = vmul.f32 %v2069, %v2219
        %v2223 = vmul.f32 %v2070, %v2219
        %v2224 = vmul.f32 %v2071, %v2219
        %v2225 = vmul.f32 %v2072, %v2219
        %v2226 = vmul.f32 %v2073, %v2219
        %v2227 = vmul.f32 %v2074, %v2219
        %v2228 = vmul.f32 %v2075, %v2219
        %v2229 = vmul.f32 %v2076, %v2219
        %v2230 = vmul.f32 %v2077, %v2219
        %v2231 = vmul.f32 %v2078, %v2219
        %v2232 = vmul.f32 %v2079, %v2219
        %v2233 = vmul.f32 %v2080, %v2219
        %v2234 = vmul.f32 %v2081, %v2219
        %v2235 = vmul.f32 %v2082, %v2219
        %v2236 = vadd.f32 %v2203, %v2220
        %v2237 = vadd.f32 %v2204, %v2221
        %v2238 = vadd.f32 %v2205, %v2222
        %v2239 = vadd.f32 %v2206, %v2223
        %v2240 = vadd.f32 %v2207, %v2224
        %v2241 = vadd.f32 %v2208, %v2225
        %v2242 = vadd.f32 %v2209, %v2226
        %v2243 = vadd.f32 %v2210, %v2227
        %v2244 = vadd.f32 %v2211, %v2228
        %v2245 = vadd.f32 %v2212, %v2229
        %v2246 = vadd.f32 %v2213, %v2230
        %v2247 = vadd.f32 %v2214, %v2231
        %v2248 = vadd.f32 %v2215, %v2232
        %v2249 = vadd.f32 %v2216, %v2233
        %v2250 = vadd.f32 %v2217, %v2234
        %v2251 = vadd.f32 %v2218, %v2235
        %v2252 = vperm.slane %v499, 6
        %v2253 = vmul.f32 %v2069, %v2252
        %v2254 = vmul.f32 %v2070, %v2252
        %v2255 = vmul.f32 %v2071, %v2252
        %v2256 = vmul.f32 %v2072, %v2252
        %v2257 = vmul.f32 %v2073, %v2252
        %v2258 = vmul.f32 %v2074, %v2252
        %v2259 = vmul.f32 %v2075, %v2252
        %v2260 = vmul.f32 %v2076, %v2252
        %v2261 = vmul.f32 %v2077, %v2252
        %v2262 = vmul.f32 %v2078, %v2252
        %v2263 = vmul.f32 %v2079, %v2252
        %v2264 = vmul.f32 %v2080, %v2252
        %v2265 = vmul.f32 %v2081, %v2252
        %v2266 = vmul.f32 %v2082, %v2252
        %v2267 = vmul.f32 %v2083, %v2252
        %v2268 = vmul.f32 %v2084, %v2252
        %v2269 = vadd.f32 %v2236, %v2253
        %v2270 = vadd.f32 %v2237, %v2254
        %v2271 = vadd.f32 %v2238, %v2255
        %v2272 = vadd.f32 %v2239, %v2256
        %v2273 = vadd.f32 %v2240, %v2257
        %v2274 = vadd.f32 %v2241, %v2258
        %v2275 = vadd.f32 %v2242, %v2259
        %v2276 = vadd.f32 %v2243, %v2260
        %v2277 = vadd.f32 %v2244, %v2261
        %v2278 = vadd.f32 %v2245, %v2262
        %v2279 = vadd.f32 %v2246, %v2263
        %v2280 = vadd.f32 %v2247, %v2264
        %v2281 = vadd.f32 %v2248, %v2265
        %v2282 = vadd.f32 %v2249, %v2266
        %v2283 = vadd.f32 %v2250, %v2267
        %v2284 = vadd.f32 %v2251, %v2268
        %v2285 = vperm.slane %v500, 6
        %v2286 = vmul.f32 %v2071, %v2285
        %v2287 = vmul.f32 %v2072, %v2285
        %v2288 = vmul.f32 %v2073, %v2285
        %v2289 = vmul.f32 %v2074, %v2285
        %v2290 = vmul.f32 %v2075, %v2285
        %v2291 = vmul.f32 %v2076, %v2285
        %v2292 = vmul.f32 %v2077, %v2285
        %v2293 = vmul.f32 %v2078, %v2285
        %v2294 = vmul.f32 %v2079, %v2285
        %v2295 = vmul.f32 %v2080, %v2285
        %v2296 = vmul.f32 %v2081, %v2285
        %v2297 = vmul.f32 %v2082, %v2285
        %v2298 = vmul.f32 %v2083, %v2285
        %v2299 = vmul.f32 %v2084, %v2285
        %v2300 = vmul.f32 %v2085, %v2285
        %v2301 = vmul.f32 %v2086, %v2285
        %v2302 = vadd.f32 %v2269, %v2286
        %v2303 = vadd.f32 %v2270, %v2287
        %v2304 = vadd.f32 %v2271, %v2288
        %v2305 = vadd.f32 %v2272, %v2289
        %v2306 = vadd.f32 %v2273, %v2290
        %v2307 = vadd.f32 %v2274, %v2291
        %v2308 = vadd.f32 %v2275, %v2292
        %v2309 = vadd.f32 %v2276, %v2293
        %v2310 = vadd.f32 %v2277, %v2294
        %v2311 = vadd.f32 %v2278, %v2295
        %v2312 = vadd.f32 %v2279, %v2296
        %v2313 = vadd.f32 %v2280, %v2297
        %v2314 = vadd.f32 %v2281, %v2298
        %v2315 = vadd.f32 %v2282, %v2299
        %v2316 = vadd.f32 %v2283, %v2300
        %v2317 = vadd.f32 %v2284, %v2301
        %v2318 = vsel %vm369, %v2302, 0.0
        %2319 = vadd.xlane.f32.xlu0 %v2318
        %v2320 = vpop.xlane.xlu0 %2319
        %v2321 = vsel %vm369, %v2303, 0.0
        %2322 = vadd.xlane.f32.xlu0 %v2321
        %v2323 = vpop.xlane.xlu0 %2322
        %v2324 = vsel %vm369, %v2304, 0.0
        %2325 = vadd.xlane.f32.xlu0 %v2324
        %v2326 = vpop.xlane.xlu0 %2325
        %v2327 = vsel %vm369, %v2305, 0.0
        %2328 = vadd.xlane.f32.xlu0 %v2327
        %v2329 = vpop.xlane.xlu0 %2328
        %v2330 = vsel %vm369, %v2306, 0.0
        %2331 = vadd.xlane.f32.xlu0 %v2330
        %v2332 = vpop.xlane.xlu0 %2331
        %v2333 = vsel %vm369, %v2307, 0.0
        %2334 = vadd.xlane.f32.xlu0 %v2333
        %v2335 = vpop.xlane.xlu0 %2334
        %v2336 = vsel %vm369, %v2308, 0.0
        %2337 = vadd.xlane.f32.xlu0 %v2336
        %v2338 = vpop.xlane.xlu0 %2337
        %v2339 = vsel %vm369, %v2309, 0.0
        %2340 = vadd.xlane.f32.xlu0 %v2339
        %v2341 = vpop.xlane.xlu0 %2340
        %v2342 = vsel %vm369, %v2310, 0.0
        %2343 = vadd.xlane.f32.xlu0 %v2342
        %v2344 = vpop.xlane.xlu0 %2343
        %v2345 = vsel %vm369, %v2311, 0.0
        %2346 = vadd.xlane.f32.xlu0 %v2345
        %v2347 = vpop.xlane.xlu0 %2346
        %v2348 = vsel %vm369, %v2312, 0.0
        %2349 = vadd.xlane.f32.xlu0 %v2348
        %v2350 = vpop.xlane.xlu0 %2349
        %v2351 = vsel %vm369, %v2313, 0.0
        %2352 = vadd.xlane.f32.xlu0 %v2351
        %v2353 = vpop.xlane.xlu0 %2352
        %v2354 = vsel %vm369, %v2314, 0.0
        %2355 = vadd.xlane.f32.xlu0 %v2354
        %v2356 = vpop.xlane.xlu0 %2355
        %v2357 = vsel %vm369, %v2315, 0.0
        %2358 = vadd.xlane.f32.xlu0 %v2357
        %v2359 = vpop.xlane.xlu0 %2358
        %v2360 = vsel %vm369, %v2316, 0.0
        %2361 = vadd.xlane.f32.xlu0 %v2360
        %v2362 = vpop.xlane.xlu0 %2361
        %v2363 = vsel %vm369, %v2317, 0.0
        %2364 = vadd.xlane.f32.xlu0 %v2363
        %v2365 = vpop.xlane.xlu0 %2364
        %v2366 = vmul.f32 %v2320, 0.0625
        %v2367 = vmul.f32 %v2323, 0.0625
        %v2368 = vmul.f32 %v2326, 0.0625
        %v2369 = vmul.f32 %v2329, 0.0625
        %v2370 = vmul.f32 %v2332, 0.0625
        %v2371 = vmul.f32 %v2335, 0.0625
        %v2372 = vmul.f32 %v2338, 0.0625
        %v2373 = vmul.f32 %v2341, 0.0625
        %v2374 = vmul.f32 %v2344, 0.0625
        %v2375 = vmul.f32 %v2347, 0.0625
        %v2376 = vmul.f32 %v2350, 0.0625
        %v2377 = vmul.f32 %v2353, 0.0625
        %v2378 = vmul.f32 %v2356, 0.0625
        %v2379 = vmul.f32 %v2359, 0.0625
        %v2380 = vmul.f32 %v2362, 0.0625
        %v2381 = vmul.f32 %v2365, 0.0625
        %v2382 = vsub.f32 %v2302, %v2366
        %v2383 = vsub.f32 %v2303, %v2367
        %v2384 = vsub.f32 %v2304, %v2368
        %v2385 = vsub.f32 %v2305, %v2369
        %v2386 = vsub.f32 %v2306, %v2370
        %v2387 = vsub.f32 %v2307, %v2371
        %v2388 = vsub.f32 %v2308, %v2372
        %v2389 = vsub.f32 %v2309, %v2373
        %v2390 = vsub.f32 %v2310, %v2374
        %v2391 = vsub.f32 %v2311, %v2375
        %v2392 = vsub.f32 %v2312, %v2376
        %v2393 = vsub.f32 %v2313, %v2377
        %v2394 = vsub.f32 %v2314, %v2378
        %v2395 = vsub.f32 %v2315, %v2379
        %v2396 = vsub.f32 %v2316, %v2380
        %v2397 = vsub.f32 %v2317, %v2381
        %v2398 = vmul.f32 %v2382, %v2382
        %v2399 = vmul.f32 %v2383, %v2383
        %v2400 = vmul.f32 %v2384, %v2384
        %v2401 = vmul.f32 %v2385, %v2385
        %v2402 = vmul.f32 %v2386, %v2386
        %v2403 = vmul.f32 %v2387, %v2387
        %v2404 = vmul.f32 %v2388, %v2388
        %v2405 = vmul.f32 %v2389, %v2389
        %v2406 = vmul.f32 %v2390, %v2390
        %v2407 = vmul.f32 %v2391, %v2391
        %v2408 = vmul.f32 %v2392, %v2392
        %v2409 = vmul.f32 %v2393, %v2393
        %v2410 = vmul.f32 %v2394, %v2394
        %v2411 = vmul.f32 %v2395, %v2395
        %v2412 = vmul.f32 %v2396, %v2396
        %v2413 = vmul.f32 %v2397, %v2397
        %v2414 = vsel %vm369, %v2398, 0.0
        %2415 = vadd.xlane.f32.xlu0 %v2414
        %v2416 = vpop.xlane.xlu0 %2415
        %v2417 = vsel %vm369, %v2399, 0.0
        %2418 = vadd.xlane.f32.xlu0 %v2417
        %v2419 = vpop.xlane.xlu0 %2418
        %v2420 = vsel %vm369, %v2400, 0.0
        %2421 = vadd.xlane.f32.xlu0 %v2420
        %v2422 = vpop.xlane.xlu0 %2421
        %v2423 = vsel %vm369, %v2401, 0.0
        %2424 = vadd.xlane.f32.xlu0 %v2423
        %v2425 = vpop.xlane.xlu0 %2424
        %v2426 = vsel %vm369, %v2402, 0.0
        %2427 = vadd.xlane.f32.xlu0 %v2426
        %v2428 = vpop.xlane.xlu0 %2427
        %v2429 = vsel %vm369, %v2403, 0.0
        %2430 = vadd.xlane.f32.xlu0 %v2429
        %v2431 = vpop.xlane.xlu0 %2430
        %v2432 = vsel %vm369, %v2404, 0.0
        %2433 = vadd.xlane.f32.xlu0 %v2432
        %v2434 = vpop.xlane.xlu0 %2433
        %v2435 = vsel %vm369, %v2405, 0.0
        %2436 = vadd.xlane.f32.xlu0 %v2435
        %v2437 = vpop.xlane.xlu0 %2436
        %v2438 = vsel %vm369, %v2406, 0.0
        %2439 = vadd.xlane.f32.xlu0 %v2438
        %v2440 = vpop.xlane.xlu0 %2439
        %v2441 = vsel %vm369, %v2407, 0.0
        %2442 = vadd.xlane.f32.xlu0 %v2441
        %v2443 = vpop.xlane.xlu0 %2442
        %v2444 = vsel %vm369, %v2408, 0.0
        %2445 = vadd.xlane.f32.xlu0 %v2444
        %v2446 = vpop.xlane.xlu0 %2445
        %v2447 = vsel %vm369, %v2409, 0.0
        %2448 = vadd.xlane.f32.xlu0 %v2447
        %v2449 = vpop.xlane.xlu0 %2448
        %v2450 = vsel %vm369, %v2410, 0.0
        %2451 = vadd.xlane.f32.xlu0 %v2450
        %v2452 = vpop.xlane.xlu0 %2451
        %v2453 = vsel %vm369, %v2411, 0.0
        %2454 = vadd.xlane.f32.xlu0 %v2453
        %v2455 = vpop.xlane.xlu0 %2454
        %v2456 = vsel %vm369, %v2412, 0.0
        %2457 = vadd.xlane.f32.xlu0 %v2456
        %v2458 = vpop.xlane.xlu0 %2457
        %v2459 = vsel %vm369, %v2413, 0.0
        %2460 = vadd.xlane.f32.xlu0 %v2459
        %v2461 = vpop.xlane.xlu0 %2460
        %v2462 = vmul.f32 %v2416, 0.0625
        %v2463 = vmul.f32 %v2419, 0.0625
        %v2464 = vmul.f32 %v2422, 0.0625
        %v2465 = vmul.f32 %v2425, 0.0625
        %v2466 = vmul.f32 %v2428, 0.0625
        %v2467 = vmul.f32 %v2431, 0.0625
        %v2468 = vmul.f32 %v2434, 0.0625
        %v2469 = vmul.f32 %v2437, 0.0625
        %v2470 = vmul.f32 %v2440, 0.0625
        %v2471 = vmul.f32 %v2443, 0.0625
        %v2472 = vmul.f32 %v2446, 0.0625
        %v2473 = vmul.f32 %v2449, 0.0625
        %v2474 = vmul.f32 %v2452, 0.0625
        %v2475 = vmul.f32 %v2455, 0.0625
        %v2476 = vmul.f32 %v2458, 0.0625
        %v2477 = vmul.f32 %v2461, 0.0625
        %v2478 = vadd.f32 %v2462, 1e-06
        %v2479 = vadd.f32 %v2463, 1e-06
        %v2480 = vadd.f32 %v2464, 1e-06
        %v2481 = vadd.f32 %v2465, 1e-06
        %v2482 = vadd.f32 %v2466, 1e-06
        %v2483 = vadd.f32 %v2467, 1e-06
        %v2484 = vadd.f32 %v2468, 1e-06
        %v2485 = vadd.f32 %v2469, 1e-06
        %v2486 = vadd.f32 %v2470, 1e-06
        %v2487 = vadd.f32 %v2471, 1e-06
        %v2488 = vadd.f32 %v2472, 1e-06
        %v2489 = vadd.f32 %v2473, 1e-06
        %v2490 = vadd.f32 %v2474, 1e-06
        %v2491 = vadd.f32 %v2475, 1e-06
        %v2492 = vadd.f32 %v2476, 1e-06
        %v2493 = vadd.f32 %v2477, 1e-06
        %v2494 = vrsqrt.pop %v2478
        %v2495 = vmul.f32 %v2494, %v2478
        %v2496 = vmul.f32 %v2495, %v2494
        %v2497 = vmul.f32 0.5, %v2496
        %v2498 = vsub.f32 1.5, %v2497
        %v2499 = vmul.f32 %v2494, %v2498
        %vm2500 = vweird.f32 %v2478
        %vm2501 = vweird.f32 %v2494
        %vm2502 = vmor %vm2500, %vm2501
        %v2503 = vsel %vm2502, %v2494, %v2499
        %v2504 = vrsqrt.pop %v2479
        %v2505 = vmul.f32 %v2504, %v2479
        %v2506 = vmul.f32 %v2505, %v2504
        %v2507 = vmul.f32 0.5, %v2506
        %v2508 = vsub.f32 1.5, %v2507
        %v2509 = vmul.f32 %v2504, %v2508
        %vm2510 = vweird.f32 %v2479
        %vm2511 = vweird.f32 %v2504
        %vm2512 = vmor %vm2510, %vm2511
        %v2513 = vsel %vm2512, %v2504, %v2509
        %v2514 = vrsqrt.pop %v2480
        %v2515 = vmul.f32 %v2514, %v2480
        %v2516 = vmul.f32 %v2515, %v2514
        %v2517 = vmul.f32 0.5, %v2516
        %v2518 = vsub.f32 1.5, %v2517
        %v2519 = vmul.f32 %v2514, %v2518
        %vm2520 = vweird.f32 %v2480
        %vm2521 = vweird.f32 %v2514
        %vm2522 = vmor %vm2520, %vm2521
        %v2523 = vsel %vm2522, %v2514, %v2519
        %v2524 = vrsqrt.pop %v2481
        %v2525 = vmul.f32 %v2524, %v2481
        %v2526 = vmul.f32 %v2525, %v2524
        %v2527 = vmul.f32 0.5, %v2526
        %v2528 = vsub.f32 1.5, %v2527
        %v2529 = vmul.f32 %v2524, %v2528
        %vm2530 = vweird.f32 %v2481
        %vm2531 = vweird.f32 %v2524
        %vm2532 = vmor %vm2530, %vm2531
        %v2533 = vsel %vm2532, %v2524, %v2529
        %v2534 = vrsqrt.pop %v2482
        %v2535 = vmul.f32 %v2534, %v2482
        %v2536 = vmul.f32 %v2535, %v2534
        %v2537 = vmul.f32 0.5, %v2536
        %v2538 = vsub.f32 1.5, %v2537
        %v2539 = vmul.f32 %v2534, %v2538
        %vm2540 = vweird.f32 %v2482
        %vm2541 = vweird.f32 %v2534
        %vm2542 = vmor %vm2540, %vm2541
        %v2543 = vsel %vm2542, %v2534, %v2539
        %v2544 = vrsqrt.pop %v2483
        %v2545 = vmul.f32 %v2544, %v2483
        %v2546 = vmul.f32 %v2545, %v2544
        %v2547 = vmul.f32 0.5, %v2546
        %v2548 = vsub.f32 1.5, %v2547
        %v2549 = vmul.f32 %v2544, %v2548
        %vm2550 = vweird.f32 %v2483
        %vm2551 = vweird.f32 %v2544
        %vm2552 = vmor %vm2550, %vm2551
        %v2553 = vsel %vm2552, %v2544, %v2549
        %v2554 = vrsqrt.pop %v2484
        %v2555 = vmul.f32 %v2554, %v2484
        %v2556 = vmul.f32 %v2555, %v2554
        %v2557 = vmul.f32 0.5, %v2556
        %v2558 = vsub.f32 1.5, %v2557
        %v2559 = vmul.f32 %v2554, %v2558
        %vm2560 = vweird.f32 %v2484
        %vm2561 = vweird.f32 %v2554
        %vm2562 = vmor %vm2560, %vm2561
        %v2563 = vsel %vm2562, %v2554, %v2559
        %v2564 = vrsqrt.pop %v2485
        %v2565 = vmul.f32 %v2564, %v2485
        %v2566 = vmul.f32 %v2565, %v2564
        %v2567 = vmul.f32 0.5, %v2566
        %v2568 = vsub.f32 1.5, %v2567
        %v2569 = vmul.f32 %v2564, %v2568
        %vm2570 = vweird.f32 %v2485
        %vm2571 = vweird.f32 %v2564
        %vm2572 = vmor %vm2570, %vm2571
        %v2573 = vsel %vm2572, %v2564, %v2569
        %v2574 = vrsqrt.pop %v2486
        %v2575 = vmul.f32 %v2574, %v2486
        %v2576 = vmul.f32 %v2575, %v2574
        %v2577 = vmul.f32 0.5, %v2576
        %v2578 = vsub.f32 1.5, %v2577
        %v2579 = vmul.f32 %v2574, %v2578
        %vm2580 = vweird.f32 %v2486
        %vm2581 = vweird.f32 %v2574
        %vm2582 = vmor %vm2580, %vm2581
        %v2583 = vsel %vm2582, %v2574, %v2579
        %v2584 = vrsqrt.pop %v2487
        %v2585 = vmul.f32 %v2584, %v2487
        %v2586 = vmul.f32 %v2585, %v2584
        %v2587 = vmul.f32 0.5, %v2586
        %v2588 = vsub.f32 1.5, %v2587
        %v2589 = vmul.f32 %v2584, %v2588
        %vm2590 = vweird.f32 %v2487
        %vm2591 = vweird.f32 %v2584
        %vm2592 = vmor %vm2590, %vm2591
        %v2593 = vsel %vm2592, %v2584, %v2589
        %v2594 = vrsqrt.pop %v2488
        %v2595 = vmul.f32 %v2594, %v2488
        %v2596 = vmul.f32 %v2595, %v2594
        %v2597 = vmul.f32 0.5, %v2596
        %v2598 = vsub.f32 1.5, %v2597
        %v2599 = vmul.f32 %v2594, %v2598
        %vm2600 = vweird.f32 %v2488
        %vm2601 = vweird.f32 %v2594
        %vm2602 = vmor %vm2600, %vm2601
        %v2603 = vsel %vm2602, %v2594, %v2599
        %v2604 = vrsqrt.pop %v2489
        %v2605 = vmul.f32 %v2604, %v2489
        %v2606 = vmul.f32 %v2605, %v2604
        %v2607 = vmul.f32 0.5, %v2606
        %v2608 = vsub.f32 1.5, %v2607
        %v2609 = vmul.f32 %v2604, %v2608
        %vm2610 = vweird.f32 %v2489
        %vm2611 = vweird.f32 %v2604
        %vm2612 = vmor %vm2610, %vm2611
        %v2613 = vsel %vm2612, %v2604, %v2609
        %v2614 = vrsqrt.pop %v2490
        %v2615 = vmul.f32 %v2614, %v2490
        %v2616 = vmul.f32 %v2615, %v2614
        %v2617 = vmul.f32 0.5, %v2616
        %v2618 = vsub.f32 1.5, %v2617
        %v2619 = vmul.f32 %v2614, %v2618
        %vm2620 = vweird.f32 %v2490
        %vm2621 = vweird.f32 %v2614
        %vm2622 = vmor %vm2620, %vm2621
        %v2623 = vsel %vm2622, %v2614, %v2619
        %v2624 = vrsqrt.pop %v2491
        %v2625 = vmul.f32 %v2624, %v2491
        %v2626 = vmul.f32 %v2625, %v2624
        %v2627 = vmul.f32 0.5, %v2626
        %v2628 = vsub.f32 1.5, %v2627
        %v2629 = vmul.f32 %v2624, %v2628
        %vm2630 = vweird.f32 %v2491
        %vm2631 = vweird.f32 %v2624
        %vm2632 = vmor %vm2630, %vm2631
        %v2633 = vsel %vm2632, %v2624, %v2629
        %v2634 = vrsqrt.pop %v2492
        %v2635 = vmul.f32 %v2634, %v2492
        %v2636 = vmul.f32 %v2635, %v2634
        %v2637 = vmul.f32 0.5, %v2636
        %v2638 = vsub.f32 1.5, %v2637
        %v2639 = vmul.f32 %v2634, %v2638
        %vm2640 = vweird.f32 %v2492
        %vm2641 = vweird.f32 %v2634
        %vm2642 = vmor %vm2640, %vm2641
        %v2643 = vsel %vm2642, %v2634, %v2639
        %v2644 = vrsqrt.pop %v2493
        %v2645 = vmul.f32 %v2644, %v2493
        %v2646 = vmul.f32 %v2645, %v2644
        %v2647 = vmul.f32 0.5, %v2646
        %v2648 = vsub.f32 1.5, %v2647
        %v2649 = vmul.f32 %v2644, %v2648
        %vm2650 = vweird.f32 %v2493
        %vm2651 = vweird.f32 %v2644
        %vm2652 = vmor %vm2650, %vm2651
        %v2653 = vsel %vm2652, %v2644, %v2649
        %v2654 = vmul.f32 %v2382, %v2503
        %v2655 = vmul.f32 %v2383, %v2513
        %v2656 = vmul.f32 %v2384, %v2523
        %v2657 = vmul.f32 %v2385, %v2533
        %v2658 = vmul.f32 %v2386, %v2543
        %v2659 = vmul.f32 %v2387, %v2553
        %v2660 = vmul.f32 %v2388, %v2563
        %v2661 = vmul.f32 %v2389, %v2573
        %v2662 = vmul.f32 %v2390, %v2583
        %v2663 = vmul.f32 %v2391, %v2593
        %v2664 = vmul.f32 %v2392, %v2603
        %v2665 = vmul.f32 %v2393, %v2613
        %v2666 = vmul.f32 %v2394, %v2623
        %v2667 = vmul.f32 %v2395, %v2633
        %v2668 = vmul.f32 %v2396, %v2643
        %v2669 = vmul.f32 %v2397, %v2653
        %v2670 = vld [vmem:[%s3] sm:$0x1]
        %v2672 = vperm.slane %v2670, 0
        %v2674 = vmul.f32 %v2654, %v2672
        %v2675 = vmul.f32 %v2655, %v2672
        %v2676 = vmul.f32 %v2656, %v2672
        %v2677 = vmul.f32 %v2657, %v2672
        %v2678 = vmul.f32 %v2658, %v2672
        %v2679 = vmul.f32 %v2659, %v2672
        %v2680 = vmul.f32 %v2660, %v2672
        %v2681 = vmul.f32 %v2661, %v2672
        %v2682 = vmul.f32 %v2662, %v2672
        %v2683 = vmul.f32 %v2663, %v2672
        %v2684 = vmul.f32 %v2664, %v2672
        %v2685 = vmul.f32 %v2665, %v2672
        %v2686 = vmul.f32 %v2666, %v2672
        %v2687 = vmul.f32 %v2667, %v2672
        %v2688 = vmul.f32 %v2668, %v2672
        %v2689 = vmul.f32 %v2669, %v2672
        %v2690 = vld [vmem:[%s4] sm:$0x1]
        %v2692 = vperm.slane %v2690, 0
        %v2694 = vadd.f32 %v2674, %v2692
        %v2695 = vadd.f32 %v2675, %v2692
        %v2696 = vadd.f32 %v2676, %v2692
        %v2697 = vadd.f32 %v2677, %v2692
        %v2698 = vadd.f32 %v2678, %v2692
        %v2699 = vadd.f32 %v2679, %v2692
        %v2700 = vadd.f32 %v2680, %v2692
        %v2701 = vadd.f32 %v2681, %v2692
        %v2702 = vadd.f32 %v2682, %v2692
        %v2703 = vadd.f32 %v2683, %v2692
        %v2704 = vadd.f32 %v2684, %v2692
        %v2705 = vadd.f32 %v2685, %v2692
        %v2706 = vadd.f32 %v2686, %v2692
        %v2707 = vadd.f32 %v2687, %v2692
        %v2708 = vadd.f32 %v2688, %v2692
        %v2709 = vadd.f32 %v2689, %v2692
        %v2710 = vld [vmem:[%s5] sm:$0xff]
        %v2711 = vld [vmem:[%s5 + $0x8] sm:$0xff]
        %v2712 = vld [vmem:[%s6] sm:$0x1]
        %v2714 = vperm.slane %v2712, 0
        %v2717 = vsel %vm369, %v2694, 0
        %v2720 = vsel %vm369, %v2695, 0
        %v2723 = vsel %vm369, %v2696, 0
        %v2726 = vsel %vm369, %v2697, 0
        %v2729 = vsel %vm369, %v2698, 0
        %v2732 = vsel %vm369, %v2699, 0
        %v2735 = vsel %vm369, %v2700, 0
        %v2738 = vsel %vm369, %v2701, 0
        %v2741 = vsel %vm369, %v2702, 0
        %v2744 = vsel %vm369, %v2703, 0
        %v2747 = vsel %vm369, %v2704, 0
        %v2750 = vsel %vm369, %v2705, 0
        %v2753 = vsel %vm369, %v2706, 0
        %v2756 = vsel %vm369, %v2707, 0
        %v2759 = vsel %vm369, %v2708, 0
        %v2762 = vsel %vm369, %v2709, 0
        %2764 = vmatpush.msra.mxu0 0.0
        %2765 = vmatpush.msra.mxu0 0.0
        %2766 = vmatpush.msra.mxu0 0.0
        %2767 = vmatpush.msra.mxu0 0.0
        %2768 = vmatpush.msra.mxu0 0.0
        %2769 = vmatpush.msra.mxu0 0.0
        %2770 = vmatpush.msra.mxu0 0.0
        %2771 = vmatpush.msra.mxu0 0.0
        %2772 = vmatpush.msra.mxu0 0.0
        %2773 = vmatpush.msra.mxu0 0.0
        %2774 = vmatpush.msra.mxu0 0.0
        %2775 = vmatpush.msra.mxu0 0.0
        %2776 = vmatpush.msra.mxu0 0.0
        %2777 = vmatpush.msra.mxu0 0.0
        %2778 = vmatpush.msra.mxu0 %v2711
        %2779 = vmatpush.msra.mxu0 %v2710
        %2780 = vmatmul.f32.gmra.mxu0 %v2717
        %v2781 = vpop.f32.mrf.mxu0
        %v2782 = vadd.f32 %v2714, %v2781
        %2783 = vmatmul.f32.gmra.mxu0 %v2720
        %v2784 = vpop.f32.mrf.mxu0
        %v2785 = vadd.f32 %v2714, %v2784
        %2786 = vmatmul.f32.gmra.mxu0 %v2723
        %v2787 = vpop.f32.mrf.mxu0
        %v2788 = vadd.f32 %v2714, %v2787
        %2789 = vmatmul.f32.gmra.mxu0 %v2726
        %v2790 = vpop.f32.mrf.mxu0
        %v2791 = vadd.f32 %v2714, %v2790
        %2792 = vmatmul.f32.gmra.mxu0 %v2729
        %v2793 = vpop.f32.mrf.mxu0
        %v2794 = vadd.f32 %v2714, %v2793
        %2795 = vmatmul.f32.gmra.mxu0 %v2732
        %v2796 = vpop.f32.mrf.mxu0
        %v2797 = vadd.f32 %v2714, %v2796
        %2798 = vmatmul.f32.gmra.mxu0 %v2735
        %v2799 = vpop.f32.mrf.mxu0
        %v2800 = vadd.f32 %v2714, %v2799
        %2801 = vmatmul.f32.gmra.mxu0 %v2738
        %v2802 = vpop.f32.mrf.mxu0
        %v2803 = vadd.f32 %v2714, %v2802
        %2804 = vmatmul.f32.gmra.mxu0 %v2741
        %v2805 = vpop.f32.mrf.mxu0
        %v2806 = vadd.f32 %v2714, %v2805
        %2807 = vmatmul.f32.gmra.mxu0 %v2744
        %v2808 = vpop.f32.mrf.mxu0
        %v2809 = vadd.f32 %v2714, %v2808
        %2810 = vmatmul.f32.gmra.mxu0 %v2747
        %v2811 = vpop.f32.mrf.mxu0
        %v2812 = vadd.f32 %v2714, %v2811
        %2813 = vmatmul.f32.gmra.mxu0 %v2750
        %v2814 = vpop.f32.mrf.mxu0
        %v2815 = vadd.f32 %v2714, %v2814
        %2816 = vmatmul.f32.gmra.mxu0 %v2753
        %v2817 = vpop.f32.mrf.mxu0
        %v2818 = vadd.f32 %v2714, %v2817
        %2819 = vmatmul.f32.gmra.mxu0 %v2756
        %v2820 = vpop.f32.mrf.mxu0
        %v2821 = vadd.f32 %v2714, %v2820
        %2822 = vmatmul.f32.gmra.mxu0 %v2759
        %v2823 = vpop.f32.mrf.mxu0
        %v2824 = vadd.f32 %v2714, %v2823
        %2825 = vmatmul.f32.gmra.mxu0 %v2762
        %v2826 = vpop.f32.mrf.mxu0
        %v2827 = vadd.f32 %v2714, %v2826
        %2828 = vdwg.mxu0
        %v2829 = vmul.f32 %v2782, 0.5
        %v2830 = vmul.f32 %v2785, 0.5
        %v2831 = vmul.f32 %v2788, 0.5
        %v2832 = vmul.f32 %v2791, 0.5
        %v2833 = vmul.f32 %v2794, 0.5
        %v2834 = vmul.f32 %v2797, 0.5
        %v2835 = vmul.f32 %v2800, 0.5
        %v2836 = vmul.f32 %v2803, 0.5
        %v2837 = vmul.f32 %v2806, 0.5
        %v2838 = vmul.f32 %v2809, 0.5
        %v2839 = vmul.f32 %v2812, 0.5
        %v2840 = vmul.f32 %v2815, 0.5
        %v2841 = vmul.f32 %v2818, 0.5
        %v2842 = vmul.f32 %v2821, 0.5
        %v2843 = vmul.f32 %v2824, 0.5
        %v2844 = vmul.f32 %v2827, 0.5
        %v2845 = vmul.f32 %v2782, 0.70710677
        %v2846 = vmul.f32 %v2785, 0.70710677
        %v2847 = vmul.f32 %v2788, 0.70710677
        %v2848 = vmul.f32 %v2791, 0.70710677
        %v2849 = vmul.f32 %v2794, 0.70710677
        %v2850 = vmul.f32 %v2797, 0.70710677
        %v2851 = vmul.f32 %v2800, 0.70710677
        %v2852 = vmul.f32 %v2803, 0.70710677
        %v2853 = vmul.f32 %v2806, 0.70710677
        %v2854 = vmul.f32 %v2809, 0.70710677
        %v2855 = vmul.f32 %v2812, 0.70710677
        %v2856 = vmul.f32 %v2815, 0.70710677
        %v2857 = vmul.f32 %v2818, 0.70710677
        %v2858 = vmul.f32 %v2821, 0.70710677
        %v2859 = vmul.f32 %v2824, 0.70710677
        %v2860 = vmul.f32 %v2827, 0.70710677
        %v2861 = vmul.f32 %v2845, %v2845
        %v2862 = vmin.f32 16.0, %v2861
        %v2863 = vmul.f32 %v2862, 2.1237322e-06
        %v2864 = vadd.f32 %v2863, 0.00028619796
        %v2865 = vmul.f32 %v2862, %v2864
        %v2866 = vadd.f32 %v2865, 0.0036580483
        %v2867 = vmul.f32 %v2862, %v2866
        %v2868 = vadd.f32 %v2867, 0.05243302
        %v2869 = vmul.f32 %v2862, %v2868
        %v2870 = vadd.f32 %v2869, 0.18741608
        %v2871 = vmul.f32 %v2862, %v2870
        %v2872 = vadd.f32 %v2871, 1.1283791
        %v2873 = vmul.f32 %v2845, %v2872
        %v2874 = vmul.f32 %v2862, 3.8918573e-05
        %v2875 = vadd.f32 %v2874, 0.001143296
        %v2876 = vmul.f32 %v2862, %v2875
        %v2877 = vadd.f32 %v2876, 0.014752088
        %v2878 = vmul.f32 %v2862, %v2877
        %v2879 = vadd.f32 %v2878, 0.112945676
        %v2880 = vmul.f32 %v2862, %v2879
        %v2881 = vadd.f32 %v2880, 0.4994258
        %v2882 = vmul.f32 %v2862, %v2881
        %v2883 = vadd.f32 %v2882, 1.0
        %v2884 = vrcp.pop %v2883
        %v2885 = vmul.f32 %v2883, %v2884
        %v2886 = vsub.f32 1.0, %v2885
        %v2887 = vmul.f32 %v2884, %v2886
        %v2888 = vadd.f32 %v2884, %v2887
        %vm2889 = vweird.f32 %v2883
        %vm2890 = vweird.f32 %v2884
        %vm2891 = vmor %vm2889, %vm2890
        %v2892 = vsel %vm2891, %v2884, %v2888
        %v2893 = vand.u32 2147483647, %v2883
        %vm2894 = vcmp.eq.f32.partialorder %v2893, 8.507059e+37
        %v2895 = vand.u32 %v2883, 2147483648
        %v2896 = vor.u32 1.1754944e-38, %v2895
        %v2897 = vsel %vm2894, %v2896, %v2892
        %v2898 = vmul.f32 %v2873, %v2897
        %v2899 = vmin.f32 %v2898, 1.0
        %v2900 = vmax.f32 %v2899, -1.0
        %v2901 = vmul.f32 %v2846, %v2846
        %v2902 = vmin.f32 16.0, %v2901
        %v2903 = vmul.f32 %v2902, 2.1237322e-06
        %v2904 = vadd.f32 %v2903, 0.00028619796
        %v2905 = vmul.f32 %v2902, %v2904
        %v2906 = vadd.f32 %v2905, 0.0036580483
        %v2907 = vmul.f32 %v2902, %v2906
        %v2908 = vadd.f32 %v2907, 0.05243302
        %v2909 = vmul.f32 %v2902, %v2908
        %v2910 = vadd.f32 %v2909, 0.18741608
        %v2911 = vmul.f32 %v2902, %v2910
        %v2912 = vadd.f32 %v2911, 1.1283791
        %v2913 = vmul.f32 %v2846, %v2912
        %v2914 = vmul.f32 %v2902, 3.8918573e-05
        %v2915 = vadd.f32 %v2914, 0.001143296
        %v2916 = vmul.f32 %v2902, %v2915
        %v2917 = vadd.f32 %v2916, 0.014752088
        %v2918 = vmul.f32 %v2902, %v2917
        %v2919 = vadd.f32 %v2918, 0.112945676
        %v2920 = vmul.f32 %v2902, %v2919
        %v2921 = vadd.f32 %v2920, 0.4994258
        %v2922 = vmul.f32 %v2902, %v2921
        %v2923 = vadd.f32 %v2922, 1.0
        %v2924 = vrcp.pop %v2923
        %v2925 = vmul.f32 %v2923, %v2924
        %v2926 = vsub.f32 1.0, %v2925
        %v2927 = vmul.f32 %v2924, %v2926
        %v2928 = vadd.f32 %v2924, %v2927
        %vm2929 = vweird.f32 %v2923
        %vm2930 = vweird.f32 %v2924
        %vm2931 = vmor %vm2929, %vm2930
        %v2932 = vsel %vm2931, %v2924, %v2928
        %v2933 = vand.u32 2147483647, %v2923
        %vm2934 = vcmp.eq.f32.partialorder %v2933, 8.507059e+37
        %v2935 = vand.u32 %v2923, 2147483648
        %v2936 = vor.u32 1.1754944e-38, %v2935
        %v2937 = vsel %vm2934, %v2936, %v2932
        %v2938 = vmul.f32 %v2913, %v2937
        %v2939 = vmin.f32 %v2938, 1.0
        %v2940 = vmax.f32 %v2939, -1.0
        %v2941 = vmul.f32 %v2847, %v2847
        %v2942 = vmin.f32 16.0, %v2941
        %v2943 = vmul.f32 %v2942, 2.1237322e-06
        %v2944 = vadd.f32 %v2943, 0.00028619796
        %v2945 = vmul.f32 %v2942, %v2944
        %v2946 = vadd.f32 %v2945, 0.0036580483
        %v2947 = vmul.f32 %v2942, %v2946
        %v2948 = vadd.f32 %v2947, 0.05243302
        %v2949 = vmul.f32 %v2942, %v2948
        %v2950 = vadd.f32 %v2949, 0.18741608
        %v2951 = vmul.f32 %v2942, %v2950
        %v2952 = vadd.f32 %v2951, 1.1283791
        %v2953 = vmul.f32 %v2847, %v2952
        %v2954 = vmul.f32 %v2942, 3.8918573e-05
        %v2955 = vadd.f32 %v2954, 0.001143296
        %v2956 = vmul.f32 %v2942, %v2955
        %v2957 = vadd.f32 %v2956, 0.014752088
        %v2958 = vmul.f32 %v2942, %v2957
        %v2959 = vadd.f32 %v2958, 0.112945676
        %v2960 = vmul.f32 %v2942, %v2959
        %v2961 = vadd.f32 %v2960, 0.4994258
        %v2962 = vmul.f32 %v2942, %v2961
        %v2963 = vadd.f32 %v2962, 1.0
        %v2964 = vrcp.pop %v2963
        %v2965 = vmul.f32 %v2963, %v2964
        %v2966 = vsub.f32 1.0, %v2965
        %v2967 = vmul.f32 %v2964, %v2966
        %v2968 = vadd.f32 %v2964, %v2967
        %vm2969 = vweird.f32 %v2963
        %vm2970 = vweird.f32 %v2964
        %vm2971 = vmor %vm2969, %vm2970
        %v2972 = vsel %vm2971, %v2964, %v2968
        %v2973 = vand.u32 2147483647, %v2963
        %vm2974 = vcmp.eq.f32.partialorder %v2973, 8.507059e+37
        %v2975 = vand.u32 %v2963, 2147483648
        %v2976 = vor.u32 1.1754944e-38, %v2975
        %v2977 = vsel %vm2974, %v2976, %v2972
        %v2978 = vmul.f32 %v2953, %v2977
        %v2979 = vmin.f32 %v2978, 1.0
        %v2980 = vmax.f32 %v2979, -1.0
        %v2981 = vmul.f32 %v2848, %v2848
        %v2982 = vmin.f32 16.0, %v2981
        %v2983 = vmul.f32 %v2982, 2.1237322e-06
        %v2984 = vadd.f32 %v2983, 0.00028619796
        %v2985 = vmul.f32 %v2982, %v2984
        %v2986 = vadd.f32 %v2985, 0.0036580483
        %v2987 = vmul.f32 %v2982, %v2986
        %v2988 = vadd.f32 %v2987, 0.05243302
        %v2989 = vmul.f32 %v2982, %v2988
        %v2990 = vadd.f32 %v2989, 0.18741608
        %v2991 = vmul.f32 %v2982, %v2990
        %v2992 = vadd.f32 %v2991, 1.1283791
        %v2993 = vmul.f32 %v2848, %v2992
        %v2994 = vmul.f32 %v2982, 3.8918573e-05
        %v2995 = vadd.f32 %v2994, 0.001143296
        %v2996 = vmul.f32 %v2982, %v2995
        %v2997 = vadd.f32 %v2996, 0.014752088
        %v2998 = vmul.f32 %v2982, %v2997
        %v2999 = vadd.f32 %v2998, 0.112945676
        %v3000 = vmul.f32 %v2982, %v2999
        %v3001 = vadd.f32 %v3000, 0.4994258
        %v3002 = vmul.f32 %v2982, %v3001
        %v3003 = vadd.f32 %v3002, 1.0
        %v3004 = vrcp.pop %v3003
        %v3005 = vmul.f32 %v3003, %v3004
        %v3006 = vsub.f32 1.0, %v3005
        %v3007 = vmul.f32 %v3004, %v3006
        %v3008 = vadd.f32 %v3004, %v3007
        %vm3009 = vweird.f32 %v3003
        %vm3010 = vweird.f32 %v3004
        %vm3011 = vmor %vm3009, %vm3010
        %v3012 = vsel %vm3011, %v3004, %v3008
        %v3013 = vand.u32 2147483647, %v3003
        %vm3014 = vcmp.eq.f32.partialorder %v3013, 8.507059e+37
        %v3015 = vand.u32 %v3003, 2147483648
        %v3016 = vor.u32 1.1754944e-38, %v3015
        %v3017 = vsel %vm3014, %v3016, %v3012
        %v3018 = vmul.f32 %v2993, %v3017
        %v3019 = vmin.f32 %v3018, 1.0
        %v3020 = vmax.f32 %v3019, -1.0
        %v3021 = vmul.f32 %v2849, %v2849
        %v3022 = vmin.f32 16.0, %v3021
        %v3023 = vmul.f32 %v3022, 2.1237322e-06
        %v3024 = vadd.f32 %v3023, 0.00028619796
        %v3025 = vmul.f32 %v3022, %v3024
        %v3026 = vadd.f32 %v3025, 0.0036580483
        %v3027 = vmul.f32 %v3022, %v3026
        %v3028 = vadd.f32 %v3027, 0.05243302
        %v3029 = vmul.f32 %v3022, %v3028
        %v3030 = vadd.f32 %v3029, 0.18741608
        %v3031 = vmul.f32 %v3022, %v3030
        %v3032 = vadd.f32 %v3031, 1.1283791
        %v3033 = vmul.f32 %v2849, %v3032
        %v3034 = vmul.f32 %v3022, 3.8918573e-05
        %v3035 = vadd.f32 %v3034, 0.001143296
        %v3036 = vmul.f32 %v3022, %v3035
        %v3037 = vadd.f32 %v3036, 0.014752088
        %v3038 = vmul.f32 %v3022, %v3037
        %v3039 = vadd.f32 %v3038, 0.112945676
        %v3040 = vmul.f32 %v3022, %v3039
        %v3041 = vadd.f32 %v3040, 0.4994258
        %v3042 = vmul.f32 %v3022, %v3041
        %v3043 = vadd.f32 %v3042, 1.0
        %v3044 = vrcp.pop %v3043
        %v3045 = vmul.f32 %v3043, %v3044
        %v3046 = vsub.f32 1.0, %v3045
        %v3047 = vmul.f32 %v3044, %v3046
        %v3048 = vadd.f32 %v3044, %v3047
        %vm3049 = vweird.f32 %v3043
        %vm3050 = vweird.f32 %v3044
        %vm3051 = vmor %vm3049, %vm3050
        %v3052 = vsel %vm3051, %v3044, %v3048
        %v3053 = vand.u32 2147483647, %v3043
        %vm3054 = vcmp.eq.f32.partialorder %v3053, 8.507059e+37
        %v3055 = vand.u32 %v3043, 2147483648
        %v3056 = vor.u32 1.1754944e-38, %v3055
        %v3057 = vsel %vm3054, %v3056, %v3052
        %v3058 = vmul.f32 %v3033, %v3057
        %v3059 = vmin.f32 %v3058, 1.0
        %v3060 = vmax.f32 %v3059, -1.0
        %v3061 = vmul.f32 %v2850, %v2850
        %v3062 = vmin.f32 16.0, %v3061
        %v3063 = vmul.f32 %v3062, 2.1237322e-06
        %v3064 = vadd.f32 %v3063, 0.00028619796
        %v3065 = vmul.f32 %v3062, %v3064
        %v3066 = vadd.f32 %v3065, 0.0036580483
        %v3067 = vmul.f32 %v3062, %v3066
        %v3068 = vadd.f32 %v3067, 0.05243302
        %v3069 = vmul.f32 %v3062, %v3068
        %v3070 = vadd.f32 %v3069, 0.18741608
        %v3071 = vmul.f32 %v3062, %v3070
        %v3072 = vadd.f32 %v3071, 1.1283791
        %v3073 = vmul.f32 %v2850, %v3072
        %v3074 = vmul.f32 %v3062, 3.8918573e-05
        %v3075 = vadd.f32 %v3074, 0.001143296
        %v3076 = vmul.f32 %v3062, %v3075
        %v3077 = vadd.f32 %v3076, 0.014752088
        %v3078 = vmul.f32 %v3062, %v3077
        %v3079 = vadd.f32 %v3078, 0.112945676
        %v3080 = vmul.f32 %v3062, %v3079
        %v3081 = vadd.f32 %v3080, 0.4994258
        %v3082 = vmul.f32 %v3062, %v3081
        %v3083 = vadd.f32 %v3082, 1.0
        %v3084 = vrcp.pop %v3083
        %v3085 = vmul.f32 %v3083, %v3084
        %v3086 = vsub.f32 1.0, %v3085
        %v3087 = vmul.f32 %v3084, %v3086
        %v3088 = vadd.f32 %v3084, %v3087
        %vm3089 = vweird.f32 %v3083
        %vm3090 = vweird.f32 %v3084
        %vm3091 = vmor %vm3089, %vm3090
        %v3092 = vsel %vm3091, %v3084, %v3088
        %v3093 = vand.u32 2147483647, %v3083
        %vm3094 = vcmp.eq.f32.partialorder %v3093, 8.507059e+37
        %v3095 = vand.u32 %v3083, 2147483648
        %v3096 = vor.u32 1.1754944e-38, %v3095
        %v3097 = vsel %vm3094, %v3096, %v3092
        %v3098 = vmul.f32 %v3073, %v3097
        %v3099 = vmin.f32 %v3098, 1.0
        %v3100 = vmax.f32 %v3099, -1.0
        %v3101 = vmul.f32 %v2851, %v2851
        %v3102 = vmin.f32 16.0, %v3101
        %v3103 = vmul.f32 %v3102, 2.1237322e-06
        %v3104 = vadd.f32 %v3103, 0.00028619796
        %v3105 = vmul.f32 %v3102, %v3104
        %v3106 = vadd.f32 %v3105, 0.0036580483
        %v3107 = vmul.f32 %v3102, %v3106
        %v3108 = vadd.f32 %v3107, 0.05243302
        %v3109 = vmul.f32 %v3102, %v3108
        %v3110 = vadd.f32 %v3109, 0.18741608
        %v3111 = vmul.f32 %v3102, %v3110
        %v3112 = vadd.f32 %v3111, 1.1283791
        %v3113 = vmul.f32 %v2851, %v3112
        %v3114 = vmul.f32 %v3102, 3.8918573e-05
        %v3115 = vadd.f32 %v3114, 0.001143296
        %v3116 = vmul.f32 %v3102, %v3115
        %v3117 = vadd.f32 %v3116, 0.014752088
        %v3118 = vmul.f32 %v3102, %v3117
        %v3119 = vadd.f32 %v3118, 0.112945676
        %v3120 = vmul.f32 %v3102, %v3119
        %v3121 = vadd.f32 %v3120, 0.4994258
        %v3122 = vmul.f32 %v3102, %v3121
        %v3123 = vadd.f32 %v3122, 1.0
        %v3124 = vrcp.pop %v3123
        %v3125 = vmul.f32 %v3123, %v3124
        %v3126 = vsub.f32 1.0, %v3125
        %v3127 = vmul.f32 %v3124, %v3126
        %v3128 = vadd.f32 %v3124, %v3127
        %vm3129 = vweird.f32 %v3123
        %vm3130 = vweird.f32 %v3124
        %vm3131 = vmor %vm3129, %vm3130
        %v3132 = vsel %vm3131, %v3124, %v3128
        %v3133 = vand.u32 2147483647, %v3123
        %vm3134 = vcmp.eq.f32.partialorder %v3133, 8.507059e+37
        %v3135 = vand.u32 %v3123, 2147483648
        %v3136 = vor.u32 1.1754944e-38, %v3135
        %v3137 = vsel %vm3134, %v3136, %v3132
        %v3138 = vmul.f32 %v3113, %v3137
        %v3139 = vmin.f32 %v3138, 1.0
        %v3140 = vmax.f32 %v3139, -1.0
        %v3141 = vmul.f32 %v2852, %v2852
        %v3142 = vmin.f32 16.0, %v3141
        %v3143 = vmul.f32 %v3142, 2.1237322e-06
        %v3144 = vadd.f32 %v3143, 0.00028619796
        %v3145 = vmul.f32 %v3142, %v3144
        %v3146 = vadd.f32 %v3145, 0.0036580483
        %v3147 = vmul.f32 %v3142, %v3146
        %v3148 = vadd.f32 %v3147, 0.05243302
        %v3149 = vmul.f32 %v3142, %v3148
        %v3150 = vadd.f32 %v3149, 0.18741608
        %v3151 = vmul.f32 %v3142, %v3150
        %v3152 = vadd.f32 %v3151, 1.1283791
        %v3153 = vmul.f32 %v2852, %v3152
        %v3154 = vmul.f32 %v3142, 3.8918573e-05
        %v3155 = vadd.f32 %v3154, 0.001143296
        %v3156 = vmul.f32 %v3142, %v3155
        %v3157 = vadd.f32 %v3156, 0.014752088
        %v3158 = vmul.f32 %v3142, %v3157
        %v3159 = vadd.f32 %v3158, 0.112945676
        %v3160 = vmul.f32 %v3142, %v3159
        %v3161 = vadd.f32 %v3160, 0.4994258
        %v3162 = vmul.f32 %v3142, %v3161
        %v3163 = vadd.f32 %v3162, 1.0
        %v3164 = vrcp.pop %v3163
        %v3165 = vmul.f32 %v3163, %v3164
        %v3166 = vsub.f32 1.0, %v3165
        %v3167 = vmul.f32 %v3164, %v3166
        %v3168 = vadd.f32 %v3164, %v3167
        %vm3169 = vweird.f32 %v3163
        %vm3170 = vweird.f32 %v3164
        %vm3171 = vmor %vm3169, %vm3170
        %v3172 = vsel %vm3171, %v3164, %v3168
        %v3173 = vand.u32 2147483647, %v3163
        %vm3174 = vcmp.eq.f32.partialorder %v3173, 8.507059e+37
        %v3175 = vand.u32 %v3163, 2147483648
        %v3176 = vor.u32 1.1754944e-38, %v3175
        %v3177 = vsel %vm3174, %v3176, %v3172
        %v3178 = vmul.f32 %v3153, %v3177
        %v3179 = vmin.f32 %v3178, 1.0
        %v3180 = vmax.f32 %v3179, -1.0
        %v3181 = vmul.f32 %v2853, %v2853
        %v3182 = vmin.f32 16.0, %v3181
        %v3183 = vmul.f32 %v3182, 2.1237322e-06
        %v3184 = vadd.f32 %v3183, 0.00028619796
        %v3185 = vmul.f32 %v3182, %v3184
        %v3186 = vadd.f32 %v3185, 0.0036580483
        %v3187 = vmul.f32 %v3182, %v3186
        %v3188 = vadd.f32 %v3187, 0.05243302
        %v3189 = vmul.f32 %v3182, %v3188
        %v3190 = vadd.f32 %v3189, 0.18741608
        %v3191 = vmul.f32 %v3182, %v3190
        %v3192 = vadd.f32 %v3191, 1.1283791
        %v3193 = vmul.f32 %v2853, %v3192
        %v3194 = vmul.f32 %v3182, 3.8918573e-05
        %v3195 = vadd.f32 %v3194, 0.001143296
        %v3196 = vmul.f32 %v3182, %v3195
        %v3197 = vadd.f32 %v3196, 0.014752088
        %v3198 = vmul.f32 %v3182, %v3197
        %v3199 = vadd.f32 %v3198, 0.112945676
        %v3200 = vmul.f32 %v3182, %v3199
        %v3201 = vadd.f32 %v3200, 0.4994258
        %v3202 = vmul.f32 %v3182, %v3201
        %v3203 = vadd.f32 %v3202, 1.0
        %v3204 = vrcp.pop %v3203
        %v3205 = vmul.f32 %v3203, %v3204
        %v3206 = vsub.f32 1.0, %v3205
        %v3207 = vmul.f32 %v3204, %v3206
        %v3208 = vadd.f32 %v3204, %v3207
        %vm3209 = vweird.f32 %v3203
        %vm3210 = vweird.f32 %v3204
        %vm3211 = vmor %vm3209, %vm3210
        %v3212 = vsel %vm3211, %v3204, %v3208
        %v3213 = vand.u32 2147483647, %v3203
        %vm3214 = vcmp.eq.f32.partialorder %v3213, 8.507059e+37
        %v3215 = vand.u32 %v3203, 2147483648
        %v3216 = vor.u32 1.1754944e-38, %v3215
        %v3217 = vsel %vm3214, %v3216, %v3212
        %v3218 = vmul.f32 %v3193, %v3217
        %v3219 = vmin.f32 %v3218, 1.0
        %v3220 = vmax.f32 %v3219, -1.0
        %v3221 = vmul.f32 %v2854, %v2854
        %v3222 = vmin.f32 16.0, %v3221
        %v3223 = vmul.f32 %v3222, 2.1237322e-06
        %v3224 = vadd.f32 %v3223, 0.00028619796
        %v3225 = vmul.f32 %v3222, %v3224
        %v3226 = vadd.f32 %v3225, 0.0036580483
        %v3227 = vmul.f32 %v3222, %v3226
        %v3228 = vadd.f32 %v3227, 0.05243302
        %v3229 = vmul.f32 %v3222, %v3228
        %v3230 = vadd.f32 %v3229, 0.18741608
        %v3231 = vmul.f32 %v3222, %v3230
        %v3232 = vadd.f32 %v3231, 1.1283791
        %v3233 = vmul.f32 %v2854, %v3232
        %v3234 = vmul.f32 %v3222, 3.8918573e-05
        %v3235 = vadd.f32 %v3234, 0.001143296
        %v3236 = vmul.f32 %v3222, %v3235
        %v3237 = vadd.f32 %v3236, 0.014752088
        %v3238 = vmul.f32 %v3222, %v3237
        %v3239 = vadd.f32 %v3238, 0.112945676
        %v3240 = vmul.f32 %v3222, %v3239
        %v3241 = vadd.f32 %v3240, 0.4994258
        %v3242 = vmul.f32 %v3222, %v3241
        %v3243 = vadd.f32 %v3242, 1.0
        %v3244 = vrcp.pop %v3243
        %v3245 = vmul.f32 %v3243, %v3244
        %v3246 = vsub.f32 1.0, %v3245
        %v3247 = vmul.f32 %v3244, %v3246
        %v3248 = vadd.f32 %v3244, %v3247
        %vm3249 = vweird.f32 %v3243
        %vm3250 = vweird.f32 %v3244
        %vm3251 = vmor %vm3249, %vm3250
        %v3252 = vsel %vm3251, %v3244, %v3248
        %v3253 = vand.u32 2147483647, %v3243
        %vm3254 = vcmp.eq.f32.partialorder %v3253, 8.507059e+37
        %v3255 = vand.u32 %v3243, 2147483648
        %v3256 = vor.u32 1.1754944e-38, %v3255
        %v3257 = vsel %vm3254, %v3256, %v3252
        %v3258 = vmul.f32 %v3233, %v3257
        %v3259 = vmin.f32 %v3258, 1.0
        %v3260 = vmax.f32 %v3259, -1.0
        %v3261 = vmul.f32 %v2855, %v2855
        %v3262 = vmin.f32 16.0, %v3261
        %v3263 = vmul.f32 %v3262, 2.1237322e-06
        %v3264 = vadd.f32 %v3263, 0.00028619796
        %v3265 = vmul.f32 %v3262, %v3264
        %v3266 = vadd.f32 %v3265, 0.0036580483
        %v3267 = vmul.f32 %v3262, %v3266
        %v3268 = vadd.f32 %v3267, 0.05243302
        %v3269 = vmul.f32 %v3262, %v3268
        %v3270 = vadd.f32 %v3269, 0.18741608
        %v3271 = vmul.f32 %v3262, %v3270
        %v3272 = vadd.f32 %v3271, 1.1283791
        %v3273 = vmul.f32 %v2855, %v3272
        %v3274 = vmul.f32 %v3262, 3.8918573e-05
        %v3275 = vadd.f32 %v3274, 0.001143296
        %v3276 = vmul.f32 %v3262, %v3275
        %v3277 = vadd.f32 %v3276, 0.014752088
        %v3278 = vmul.f32 %v3262, %v3277
        %v3279 = vadd.f32 %v3278, 0.112945676
        %v3280 = vmul.f32 %v3262, %v3279
        %v3281 = vadd.f32 %v3280, 0.4994258
        %v3282 = vmul.f32 %v3262, %v3281
        %v3283 = vadd.f32 %v3282, 1.0
        %v3284 = vrcp.pop %v3283
        %v3285 = vmul.f32 %v3283, %v3284
        %v3286 = vsub.f32 1.0, %v3285
        %v3287 = vmul.f32 %v3284, %v3286
        %v3288 = vadd.f32 %v3284, %v3287
        %vm3289 = vweird.f32 %v3283
        %vm3290 = vweird.f32 %v3284
        %vm3291 = vmor %vm3289, %vm3290
        %v3292 = vsel %vm3291, %v3284, %v3288
        %v3293 = vand.u32 2147483647, %v3283
        %vm3294 = vcmp.eq.f32.partialorder %v3293, 8.507059e+37
        %v3295 = vand.u32 %v3283, 2147483648
        %v3296 = vor.u32 1.1754944e-38, %v3295
        %v3297 = vsel %vm3294, %v3296, %v3292
        %v3298 = vmul.f32 %v3273, %v3297
        %v3299 = vmin.f32 %v3298, 1.0
        %v3300 = vmax.f32 %v3299, -1.0
        %v3301 = vmul.f32 %v2856, %v2856
        %v3302 = vmin.f32 16.0, %v3301
        %v3303 = vmul.f32 %v3302, 2.1237322e-06
        %v3304 = vadd.f32 %v3303, 0.00028619796
        %v3305 = vmul.f32 %v3302, %v3304
        %v3306 = vadd.f32 %v3305, 0.0036580483
        %v3307 = vmul.f32 %v3302, %v3306
        %v3308 = vadd.f32 %v3307, 0.05243302
        %v3309 = vmul.f32 %v3302, %v3308
        %v3310 = vadd.f32 %v3309, 0.18741608
        %v3311 = vmul.f32 %v3302, %v3310
        %v3312 = vadd.f32 %v3311, 1.1283791
        %v3313 = vmul.f32 %v2856, %v3312
        %v3314 = vmul.f32 %v3302, 3.8918573e-05
        %v3315 = vadd.f32 %v3314, 0.001143296
        %v3316 = vmul.f32 %v3302, %v3315
        %v3317 = vadd.f32 %v3316, 0.014752088
        %v3318 = vmul.f32 %v3302, %v3317
        %v3319 = vadd.f32 %v3318, 0.112945676
        %v3320 = vmul.f32 %v3302, %v3319
        %v3321 = vadd.f32 %v3320, 0.4994258
        %v3322 = vmul.f32 %v3302, %v3321
        %v3323 = vadd.f32 %v3322, 1.0
        %v3324 = vrcp.pop %v3323
        %v3325 = vmul.f32 %v3323, %v3324
        %v3326 = vsub.f32 1.0, %v3325
        %v3327 = vmul.f32 %v3324, %v3326
        %v3328 = vadd.f32 %v3324, %v3327
        %vm3329 = vweird.f32 %v3323
        %vm3330 = vweird.f32 %v3324
        %vm3331 = vmor %vm3329, %vm3330
        %v3332 = vsel %vm3331, %v3324, %v3328
        %v3333 = vand.u32 2147483647, %v3323
        %vm3334 = vcmp.eq.f32.partialorder %v3333, 8.507059e+37
        %v3335 = vand.u32 %v3323, 2147483648
        %v3336 = vor.u32 1.1754944e-38, %v3335
        %v3337 = vsel %vm3334, %v3336, %v3332
        %v3338 = vmul.f32 %v3313, %v3337
        %v3339 = vmin.f32 %v3338, 1.0
        %v3340 = vmax.f32 %v3339, -1.0
        %v3341 = vmul.f32 %v2857, %v2857
        %v3342 = vmin.f32 16.0, %v3341
        %v3343 = vmul.f32 %v3342, 2.1237322e-06
        %v3344 = vadd.f32 %v3343, 0.00028619796
        %v3345 = vmul.f32 %v3342, %v3344
        %v3346 = vadd.f32 %v3345, 0.0036580483
        %v3347 = vmul.f32 %v3342, %v3346
        %v3348 = vadd.f32 %v3347, 0.05243302
        %v3349 = vmul.f32 %v3342, %v3348
        %v3350 = vadd.f32 %v3349, 0.18741608
        %v3351 = vmul.f32 %v3342, %v3350
        %v3352 = vadd.f32 %v3351, 1.1283791
        %v3353 = vmul.f32 %v2857, %v3352
        %v3354 = vmul.f32 %v3342, 3.8918573e-05
        %v3355 = vadd.f32 %v3354, 0.001143296
        %v3356 = vmul.f32 %v3342, %v3355
        %v3357 = vadd.f32 %v3356, 0.014752088
        %v3358 = vmul.f32 %v3342, %v3357
        %v3359 = vadd.f32 %v3358, 0.112945676
        %v3360 = vmul.f32 %v3342, %v3359
        %v3361 = vadd.f32 %v3360, 0.4994258
        %v3362 = vmul.f32 %v3342, %v3361
        %v3363 = vadd.f32 %v3362, 1.0
        %v3364 = vrcp.pop %v3363
        %v3365 = vmul.f32 %v3363, %v3364
        %v3366 = vsub.f32 1.0, %v3365
        %v3367 = vmul.f32 %v3364, %v3366
        %v3368 = vadd.f32 %v3364, %v3367
        %vm3369 = vweird.f32 %v3363
        %vm3370 = vweird.f32 %v3364
        %vm3371 = vmor %vm3369, %vm3370
        %v3372 = vsel %vm3371, %v3364, %v3368
        %v3373 = vand.u32 2147483647, %v3363
        %vm3374 = vcmp.eq.f32.partialorder %v3373, 8.507059e+37
        %v3375 = vand.u32 %v3363, 2147483648
        %v3376 = vor.u32 1.1754944e-38, %v3375
        %v3377 = vsel %vm3374, %v3376, %v3372
        %v3378 = vmul.f32 %v3353, %v3377
        %v3379 = vmin.f32 %v3378, 1.0
        %v3380 = vmax.f32 %v3379, -1.0
        %v3381 = vmul.f32 %v2858, %v2858
        %v3382 = vmin.f32 16.0, %v3381
        %v3383 = vmul.f32 %v3382, 2.1237322e-06
        %v3384 = vadd.f32 %v3383, 0.00028619796
        %v3385 = vmul.f32 %v3382, %v3384
        %v3386 = vadd.f32 %v3385, 0.0036580483
        %v3387 = vmul.f32 %v3382, %v3386
        %v3388 = vadd.f32 %v3387, 0.05243302
        %v3389 = vmul.f32 %v3382, %v3388
        %v3390 = vadd.f32 %v3389, 0.18741608
        %v3391 = vmul.f32 %v3382, %v3390
        %v3392 = vadd.f32 %v3391, 1.1283791
        %v3393 = vmul.f32 %v2858, %v3392
        %v3394 = vmul.f32 %v3382, 3.8918573e-05
        %v3395 = vadd.f32 %v3394, 0.001143296
        %v3396 = vmul.f32 %v3382, %v3395
        %v3397 = vadd.f32 %v3396, 0.014752088
        %v3398 = vmul.f32 %v3382, %v3397
        %v3399 = vadd.f32 %v3398, 0.112945676
        %v3400 = vmul.f32 %v3382, %v3399
        %v3401 = vadd.f32 %v3400, 0.4994258
        %v3402 = vmul.f32 %v3382, %v3401
        %v3403 = vadd.f32 %v3402, 1.0
        %v3404 = vrcp.pop %v3403
        %v3405 = vmul.f32 %v3403, %v3404
        %v3406 = vsub.f32 1.0, %v3405
        %v3407 = vmul.f32 %v3404, %v3406
        %v3408 = vadd.f32 %v3404, %v3407
        %vm3409 = vweird.f32 %v3403
        %vm3410 = vweird.f32 %v3404
        %vm3411 = vmor %vm3409, %vm3410
        %v3412 = vsel %vm3411, %v3404, %v3408
        %v3413 = vand.u32 2147483647, %v3403
        %vm3414 = vcmp.eq.f32.partialorder %v3413, 8.507059e+37
        %v3415 = vand.u32 %v3403, 2147483648
        %v3416 = vor.u32 1.1754944e-38, %v3415
        %v3417 = vsel %vm3414, %v3416, %v3412
        %v3418 = vmul.f32 %v3393, %v3417
        %v3419 = vmin.f32 %v3418, 1.0
        %v3420 = vmax.f32 %v3419, -1.0
        %v3421 = vmul.f32 %v2859, %v2859
        %v3422 = vmin.f32 16.0, %v3421
        %v3423 = vmul.f32 %v3422, 2.1237322e-06
        %v3424 = vadd.f32 %v3423, 0.00028619796
        %v3425 = vmul.f32 %v3422, %v3424
        %v3426 = vadd.f32 %v3425, 0.0036580483
        %v3427 = vmul.f32 %v3422, %v3426
        %v3428 = vadd.f32 %v3427, 0.05243302
        %v3429 = vmul.f32 %v3422, %v3428
        %v3430 = vadd.f32 %v3429, 0.18741608
        %v3431 = vmul.f32 %v3422, %v3430
        %v3432 = vadd.f32 %v3431, 1.1283791
        %v3433 = vmul.f32 %v2859, %v3432
        %v3434 = vmul.f32 %v3422, 3.8918573e-05
        %v3435 = vadd.f32 %v3434, 0.001143296
        %v3436 = vmul.f32 %v3422, %v3435
        %v3437 = vadd.f32 %v3436, 0.014752088
        %v3438 = vmul.f32 %v3422, %v3437
        %v3439 = vadd.f32 %v3438, 0.112945676
        %v3440 = vmul.f32 %v3422, %v3439
        %v3441 = vadd.f32 %v3440, 0.4994258
        %v3442 = vmul.f32 %v3422, %v3441
        %v3443 = vadd.f32 %v3442, 1.0
        %v3444 = vrcp.pop %v3443
        %v3445 = vmul.f32 %v3443, %v3444
        %v3446 = vsub.f32 1.0, %v3445
        %v3447 = vmul.f32 %v3444, %v3446
        %v3448 = vadd.f32 %v3444, %v3447
        %vm3449 = vweird.f32 %v3443
        %vm3450 = vweird.f32 %v3444
        %vm3451 = vmor %vm3449, %vm3450
        %v3452 = vsel %vm3451, %v3444, %v3448
        %v3453 = vand.u32 2147483647, %v3443
        %vm3454 = vcmp.eq.f32.partialorder %v3453, 8.507059e+37
        %v3455 = vand.u32 %v3443, 2147483648
        %v3456 = vor.u32 1.1754944e-38, %v3455
        %v3457 = vsel %vm3454, %v3456, %v3452
        %v3458 = vmul.f32 %v3433, %v3457
        %v3459 = vmin.f32 %v3458, 1.0
        %v3460 = vmax.f32 %v3459, -1.0
        %v3461 = vmul.f32 %v2860, %v2860
        %v3462 = vmin.f32 16.0, %v3461
        %v3463 = vmul.f32 %v3462, 2.1237322e-06
        %v3464 = vadd.f32 %v3463, 0.00028619796
        %v3465 = vmul.f32 %v3462, %v3464
        %v3466 = vadd.f32 %v3465, 0.0036580483
        %v3467 = vmul.f32 %v3462, %v3466
        %v3468 = vadd.f32 %v3467, 0.05243302
        %v3469 = vmul.f32 %v3462, %v3468
        %v3470 = vadd.f32 %v3469, 0.18741608
        %v3471 = vmul.f32 %v3462, %v3470
        %v3472 = vadd.f32 %v3471, 1.1283791
        %v3473 = vmul.f32 %v2860, %v3472
        %v3474 = vmul.f32 %v3462, 3.8918573e-05
        %v3475 = vadd.f32 %v3474, 0.001143296
        %v3476 = vmul.f32 %v3462, %v3475
        %v3477 = vadd.f32 %v3476, 0.014752088
        %v3478 = vmul.f32 %v3462, %v3477
        %v3479 = vadd.f32 %v3478, 0.112945676
        %v3480 = vmul.f32 %v3462, %v3479
        %v3481 = vadd.f32 %v3480, 0.4994258
        %v3482 = vmul.f32 %v3462, %v3481
        %v3483 = vadd.f32 %v3482, 1.0
        %v3484 = vrcp.pop %v3483
        %v3485 = vmul.f32 %v3483, %v3484
        %v3486 = vsub.f32 1.0, %v3485
        %v3487 = vmul.f32 %v3484, %v3486
        %v3488 = vadd.f32 %v3484, %v3487
        %vm3489 = vweird.f32 %v3483
        %vm3490 = vweird.f32 %v3484
        %vm3491 = vmor %vm3489, %vm3490
        %v3492 = vsel %vm3491, %v3484, %v3488
        %v3493 = vand.u32 2147483647, %v3483
        %vm3494 = vcmp.eq.f32.partialorder %v3493, 8.507059e+37
        %v3495 = vand.u32 %v3483, 2147483648
        %v3496 = vor.u32 1.1754944e-38, %v3495
        %v3497 = vsel %vm3494, %v3496, %v3492
        %v3498 = vmul.f32 %v3473, %v3497
        %v3499 = vmin.f32 %v3498, 1.0
        %v3500 = vmax.f32 %v3499, -1.0
        %v3501 = vadd.f32 %v2900, 1.0
        %v3502 = vadd.f32 %v2940, 1.0
        %v3503 = vadd.f32 %v2980, 1.0
        %v3504 = vadd.f32 %v3020, 1.0
        %v3505 = vadd.f32 %v3060, 1.0
        %v3506 = vadd.f32 %v3100, 1.0
        %v3507 = vadd.f32 %v3140, 1.0
        %v3508 = vadd.f32 %v3180, 1.0
        %v3509 = vadd.f32 %v3220, 1.0
        %v3510 = vadd.f32 %v3260, 1.0
        %v3511 = vadd.f32 %v3300, 1.0
        %v3512 = vadd.f32 %v3340, 1.0
        %v3513 = vadd.f32 %v3380, 1.0
        %v3514 = vadd.f32 %v3420, 1.0
        %v3515 = vadd.f32 %v3460, 1.0
        %v3516 = vadd.f32 %v3500, 1.0
        %v3517 = vmul.f32 %v2829, %v3501
        %v3518 = vmul.f32 %v2830, %v3502
        %v3519 = vmul.f32 %v2831, %v3503
        %v3520 = vmul.f32 %v2832, %v3504
        %v3521 = vmul.f32 %v2833, %v3505
        %v3522 = vmul.f32 %v2834, %v3506
        %v3523 = vmul.f32 %v2835, %v3507
        %v3524 = vmul.f32 %v2836, %v3508
        %v3525 = vmul.f32 %v2837, %v3509
        %v3526 = vmul.f32 %v2838, %v3510
        %v3527 = vmul.f32 %v2839, %v3511
        %v3528 = vmul.f32 %v2840, %v3512
        %v3529 = vmul.f32 %v2841, %v3513
        %v3530 = vmul.f32 %v2842, %v3514
        %v3531 = vmul.f32 %v2843, %v3515
        %v3532 = vmul.f32 %v2844, %v3516
        %v3533 = vld [vmem:[%s7] sm:$0xff]
        %v3534 = vld [vmem:[%s7 + $0x8] sm:$0xff]
        %v3535 = vld [vmem:[%s7 + $0x10] sm:$0xff]
        %v3536 = vld [vmem:[%s7 + $0x18] sm:$0xff]
        %v3537 = vld [vmem:[%s7 + $0x20] sm:$0xff]
        %v3538 = vld [vmem:[%s7 + $0x28] sm:$0xff]
        %v3539 = vld [vmem:[%s7 + $0x30] sm:$0xff]
        %v3540 = vld [vmem:[%s7 + $0x38] sm:$0xff]
        %v3541 = vld [vmem:[%s8] sm:$0x1]
        %v3543 = vperm.slane %v3541, 0
        %vm3545 = vcmask 523264
        %v3547 = vsel %vm3545, %v3517, 0
        %v3550 = vsel %vm3545, %v3518, 0
        %v3553 = vsel %vm3545, %v3519, 0
        %v3556 = vsel %vm3545, %v3520, 0
        %v3559 = vsel %vm3545, %v3521, 0
        %v3562 = vsel %vm3545, %v3522, 0
        %v3565 = vsel %vm3545, %v3523, 0
        %v3568 = vsel %vm3545, %v3524, 0
        %v3571 = vsel %vm3545, %v3525, 0
        %v3574 = vsel %vm3545, %v3526, 0
        %v3577 = vsel %vm3545, %v3527, 0
        %v3580 = vsel %vm3545, %v3528, 0
        %v3583 = vsel %vm3545, %v3529, 0
        %v3586 = vsel %vm3545, %v3530, 0
        %v3589 = vsel %vm3545, %v3531, 0
        %v3592 = vsel %vm3545, %v3532, 0
        %3594 = vmatpush.msra.mxu0 0.0
        %3595 = vmatpush.msra.mxu0 0.0
        %3596 = vmatpush.msra.mxu0 0.0
        %3597 = vmatpush.msra.mxu0 0.0
        %3598 = vmatpush.msra.mxu0 0.0
        %3599 = vmatpush.msra.mxu0 0.0
        %3600 = vmatpush.msra.mxu0 0.0
        %3601 = vmatpush.msra.mxu0 0.0
        %3602 = vmatpush.msra.mxu0 %v3540
        %3603 = vmatpush.msra.mxu0 %v3539
        %3604 = vmatpush.msra.mxu0 %v3538
        %3605 = vmatpush.msra.mxu0 %v3537
        %3606 = vmatpush.msra.mxu0 %v3536
        %3607 = vmatpush.msra.mxu0 %v3535
        %3608 = vmatpush.msra.mxu0 %v3534
        %3609 = vmatpush.msra.mxu0 %v3533
        %3610 = vmatmul.f32.gmra.mxu0 %v3547
        %v3611 = vpop.f32.mrf.mxu0
        %v3612 = vadd.f32 %v3543, %v3611
        %3613 = vmatmul.f32.gmra.mxu0 %v3550
        %v3614 = vpop.f32.mrf.mxu0
        %v3615 = vadd.f32 %v3543, %v3614
        %3616 = vmatmul.f32.gmra.mxu0 %v3553
        %v3617 = vpop.f32.mrf.mxu0
        %v3618 = vadd.f32 %v3543, %v3617
        %3619 = vmatmul.f32.gmra.mxu0 %v3556
        %v3620 = vpop.f32.mrf.mxu0
        %v3621 = vadd.f32 %v3543, %v3620
        %3622 = vmatmul.f32.gmra.mxu0 %v3559
        %v3623 = vpop.f32.mrf.mxu0
        %v3624 = vadd.f32 %v3543, %v3623
        %3625 = vmatmul.f32.gmra.mxu0 %v3562
        %v3626 = vpop.f32.mrf.mxu0
        %v3627 = vadd.f32 %v3543, %v3626
        %3628 = vmatmul.f32.gmra.mxu0 %v3565
        %v3629 = vpop.f32.mrf.mxu0
        %v3630 = vadd.f32 %v3543, %v3629
        %3631 = vmatmul.f32.gmra.mxu0 %v3568
        %v3632 = vpop.f32.mrf.mxu0
        %v3633 = vadd.f32 %v3543, %v3632
        %3634 = vmatmul.f32.gmra.mxu0 %v3571
        %v3635 = vpop.f32.mrf.mxu0
        %v3636 = vadd.f32 %v3543, %v3635
        %3637 = vmatmul.f32.gmra.mxu0 %v3574
        %v3638 = vpop.f32.mrf.mxu0
        %v3639 = vadd.f32 %v3543, %v3638
        %3640 = vmatmul.f32.gmra.mxu0 %v3577
        %v3641 = vpop.f32.mrf.mxu0
        %v3642 = vadd.f32 %v3543, %v3641
        %3643 = vmatmul.f32.gmra.mxu0 %v3580
        %v3644 = vpop.f32.mrf.mxu0
        %v3645 = vadd.f32 %v3543, %v3644
        %3646 = vmatmul.f32.gmra.mxu0 %v3583
        %v3647 = vpop.f32.mrf.mxu0
        %v3648 = vadd.f32 %v3543, %v3647
        %3649 = vmatmul.f32.gmra.mxu0 %v3586
        %v3650 = vpop.f32.mrf.mxu0
        %v3651 = vadd.f32 %v3543, %v3650
        %3652 = vmatmul.f32.gmra.mxu0 %v3589
        %v3653 = vpop.f32.mrf.mxu0
        %v3654 = vadd.f32 %v3543, %v3653
        %3655 = vmatmul.f32.gmra.mxu0 %v3592
        %v3656 = vpop.f32.mrf.mxu0
        %v3657 = vadd.f32 %v3543, %v3656
        %3658 = vdwg.mxu0
        %v3659 = vld [vmem:[%s417 + $0x8] sm:$0xff]
        %v3660 = vld [vmem:[%s417 + $0x10] sm:$0xff]
        %v3661 = vld [vmem:[%s417 + $0x28] sm:$0xff]
        %v3662 = vld [vmem:[%s417 + $0x30] sm:$0xff]
        %v3663 = vld [vmem:[%s417 + $0x48] sm:$0xff]
        %v3664 = vld [vmem:[%s417 + $0x50] sm:$0xff]
        %v3665 = vld [vmem:[%s417 + $0x68] sm:$0xff]
        %v3666 = vld [vmem:[%s417 + $0x70] sm:$0xff]
        %v3667 = vld [vmem:[%s417 + $0x88] sm:$0xff]
        %v3668 = vld [vmem:[%s417 + $0x90] sm:$0xff]
        %v3669 = vld [vmem:[%s417 + $0xa8] sm:$0xff]
        %v3670 = vld [vmem:[%s417 + $0xb0] sm:$0xff]
        %v3671 = vld [vmem:[%s417 + $0xc8] sm:$0xff]
        %v3672 = vld [vmem:[%s417 + $0xd0] sm:$0xff]
        %v3673 = vld [vmem:[%s417 + $0xe8] sm:$0xff]
        %v3674 = vld [vmem:[%s417 + $0xf0] sm:$0xff]
        %v3675 = vadd.f32 %v3659, %v3612
        %v3676 = vadd.f32 %v3660, %v3615
        %v3677 = vadd.f32 %v3661, %v3618
        %v3678 = vadd.f32 %v3662, %v3621
        %v3679 = vadd.f32 %v3663, %v3624
        %v3680 = vadd.f32 %v3664, %v3627
        %v3681 = vadd.f32 %v3665, %v3630
        %v3682 = vadd.f32 %v3666, %v3633
        %v3683 = vadd.f32 %v3667, %v3636
        %v3684 = vadd.f32 %v3668, %v3639
        %v3685 = vadd.f32 %v3669, %v3642
        %v3686 = vadd.f32 %v3670, %v3645
        %v3687 = vadd.f32 %v3671, %v3648
        %v3688 = vadd.f32 %v3672, %v3651
        %v3689 = vadd.f32 %v3673, %v3654
        %v3690 = vadd.f32 %v3674, %v3657
        %3691 = vst.msk [vmem:[%s366] sm:$0xff] %vm369, %v3675
        %3692 = vst.msk [vmem:[%s366 + $0x8] sm:$0xff] %vm369, %v3676
        %3693 = vst.msk [vmem:[%s366 + $0x10] sm:$0xff] %vm369, %v3677
        %3694 = vst.msk [vmem:[%s366 + $0x18] sm:$0xff] %vm369, %v3678
        %3695 = vst.msk [vmem:[%s366 + $0x20] sm:$0xff] %vm369, %v3679
        %3696 = vst.msk [vmem:[%s366 + $0x28] sm:$0xff] %vm369, %v3680
        %3697 = vst.msk [vmem:[%s366 + $0x30] sm:$0xff] %vm369, %v3681
        %3698 = vst.msk [vmem:[%s366 + $0x38] sm:$0xff] %vm369, %v3682
        %3699 = vst.msk [vmem:[%s366 + $0x40] sm:$0xff] %vm369, %v3683
        %3700 = vst.msk [vmem:[%s366 + $0x48] sm:$0xff] %vm369, %v3684
        %3701 = vst.msk [vmem:[%s366 + $0x50] sm:$0xff] %vm369, %v3685
        %3702 = vst.msk [vmem:[%s366 + $0x58] sm:$0xff] %vm369, %v3686
        %3703 = vst.msk [vmem:[%s366 + $0x60] sm:$0xff] %vm369, %v3687
        %3704 = vst.msk [vmem:[%s366 + $0x68] sm:$0xff] %vm369, %v3688
        %3705 = vst.msk [vmem:[%s366 + $0x70] sm:$0xff] %vm369, %v3689
        %3706 = vst.msk [vmem:[%s366 + $0x78] sm:$0xff] %vm369, %v3690
        %s3707 = sand.u32 %s242, 1
        %s3708 = scalar_lea.sflag [#allocation5], %s3707
        %s3709 = sand.u32 %s242, 1
        %s3710 = smul.addr %s3709, 128
        %s3711 = scalar_lea.vmem [#allocation6], %s3710
        // Predicated region
        $region77: #{tpu_custom_call.1} parent=55 // pred_check
          %p3712 = pneg %p252
        $region78: #{tpu_custom_call.1} parent=55 // pred_check_branch
          %3714 = sbr.rel (%p3712) target = $region80
        $region79: #{tpu_custom_call.1} parent=55 // pred_region
          %s3715 = smul.u32 8, %s31
          %3717 = vsyncadd %s3708, 0
          %s3718 = smul.addr %s3715, 2
          %s3719 = smul.addr %s30, 32
          %s3720 = sadd.s32 %s3718, %s3719
          %s3721 = smul.addr %s3720, 8
          %s3722 = scalar_lea.hbm %s9, %s3721
          %s3723 = sshll.u32 %s3711, 4
          %s3724 = int_to_ptr.vmem [resolvable:$true] %s3723
          %s3725 = sshll.u32 %s3722, 4
          %s3726 = int_to_ptr.hbm [resolvable:$true] %s3725
          %3731 = dma.vmem_to_hbm [thread:$0]  %s3724, 2048, %s3726, %s3708, 128, 128, 8
        $region80: #{tpu_custom_call.1} parent=55 // pred_fallthru
          _
      $region56: #{tpu_custom_call.1} parent=5 // pred_fallthru
        _
      %p3732 = scmp.le.s32.totalorder 2, %s21
      // Predicated region
      $region81: #{tpu_custom_call.1} parent=5 // pred_check
        %p3733 = pneg %p3732
      $region82: #{tpu_custom_call.1} parent=5 // pred_check_branch
        %3735 = sbr.rel (%p3733) target = $region84
      $region83: #{tpu_custom_call.1} parent=5 // pred_region
        %s3736 = ssub.s32 %s21, 2
        // Predicated region
        $region85: #{tpu_custom_call.1} parent=83 // pred_check
          %p3737 = pneg %p258
        $region86: #{tpu_custom_call.1} parent=83 // pred_check_branch
          %3739 = sbr.rel (%p3737) target = $region88
        $region87: #{tpu_custom_call.1} parent=83 // pred_region
          %s3740 = sand.u32 %s243, 1
          %s3741 = scalar_lea.sflag [#allocation5], %s3740
          %s3742 = sand.u32 %s243, 1
          %s3743 = smul.addr %s3742, 128
          %s3744 = scalar_lea.vmem [#allocation6], %s3743
          %3746 = dma.done %s3741, 2048
        $region88: #{tpu_custom_call.1} parent=83 // pred_fallthru
          _
      $region84: #{tpu_custom_call.1} parent=5 // pred_fallthru
        _
    $region6: #{tpu_custom_call.1} parent=1 // loop_footer
      %s25 = sadd.s32 1, %s21
    $region7: #{tpu_custom_call.1} parent=1 // loop_footer_branch
      %20 = sbr.rel target = $region3
    $region8: #{tpu_custom_call.1} parent=1 // loop_exit
      _
    %3747 = vsyncpa [#allocation4], 1
    %s3748 = scalar_lea.sflag [#allocation4], 1
    %3749 = vsyncpa %s3748, 1
    %3750 = vsyncpa [#allocation5], 1
    %s3751 = scalar_lea.sflag [#allocation5], 1
    %3752 = vsyncpa %s3751, 1

</llo_original>
